<compile_context>
chip_gen: v7x
topology: tpu7x:2x2x1
jax: 0.10.0
libtpu: 0.0.40
codegen_flags: <defaults>
</compile_context>

<pallas_src>
import jax
import jax.numpy as jnp
from jax.experimental import pallas as pl
from jax.experimental.pallas import tpu as pltpu

# Model hyperparameters (LSTMNet defaults)
VOCAB = 100
EMBED = 50
HIDDEN = 32
NUM_CLASSES = 2
NUM_LAYERS = 5


def _make_kernel(T, B):
    H = HIDDEN
    L = NUM_LAYERS

    def kernel(xlen_ref, x_ref,
               w_ih0_ref, w_hh0_ref, b0_ref,
               w_ih_ref, w_hh_ref, b_ref,
               w_fc_ref, b_fc_ref,
               logits_ref):
        # Hoisted loop-invariants.
        lens_m1 = xlen_ref[...] - 1                      # (B, 1) int32

        # Final hidden of the last two layers (selected at t = len-1).
        hfin = [jnp.zeros((B, H), jnp.float32),
                jnp.zeros((B, H), jnp.float32)]

        # Layer-0 input: time-major flattened rows (T*B, E).
        flat_in = x_ref[...]

        for l in range(L):
            if l == 0:
                w_ih = w_ih0_ref[...]                    # (E, 4H)
                w_hh = w_hh0_ref[...]                    # (H, 4H)
                b = b0_ref[...]                          # (1, 4H)
            else:
                w_ih = w_ih_ref[l - 1]                   # (H, 4H)
                w_hh = w_hh_ref[l - 1]                   # (H, 4H)
                b = b_ref[l - 1]                         # (1, 4H)

            # Hoisted input-to-hidden matmul + bias for all T steps at once.
            gates_x = jnp.dot(flat_in, w_ih,
                              preferred_element_type=jnp.float32) + b   # (T*B, 4H)

            # Recurrence: only h @ w_hh remains on the dependent chain.
            h = jnp.zeros((B, H), jnp.float32)
            c = jnp.zeros((B, H), jnp.float32)
            h_rows = []
            for t in range(T):                           # fully unrolled, T static
                gates = gates_x[t * B:(t + 1) * B, :] + jnp.dot(
                    h, w_hh, preferred_element_type=jnp.float32)        # (B, 4H)
                # Full 128-lane activation passes, then slice i,f,g,o.
                sig = jax.nn.sigmoid(gates)
                th = jnp.tanh(gates)
                i = sig[:, 0:H]
                f = sig[:, H:2 * H]
                g = th[:, 2 * H:3 * H]
                o = sig[:, 3 * H:4 * H]
                c = f * c + i * g
                h = o * jnp.tanh(c)
                if l < L - 1:
                    h_rows.append(h)                     # last layer's seq unused
                if l >= L - 2:
                    k = l - (L - 2)
                    mask = lens_m1 == t                  # (B, 1): t == x_len[b]-1
                    hfin[k] = jnp.where(mask, h, hfin[k])

            if l < L - 1:
                flat_in = jnp.concatenate(h_rows, axis=0)   # (T*B, H)

        # fc on concat(hidden[-2], hidden[-1]) as a split matmul (no concat).
        w_fc = w_fc_ref[...]                             # (2H, C)
        logits_ref[...] = (
            jnp.dot(hfin[0], w_fc[0:H, :], preferred_element_type=jnp.float32)
            + jnp.dot(hfin[1], w_fc[H:2 * H, :], preferred_element_type=jnp.float32)
            + b_fc_ref[...])

    return kernel


def lstm_net_forward(x_tokens, x_len, params):
    """x_tokens: (B, T) int32 token ids, x_len: (B,) lengths (>=1). Returns (B, C)."""
    B, T = x_tokens.shape
    # Embedding gather is glue (plain JAX); padding_idx row is zero in the table.
    emb = params["embedding"][x_tokens]                          # (B, T, E)
    # Time-major flattened rows so the per-layer input matmul is one (T*B, in) matmul.
    x_flat = jnp.transpose(emb, (1, 0, 2)).reshape(T * B, EMBED).astype(jnp.float32)

    vmem = pl.BlockSpec(memory_space=pltpu.MemorySpace.VMEM)
    out = pl.pallas_call(
        _make_kernel(T, B),
        out_shape=jax.ShapeDtypeStruct((B, NUM_CLASSES), jnp.float32),
        in_specs=[vmem] * 10,
        out_specs=vmem,
    )(
        x_len.astype(jnp.int32).reshape(B, 1),
        x_flat,
        params["w_ih0"], params["w_hh0"], params["b0"],
        params["w_ih_rest"], params["w_hh_rest"], params["b_rest"],
        params["w_fc"], params["b_fc"],
    )
    return out


def init_params(key):
    keys = jax.random.split(key, 11)
    s = 1.0 / jnp.sqrt(HIDDEN)

    def u(k, shape, scale=s):
        return jax.random.uniform(k, shape, jnp.float32, -scale, scale)

    emb = jax.random.normal(keys[0], (VOCAB, EMBED), jnp.float32)
    emb = emb.at[0].set(0.0)                               # padding_idx = 0

    # Layer 0 (input size = EMBED); weights stored transposed for x @ W.
    w_ih0 = u(keys[1], (EMBED, 4 * HIDDEN))
    w_hh0 = u(keys[2], (HIDDEN, 4 * HIDDEN))
    b0 = u(keys[3], (1, 4 * HIDDEN)) + u(keys[4], (1, 4 * HIDDEN))   # b_ih + b_hh

    # Layers 1..L-1 (input size = HIDDEN)
    w_ih_rest = u(keys[5], (NUM_LAYERS - 1, HIDDEN, 4 * HIDDEN))
    w_hh_rest = u(keys[6], (NUM_LAYERS - 1, HIDDEN, 4 * HIDDEN))
    b_rest = (u(keys[7], (NUM_LAYERS - 1, 1, 4 * HIDDEN))
              + u(keys[8], (NUM_LAYERS - 1, 1, 4 * HIDDEN)))

    fs = 1.0 / jnp.sqrt(2 * HIDDEN)
    w_fc = u(keys[9], (2 * HIDDEN, NUM_CLASSES), fs)
    b_fc = u(keys[10], (1, NUM_CLASSES), fs)

    return dict(embedding=emb, w_ih0=w_ih0, w_hh0=w_hh0, b0=b0,
                w_ih_rest=w_ih_rest, w_hh_rest=w_hh_rest, b_rest=b_rest,
                w_fc=w_fc, b_fc=b_fc)


if __name__ == "__main__":
    key = jax.random.PRNGKey(0)
    pk, xk = jax.random.split(key)
    B, T = 2, 8

    params = init_params(pk)
    x = jax.random.randint(xk, (B, T), 1, VOCAB, dtype=jnp.int32)
    x_len = jnp.array([T, 5], dtype=jnp.int32)
    # Zero-pad tokens past each sequence's length (padded batch, pad_idx=0).
    x = jnp.where(jnp.arange(T)[None, :] < x_len[:, None], x, 0)

    logits = lstm_net_forward(x, x_len, params)
    jax.block_until_ready(logits)
    assert logits.shape == (B, NUM_CLASSES)
    print("KERNEL_OK")
</pallas_src>

<mosaic_0001>
module attributes {stable_mosaic.version = 11 : i64} {
  func.func @kernel(%arg0: memref<2x1xi32, #tpu.memory_space<vmem>>, %arg1: memref<16x50xf32, #tpu.memory_space<vmem>>, %arg2: memref<50x128xf32, #tpu.memory_space<vmem>>, %arg3: memref<32x128xf32, #tpu.memory_space<vmem>>, %arg4: memref<1x128xf32, #tpu.memory_space<vmem>>, %arg5: memref<4x32x128xf32, #tpu.memory_space<vmem>>, %arg6: memref<4x32x128xf32, #tpu.memory_space<vmem>>, %arg7: memref<4x1x128xf32, #tpu.memory_space<vmem>>, %arg8: memref<64x2xf32, #tpu.memory_space<vmem>>, %arg9: memref<1x2xf32, #tpu.memory_space<vmem>>, %arg10: memref<2x2xf32, #tpu.memory_space<vmem>>) attributes {dimension_semantics = [], scalar_prefetch = 0 : i64, scratch_operands = 0 : i64, tpu.core_type = #tpu.core_type<tc>} {
    %c0 = arith.constant 0 : index
    %c0_0 = arith.constant 0 : index
    %0 = vector.load %arg0[%c0, %c0_0] : memref<2x1xi32, #tpu.memory_space<vmem>>, vector<2x1xi32>
    %c1_i32 = arith.constant 1 : i32
    %1 = vector.broadcast %c1_i32 : i32 to vector<2x1xi32>
    %2 = arith.subi %0, %1 : vector<2x1xi32>
    %cst = arith.constant 0.000000e+00 : f32
    %3 = vector.broadcast %cst : f32 to vector<2x32xf32>
    %cst_1 = arith.constant 0.000000e+00 : f32
    %4 = vector.broadcast %cst_1 : f32 to vector<2x32xf32>
    %c0_2 = arith.constant 0 : index
    %c0_3 = arith.constant 0 : index
    %5 = vector.load %arg1[%c0_2, %c0_3] : memref<16x50xf32, #tpu.memory_space<vmem>>, vector<16x50xf32>
    %c0_4 = arith.constant 0 : index
    %c0_5 = arith.constant 0 : index
    %6 = vector.load %arg2[%c0_4, %c0_5] : memref<50x128xf32, #tpu.memory_space<vmem>>, vector<50x128xf32>
    %c0_6 = arith.constant 0 : index
    %c0_7 = arith.constant 0 : index
    %7 = vector.load %arg3[%c0_6, %c0_7] : memref<32x128xf32, #tpu.memory_space<vmem>>, vector<32x128xf32>
    %c0_8 = arith.constant 0 : index
    %c0_9 = arith.constant 0 : index
    %8 = vector.load %arg4[%c0_8, %c0_9] : memref<1x128xf32, #tpu.memory_space<vmem>>, vector<1x128xf32>
    %cst_10 = arith.constant dense<0.000000e+00> : vector<16x128xf32>
    %9 = tpu.matmul %5, %6, %cst_10 {dimension_numbers = #tpu.dot_dimension_numbers<[1], [0], [0], [1], [0, 0, 1, 1], [], []>} : vector<16x50xf32>, vector<50x128xf32>, vector<16x128xf32> -> vector<16x128xf32>
    %10 = vector.broadcast %8 : vector<1x128xf32> to vector<16x128xf32>
    %11 = arith.addf %9, %10 : vector<16x128xf32>
    %cst_11 = arith.constant 0.000000e+00 : f32
    %12 = vector.broadcast %cst_11 : f32 to vector<2x32xf32>
    %cst_12 = arith.constant 0.000000e+00 : f32
    %13 = vector.broadcast %cst_12 : f32 to vector<2x32xf32>
    %14 = vector.extract_strided_slice %11 {offsets = [0, 0], sizes = [2, 128], strides = [1, 1]} : vector<16x128xf32> to vector<2x128xf32>
    %cst_13 = arith.constant dense<0.000000e+00> : vector<2x128xf32>
    %15 = tpu.matmul %12, %7, %cst_13 {dimension_numbers = #tpu.dot_dimension_numbers<[1], [0], [0], [1], [0, 0, 1, 1], [], []>} : vector<2x32xf32>, vector<32x128xf32>, vector<2x128xf32> -> vector<2x128xf32>
    %16 = arith.addf %14, %15 : vector<2x128xf32>
    %17 = arith.negf %16 : vector<2x128xf32>
    %18 = math.exp %17 : vector<2x128xf32>
    %cst_14 = arith.constant 1.000000e+00 : f32
    %19 = vector.broadcast %cst_14 : f32 to vector<2x128xf32>
    %20 = arith.addf %19, %18 : vector<2x128xf32>
    %21 = arith.divf %19, %20 : vector<2x128xf32>
    %22 = math.tanh %16 : vector<2x128xf32>
    %23 = vector.extract_strided_slice %21 {offsets = [0, 0], sizes = [2, 32], strides = [1, 1]} : vector<2x128xf32> to vector<2x32xf32>
    %24 = vector.extract_strided_slice %21 {offsets = [0, 32], sizes = [2, 32], strides = [1, 1]} : vector<2x128xf32> to vector<2x32xf32>
    %25 = vector.extract_strided_slice %22 {offsets = [0, 64], sizes = [2, 32], strides = [1, 1]} : vector<2x128xf32> to vector<2x32xf32>
    %26 = vector.extract_strided_slice %21 {offsets = [0, 96], sizes = [2, 32], strides = [1, 1]} : vector<2x128xf32> to vector<2x32xf32>
    %27 = arith.mulf %24, %13 : vector<2x32xf32>
    %28 = arith.mulf %23, %25 : vector<2x32xf32>
    %29 = arith.addf %27, %28 : vector<2x32xf32>
    %30 = math.tanh %29 : vector<2x32xf32>
    %31 = arith.mulf %26, %30 : vector<2x32xf32>
    %32 = vector.extract_strided_slice %11 {offsets = [2, 0], sizes = [2, 128], strides = [1, 1]} : vector<16x128xf32> to vector<2x128xf32>
    %cst_15 = arith.constant dense<0.000000e+00> : vector<2x128xf32>
    %33 = tpu.matmul %31, %7, %cst_15 {dimension_numbers = #tpu.dot_dimension_numbers<[1], [0], [0], [1], [0, 0, 1, 1], [], []>} : vector<2x32xf32>, vector<32x128xf32>, vector<2x128xf32> -> vector<2x128xf32>
    %34 = arith.addf %32, %33 : vector<2x128xf32>
    %35 = arith.negf %34 : vector<2x128xf32>
    %36 = math.exp %35 : vector<2x128xf32>
    %cst_16 = arith.constant 1.000000e+00 : f32
    %37 = vector.broadcast %cst_16 : f32 to vector<2x128xf32>
    %38 = arith.addf %37, %36 : vector<2x128xf32>
    %39 = arith.divf %37, %38 : vector<2x128xf32>
    %40 = math.tanh %34 : vector<2x128xf32>
    %41 = vector.extract_strided_slice %39 {offsets = [0, 0], sizes = [2, 32], strides = [1, 1]} : vector<2x128xf32> to vector<2x32xf32>
    %42 = vector.extract_strided_slice %39 {offsets = [0, 32], sizes = [2, 32], strides = [1, 1]} : vector<2x128xf32> to vector<2x32xf32>
    %43 = vector.extract_strided_slice %40 {offsets = [0, 64], sizes = [2, 32], strides = [1, 1]} : vector<2x128xf32> to vector<2x32xf32>
    %44 = vector.extract_strided_slice %39 {offsets = [0, 96], sizes = [2, 32], strides = [1, 1]} : vector<2x128xf32> to vector<2x32xf32>
    %45 = arith.mulf %42, %29 : vector<2x32xf32>
    %46 = arith.mulf %41, %43 : vector<2x32xf32>
    %47 = arith.addf %45, %46 : vector<2x32xf32>
    %48 = math.tanh %47 : vector<2x32xf32>
    %49 = arith.mulf %44, %48 : vector<2x32xf32>
    %50 = vector.extract_strided_slice %11 {offsets = [4, 0], sizes = [2, 128], strides = [1, 1]} : vector<16x128xf32> to vector<2x128xf32>
    %cst_17 = arith.constant dense<0.000000e+00> : vector<2x128xf32>
    %51 = tpu.matmul %49, %7, %cst_17 {dimension_numbers = #tpu.dot_dimension_numbers<[1], [0], [0], [1], [0, 0, 1, 1], [], []>} : vector<2x32xf32>, vector<32x128xf32>, vector<2x128xf32> -> vector<2x128xf32>
    %52 = arith.addf %50, %51 : vector<2x128xf32>
    %53 = arith.negf %52 : vector<2x128xf32>
    %54 = math.exp %53 : vector<2x128xf32>
    %cst_18 = arith.constant 1.000000e+00 : f32
    %55 = vector.broadcast %cst_18 : f32 to vector<2x128xf32>
    %56 = arith.addf %55, %54 : vector<2x128xf32>
    %57 = arith.divf %55, %56 : vector<2x128xf32>
    %58 = math.tanh %52 : vector<2x128xf32>
    %59 = vector.extract_strided_slice %57 {offsets = [0, 0], sizes = [2, 32], strides = [1, 1]} : vector<2x128xf32> to vector<2x32xf32>
    %60 = vector.extract_strided_slice %57 {offsets = [0, 32], sizes = [2, 32], strides = [1, 1]} : vector<2x128xf32> to vector<2x32xf32>
    %61 = vector.extract_strided_slice %58 {offsets = [0, 64], sizes = [2, 32], strides = [1, 1]} : vector<2x128xf32> to vector<2x32xf32>
    %62 = vector.extract_strided_slice %57 {offsets = [0, 96], sizes = [2, 32], strides = [1, 1]} : vector<2x128xf32> to vector<2x32xf32>
    %63 = arith.mulf %60, %47 : vector<2x32xf32>
    %64 = arith.mulf %59, %61 : vector<2x32xf32>
    %65 = arith.addf %63, %64 : vector<2x32xf32>
    %66 = math.tanh %65 : vector<2x32xf32>
    %67 = arith.mulf %62, %66 : vector<2x32xf32>
    %68 = vector.extract_strided_slice %11 {offsets = [6, 0], sizes = [2, 128], strides = [1, 1]} : vector<16x128xf32> to vector<2x128xf32>
    %cst_19 = arith.constant dense<0.000000e+00> : vector<2x128xf32>
    %69 = tpu.matmul %67, %7, %cst_19 {dimension_numbers = #tpu.dot_dimension_numbers<[1], [0], [0], [1], [0, 0, 1, 1], [], []>} : vector<2x32xf32>, vector<32x128xf32>, vector<2x128xf32> -> vector<2x128xf32>
    %70 = arith.addf %68, %69 : vector<2x128xf32>
    %71 = arith.negf %70 : vector<2x128xf32>
    %72 = math.exp %71 : vector<2x128xf32>
    %cst_20 = arith.constant 1.000000e+00 : f32
    %73 = vector.broadcast %cst_20 : f32 to vector<2x128xf32>
    %74 = arith.addf %73, %72 : vector<2x128xf32>
    %75 = arith.divf %73, %74 : vector<2x128xf32>
    %76 = math.tanh %70 : vector<2x128xf32>
    %77 = vector.extract_strided_slice %75 {offsets = [0, 0], sizes = [2, 32], strides = [1, 1]} : vector<2x128xf32> to vector<2x32xf32>
    %78 = vector.extract_strided_slice %75 {offsets = [0, 32], sizes = [2, 32], strides = [1, 1]} : vector<2x128xf32> to vector<2x32xf32>
    %79 = vector.extract_strided_slice %76 {offsets = [0, 64], sizes = [2, 32], strides = [1, 1]} : vector<2x128xf32> to vector<2x32xf32>
    %80 = vector.extract_strided_slice %75 {offsets = [0, 96], sizes = [2, 32], strides = [1, 1]} : vector<2x128xf32> to vector<2x32xf32>
    %81 = arith.mulf %78, %65 : vector<2x32xf32>
    %82 = arith.mulf %77, %79 : vector<2x32xf32>
    %83 = arith.addf %81, %82 : vector<2x32xf32>
    %84 = math.tanh %83 : vector<2x32xf32>
    %85 = arith.mulf %80, %84 : vector<2x32xf32>
    %86 = vector.extract_strided_slice %11 {offsets = [8, 0], sizes = [2, 128], strides = [1, 1]} : vector<16x128xf32> to vector<2x128xf32>
    %cst_21 = arith.constant dense<0.000000e+00> : vector<2x128xf32>
    %87 = tpu.matmul %85, %7, %cst_21 {dimension_numbers = #tpu.dot_dimension_numbers<[1], [0], [0], [1], [0, 0, 1, 1], [], []>} : vector<2x32xf32>, vector<32x128xf32>, vector<2x128xf32> -> vector<2x128xf32>
    %88 = arith.addf %86, %87 : vector<2x128xf32>
    %89 = arith.negf %88 : vector<2x128xf32>
    %90 = math.exp %89 : vector<2x128xf32>
    %cst_22 = arith.constant 1.000000e+00 : f32
    %91 = vector.broadcast %cst_22 : f32 to vector<2x128xf32>
    %92 = arith.addf %91, %90 : vector<2x128xf32>
    %93 = arith.divf %91, %92 : vector<2x128xf32>
    %94 = math.tanh %88 : vector<2x128xf32>
    %95 = vector.extract_strided_slice %93 {offsets = [0, 0], sizes = [2, 32], strides = [1, 1]} : vector<2x128xf32> to vector<2x32xf32>
    %96 = vector.extract_strided_slice %93 {offsets = [0, 32], sizes = [2, 32], strides = [1, 1]} : vector<2x128xf32> to vector<2x32xf32>
    %97 = vector.extract_strided_slice %94 {offsets = [0, 64], sizes = [2, 32], strides = [1, 1]} : vector<2x128xf32> to vector<2x32xf32>
    %98 = vector.extract_strided_slice %93 {offsets = [0, 96], sizes = [2, 32], strides = [1, 1]} : vector<2x128xf32> to vector<2x32xf32>
    %99 = arith.mulf %96, %83 : vector<2x32xf32>
    %100 = arith.mulf %95, %97 : vector<2x32xf32>
    %101 = arith.addf %99, %100 : vector<2x32xf32>
    %102 = math.tanh %101 : vector<2x32xf32>
    %103 = arith.mulf %98, %102 : vector<2x32xf32>
    %104 = vector.extract_strided_slice %11 {offsets = [10, 0], sizes = [2, 128], strides = [1, 1]} : vector<16x128xf32> to vector<2x128xf32>
    %cst_23 = arith.constant dense<0.000000e+00> : vector<2x128xf32>
    %105 = tpu.matmul %103, %7, %cst_23 {dimension_numbers = #tpu.dot_dimension_numbers<[1], [0], [0], [1], [0, 0, 1, 1], [], []>} : vector<2x32xf32>, vector<32x128xf32>, vector<2x128xf32> -> vector<2x128xf32>
    %106 = arith.addf %104, %105 : vector<2x128xf32>
    %107 = arith.negf %106 : vector<2x128xf32>
    %108 = math.exp %107 : vector<2x128xf32>
    %cst_24 = arith.constant 1.000000e+00 : f32
    %109 = vector.broadcast %cst_24 : f32 to vector<2x128xf32>
    %110 = arith.addf %109, %108 : vector<2x128xf32>
    %111 = arith.divf %109, %110 : vector<2x128xf32>
    %112 = math.tanh %106 : vector<2x128xf32>
    %113 = vector.extract_strided_slice %111 {offsets = [0, 0], sizes = [2, 32], strides = [1, 1]} : vector<2x128xf32> to vector<2x32xf32>
    %114 = vector.extract_strided_slice %111 {offsets = [0, 32], sizes = [2, 32], strides = [1, 1]} : vector<2x128xf32> to vector<2x32xf32>
    %115 = vector.extract_strided_slice %112 {offsets = [0, 64], sizes = [2, 32], strides = [1, 1]} : vector<2x128xf32> to vector<2x32xf32>
    %116 = vector.extract_strided_slice %111 {offsets = [0, 96], sizes = [2, 32], strides = [1, 1]} : vector<2x128xf32> to vector<2x32xf32>
    %117 = arith.mulf %114, %101 : vector<2x32xf32>
    %118 = arith.mulf %113, %115 : vector<2x32xf32>
    %119 = arith.addf %117, %118 : vector<2x32xf32>
    %120 = math.tanh %119 : vector<2x32xf32>
    %121 = arith.mulf %116, %120 : vector<2x32xf32>
    %122 = vector.extract_strided_slice %11 {offsets = [12, 0], sizes = [2, 128], strides = [1, 1]} : vector<16x128xf32> to vector<2x128xf32>
    %cst_25 = arith.constant dense<0.000000e+00> : vector<2x128xf32>
    %123 = tpu.matmul %121, %7, %cst_25 {dimension_numbers = #tpu.dot_dimension_numbers<[1], [0], [0], [1], [0, 0, 1, 1], [], []>} : vector<2x32xf32>, vector<32x128xf32>, vector<2x128xf32> -> vector<2x128xf32>
    %124 = arith.addf %122, %123 : vector<2x128xf32>
    %125 = arith.negf %124 : vector<2x128xf32>
    %126 = math.exp %125 : vector<2x128xf32>
    %cst_26 = arith.constant 1.000000e+00 : f32
    %127 = vector.broadcast %cst_26 : f32 to vector<2x128xf32>
    %128 = arith.addf %127, %126 : vector<2x128xf32>
    %129 = arith.divf %127, %128 : vector<2x128xf32>
    %130 = math.tanh %124 : vector<2x128xf32>
    %131 = vector.extract_strided_slice %129 {offsets = [0, 0], sizes = [2, 32], strides = [1, 1]} : vector<2x128xf32> to vector<2x32xf32>
    %132 = vector.extract_strided_slice %129 {offsets = [0, 32], sizes = [2, 32], strides = [1, 1]} : vector<2x128xf32> to vector<2x32xf32>
    %133 = vector.extract_strided_slice %130 {offsets = [0, 64], sizes = [2, 32], strides = [1, 1]} : vector<2x128xf32> to vector<2x32xf32>
    %134 = vector.extract_strided_slice %129 {offsets = [0, 96], sizes = [2, 32], strides = [1, 1]} : vector<2x128xf32> to vector<2x32xf32>
    %135 = arith.mulf %132, %119 : vector<2x32xf32>
    %136 = arith.mulf %131, %133 : vector<2x32xf32>
    %137 = arith.addf %135, %136 : vector<2x32xf32>
    %138 = math.tanh %137 : vector<2x32xf32>
    %139 = arith.mulf %134, %138 : vector<2x32xf32>
    %140 = vector.extract_strided_slice %11 {offsets = [14, 0], sizes = [2, 128], strides = [1, 1]} : vector<16x128xf32> to vector<2x128xf32>
    %cst_27 = arith.constant dense<0.000000e+00> : vector<2x128xf32>
    %141 = tpu.matmul %139, %7, %cst_27 {dimension_numbers = #tpu.dot_dimension_numbers<[1], [0], [0], [1], [0, 0, 1, 1], [], []>} : vector<2x32xf32>, vector<32x128xf32>, vector<2x128xf32> -> vector<2x128xf32>
    %142 = arith.addf %140, %141 : vector<2x128xf32>
    %143 = arith.negf %142 : vector<2x128xf32>
    %144 = math.exp %143 : vector<2x128xf32>
    %cst_28 = arith.constant 1.000000e+00 : f32
    %145 = vector.broadcast %cst_28 : f32 to vector<2x128xf32>
    %146 = arith.addf %145, %144 : vector<2x128xf32>
    %147 = arith.divf %145, %146 : vector<2x128xf32>
    %148 = math.tanh %142 : vector<2x128xf32>
    %149 = vector.extract_strided_slice %147 {offsets = [0, 0], sizes = [2, 32], strides = [1, 1]} : vector<2x128xf32> to vector<2x32xf32>
    %150 = vector.extract_strided_slice %147 {offsets = [0, 32], sizes = [2, 32], strides = [1, 1]} : vector<2x128xf32> to vector<2x32xf32>
    %151 = vector.extract_strided_slice %148 {offsets = [0, 64], sizes = [2, 32], strides = [1, 1]} : vector<2x128xf32> to vector<2x32xf32>
    %152 = vector.extract_strided_slice %147 {offsets = [0, 96], sizes = [2, 32], strides = [1, 1]} : vector<2x128xf32> to vector<2x32xf32>
    %153 = arith.mulf %150, %137 : vector<2x32xf32>
    %154 = arith.mulf %149, %151 : vector<2x32xf32>
    %155 = arith.addf %153, %154 : vector<2x32xf32>
    %156 = math.tanh %155 : vector<2x32xf32>
    %157 = arith.mulf %152, %156 : vector<2x32xf32>
    %158 = tpu.concatenate %31, %49, %67, %85, %103, %121, %139, %157 in 0 : vector<2x32xf32>, vector<2x32xf32>, vector<2x32xf32>, vector<2x32xf32>, vector<2x32xf32>, vector<2x32xf32>, vector<2x32xf32>, vector<2x32xf32> -> vector<16x32xf32>
    %c0_29 = arith.constant 0 : index
    %c0_30 = arith.constant 0 : index
    %c0_31 = arith.constant 0 : index
    %159 = vector.load %arg5[%c0_29, %c0_30, %c0_31] : memref<4x32x128xf32, #tpu.memory_space<vmem>>, vector<1x32x128xf32>
    %160 = vector.shape_cast %159 : vector<1x32x128xf32> to vector<32x128xf32>
    %c0_32 = arith.constant 0 : index
    %c0_33 = arith.constant 0 : index
    %c0_34 = arith.constant 0 : index
    %161 = vector.load %arg6[%c0_32, %c0_33, %c0_34] : memref<4x32x128xf32, #tpu.memory_space<vmem>>, vector<1x32x128xf32>
    %162 = vector.shape_cast %161 : vector<1x32x128xf32> to vector<32x128xf32>
    %c0_35 = arith.constant 0 : index
    %c0_36 = arith.constant 0 : index
    %c0_37 = arith.constant 0 : index
    %163 = vector.load %arg7[%c0_35, %c0_36, %c0_37] : memref<4x1x128xf32, #tpu.memory_space<vmem>>, vector<1x1x128xf32>
    %164 = vector.shape_cast %163 : vector<1x1x128xf32> to vector<1x128xf32>
    %cst_38 = arith.constant dense<0.000000e+00> : vector<16x128xf32>
    %165 = tpu.matmul %158, %160, %cst_38 {dimension_numbers = #tpu.dot_dimension_numbers<[1], [0], [0], [1], [0, 0, 1, 1], [], []>} : vector<16x32xf32>, vector<32x128xf32>, vector<16x128xf32> -> vector<16x128xf32>
    %166 = vector.broadcast %164 : vector<1x128xf32> to vector<16x128xf32>
    %167 = arith.addf %165, %166 : vector<16x128xf32>
    %cst_39 = arith.constant 0.000000e+00 : f32
    %168 = vector.broadcast %cst_39 : f32 to vector<2x32xf32>
    %cst_40 = arith.constant 0.000000e+00 : f32
    %169 = vector.broadcast %cst_40 : f32 to vector<2x32xf32>
    %170 = vector.extract_strided_slice %167 {offsets = [0, 0], sizes = [2, 128], strides = [1, 1]} : vector<16x128xf32> to vector<2x128xf32>
    %cst_41 = arith.constant dense<0.000000e+00> : vector<2x128xf32>
    %171 = tpu.matmul %168, %162, %cst_41 {dimension_numbers = #tpu.dot_dimension_numbers<[1], [0], [0], [1], [0, 0, 1, 1], [], []>} : vector<2x32xf32>, vector<32x128xf32>, vector<2x128xf32> -> vector<2x128xf32>
    %172 = arith.addf %170, %171 : vector<2x128xf32>
    %173 = arith.negf %172 : vector<2x128xf32>
    %174 = math.exp %173 : vector<2x128xf32>
    %cst_42 = arith.constant 1.000000e+00 : f32
    %175 = vector.broadcast %cst_42 : f32 to vector<2x128xf32>
    %176 = arith.addf %175, %174 : vector<2x128xf32>
    %177 = arith.divf %175, %176 : vector<2x128xf32>
    %178 = math.tanh %172 : vector<2x128xf32>
    %179 = vector.extract_strided_slice %177 {offsets = [0, 0], sizes = [2, 32], strides = [1, 1]} : vector<2x128xf32> to vector<2x32xf32>
    %180 = vector.extract_strided_slice %177 {offsets = [0, 32], sizes = [2, 32], strides = [1, 1]} : vector<2x128xf32> to vector<2x32xf32>
    %181 = vector.extract_strided_slice %178 {offsets = [0, 64], sizes = [2, 32], strides = [1, 1]} : vector<2x128xf32> to vector<2x32xf32>
    %182 = vector.extract_strided_slice %177 {offsets = [0, 96], sizes = [2, 32], strides = [1, 1]} : vector<2x128xf32> to vector<2x32xf32>
    %183 = arith.mulf %180, %169 : vector<2x32xf32>
    %184 = arith.mulf %179, %181 : vector<2x32xf32>
    %185 = arith.addf %183, %184 : vector<2x32xf32>
    %186 = math.tanh %185 : vector<2x32xf32>
    %187 = arith.mulf %182, %186 : vector<2x32xf32>
    %188 = vector.extract_strided_slice %167 {offsets = [2, 0], sizes = [2, 128], strides = [1, 1]} : vector<16x128xf32> to vector<2x128xf32>
    %cst_43 = arith.constant dense<0.000000e+00> : vector<2x128xf32>
    %189 = tpu.matmul %187, %162, %cst_43 {dimension_numbers = #tpu.dot_dimension_numbers<[1], [0], [0], [1], [0, 0, 1, 1], [], []>} : vector<2x32xf32>, vector<32x128xf32>, vector<2x128xf32> -> vector<2x128xf32>
    %190 = arith.addf %188, %189 : vector<2x128xf32>
    %191 = arith.negf %190 : vector<2x128xf32>
    %192 = math.exp %191 : vector<2x128xf32>
    %cst_44 = arith.constant 1.000000e+00 : f32
    %193 = vector.broadcast %cst_44 : f32 to vector<2x128xf32>
    %194 = arith.addf %193, %192 : vector<2x128xf32>
    %195 = arith.divf %193, %194 : vector<2x128xf32>
    %196 = math.tanh %190 : vector<2x128xf32>
    %197 = vector.extract_strided_slice %195 {offsets = [0, 0], sizes = [2, 32], strides = [1, 1]} : vector<2x128xf32> to vector<2x32xf32>
    %198 = vector.extract_strided_slice %195 {offsets = [0, 32], sizes = [2, 32], strides = [1, 1]} : vector<2x128xf32> to vector<2x32xf32>
    %199 = vector.extract_strided_slice %196 {offsets = [0, 64], sizes = [2, 32], strides = [1, 1]} : vector<2x128xf32> to vector<2x32xf32>
    %200 = vector.extract_strided_slice %195 {offsets = [0, 96], sizes = [2, 32], strides = [1, 1]} : vector<2x128xf32> to vector<2x32xf32>
    %201 = arith.mulf %198, %185 : vector<2x32xf32>
    %202 = arith.mulf %197, %199 : vector<2x32xf32>
    %203 = arith.addf %201, %202 : vector<2x32xf32>
    %204 = math.tanh %203 : vector<2x32xf32>
    %205 = arith.mulf %200, %204 : vector<2x32xf32>
    %206 = vector.extract_strided_slice %167 {offsets = [4, 0], sizes = [2, 128], strides = [1, 1]} : vector<16x128xf32> to vector<2x128xf32>
    %cst_45 = arith.constant dense<0.000000e+00> : vector<2x128xf32>
    %207 = tpu.matmul %205, %162, %cst_45 {dimension_numbers = #tpu.dot_dimension_numbers<[1], [0], [0], [1], [0, 0, 1, 1], [], []>} : vector<2x32xf32>, vector<32x128xf32>, vector<2x128xf32> -> vector<2x128xf32>
    %208 = arith.addf %206, %207 : vector<2x128xf32>
    %209 = arith.negf %208 : vector<2x128xf32>
    %210 = math.exp %209 : vector<2x128xf32>
    %cst_46 = arith.constant 1.000000e+00 : f32
    %211 = vector.broadcast %cst_46 : f32 to vector<2x128xf32>
    %212 = arith.addf %211, %210 : vector<2x128xf32>
    %213 = arith.divf %211, %212 : vector<2x128xf32>
    %214 = math.tanh %208 : vector<2x128xf32>
    %215 = vector.extract_strided_slice %213 {offsets = [0, 0], sizes = [2, 32], strides = [1, 1]} : vector<2x128xf32> to vector<2x32xf32>
    %216 = vector.extract_strided_slice %213 {offsets = [0, 32], sizes = [2, 32], strides = [1, 1]} : vector<2x128xf32> to vector<2x32xf32>
    %217 = vector.extract_strided_slice %214 {offsets = [0, 64], sizes = [2, 32], strides = [1, 1]} : vector<2x128xf32> to vector<2x32xf32>
    %218 = vector.extract_strided_slice %213 {offsets = [0, 96], sizes = [2, 32], strides = [1, 1]} : vector<2x128xf32> to vector<2x32xf32>
    %219 = arith.mulf %216, %203 : vector<2x32xf32>
    %220 = arith.mulf %215, %217 : vector<2x32xf32>
    %221 = arith.addf %219, %220 : vector<2x32xf32>
    %222 = math.tanh %221 : vector<2x32xf32>
    %223 = arith.mulf %218, %222 : vector<2x32xf32>
    %224 = vector.extract_strided_slice %167 {offsets = [6, 0], sizes = [2, 128], strides = [1, 1]} : vector<16x128xf32> to vector<2x128xf32>
    %cst_47 = arith.constant dense<0.000000e+00> : vector<2x128xf32>
    %225 = tpu.matmul %223, %162, %cst_47 {dimension_numbers = #tpu.dot_dimension_numbers<[1], [0], [0], [1], [0, 0, 1, 1], [], []>} : vector<2x32xf32>, vector<32x128xf32>, vector<2x128xf32> -> vector<2x128xf32>
    %226 = arith.addf %224, %225 : vector<2x128xf32>
    %227 = arith.negf %226 : vector<2x128xf32>
    %228 = math.exp %227 : vector<2x128xf32>
    %cst_48 = arith.constant 1.000000e+00 : f32
    %229 = vector.broadcast %cst_48 : f32 to vector<2x128xf32>
    %230 = arith.addf %229, %228 : vector<2x128xf32>
    %231 = arith.divf %229, %230 : vector<2x128xf32>
    %232 = math.tanh %226 : vector<2x128xf32>
    %233 = vector.extract_strided_slice %231 {offsets = [0, 0], sizes = [2, 32], strides = [1, 1]} : vector<2x128xf32> to vector<2x32xf32>
    %234 = vector.extract_strided_slice %231 {offsets = [0, 32], sizes = [2, 32], strides = [1, 1]} : vector<2x128xf32> to vector<2x32xf32>
    %235 = vector.extract_strided_slice %232 {offsets = [0, 64], sizes = [2, 32], strides = [1, 1]} : vector<2x128xf32> to vector<2x32xf32>
    %236 = vector.extract_strided_slice %231 {offsets = [0, 96], sizes = [2, 32], strides = [1, 1]} : vector<2x128xf32> to vector<2x32xf32>
    %237 = arith.mulf %234, %221 : vector<2x32xf32>
    %238 = arith.mulf %233, %235 : vector<2x32xf32>
    %239 = arith.addf %237, %238 : vector<2x32xf32>
    %240 = math.tanh %239 : vector<2x32xf32>
    %241 = arith.mulf %236, %240 : vector<2x32xf32>
    %242 = vector.extract_strided_slice %167 {offsets = [8, 0], sizes = [2, 128], strides = [1, 1]} : vector<16x128xf32> to vector<2x128xf32>
    %cst_49 = arith.constant dense<0.000000e+00> : vector<2x128xf32>
    %243 = tpu.matmul %241, %162, %cst_49 {dimension_numbers = #tpu.dot_dimension_numbers<[1], [0], [0], [1], [0, 0, 1, 1], [], []>} : vector<2x32xf32>, vector<32x128xf32>, vector<2x128xf32> -> vector<2x128xf32>
    %244 = arith.addf %242, %243 : vector<2x128xf32>
    %245 = arith.negf %244 : vector<2x128xf32>
    %246 = math.exp %245 : vector<2x128xf32>
    %cst_50 = arith.constant 1.000000e+00 : f32
    %247 = vector.broadcast %cst_50 : f32 to vector<2x128xf32>
    %248 = arith.addf %247, %246 : vector<2x128xf32>
    %249 = arith.divf %247, %248 : vector<2x128xf32>
    %250 = math.tanh %244 : vector<2x128xf32>
    %251 = vector.extract_strided_slice %249 {offsets = [0, 0], sizes = [2, 32], strides = [1, 1]} : vector<2x128xf32> to vector<2x32xf32>
    %252 = vector.extract_strided_slice %249 {offsets = [0, 32], sizes = [2, 32], strides = [1, 1]} : vector<2x128xf32> to vector<2x32xf32>
    %253 = vector.extract_strided_slice %250 {offsets = [0, 64], sizes = [2, 32], strides = [1, 1]} : vector<2x128xf32> to vector<2x32xf32>
    %254 = vector.extract_strided_slice %249 {offsets = [0, 96], sizes = [2, 32], strides = [1, 1]} : vector<2x128xf32> to vector<2x32xf32>
    %255 = arith.mulf %252, %239 : vector<2x32xf32>
    %256 = arith.mulf %251, %253 : vector<2x32xf32>
    %257 = arith.addf %255, %256 : vector<2x32xf32>
    %258 = math.tanh %257 : vector<2x32xf32>
    %259 = arith.mulf %254, %258 : vector<2x32xf32>
    %260 = vector.extract_strided_slice %167 {offsets = [10, 0], sizes = [2, 128], strides = [1, 1]} : vector<16x128xf32> to vector<2x128xf32>
    %cst_51 = arith.constant dense<0.000000e+00> : vector<2x128xf32>
    %261 = tpu.matmul %259, %162, %cst_51 {dimension_numbers = #tpu.dot_dimension_numbers<[1], [0], [0], [1], [0, 0, 1, 1], [], []>} : vector<2x32xf32>, vector<32x128xf32>, vector<2x128xf32> -> vector<2x128xf32>
    %262 = arith.addf %260, %261 : vector<2x128xf32>
    %263 = arith.negf %262 : vector<2x128xf32>
    %264 = math.exp %263 : vector<2x128xf32>
    %cst_52 = arith.constant 1.000000e+00 : f32
    %265 = vector.broadcast %cst_52 : f32 to vector<2x128xf32>
    %266 = arith.addf %265, %264 : vector<2x128xf32>
    %267 = arith.divf %265, %266 : vector<2x128xf32>
    %268 = math.tanh %262 : vector<2x128xf32>
    %269 = vector.extract_strided_slice %267 {offsets = [0, 0], sizes = [2, 32], strides = [1, 1]} : vector<2x128xf32> to vector<2x32xf32>
    %270 = vector.extract_strided_slice %267 {offsets = [0, 32], sizes = [2, 32], strides = [1, 1]} : vector<2x128xf32> to vector<2x32xf32>
    %271 = vector.extract_strided_slice %268 {offsets = [0, 64], sizes = [2, 32], strides = [1, 1]} : vector<2x128xf32> to vector<2x32xf32>
    %272 = vector.extract_strided_slice %267 {offsets = [0, 96], sizes = [2, 32], strides = [1, 1]} : vector<2x128xf32> to vector<2x32xf32>
    %273 = arith.mulf %270, %257 : vector<2x32xf32>
    %274 = arith.mulf %269, %271 : vector<2x32xf32>
    %275 = arith.addf %273, %274 : vector<2x32xf32>
    %276 = math.tanh %275 : vector<2x32xf32>
    %277 = arith.mulf %272, %276 : vector<2x32xf32>
    %278 = vector.extract_strided_slice %167 {offsets = [12, 0], sizes = [2, 128], strides = [1, 1]} : vector<16x128xf32> to vector<2x128xf32>
    %cst_53 = arith.constant dense<0.000000e+00> : vector<2x128xf32>
    %279 = tpu.matmul %277, %162, %cst_53 {dimension_numbers = #tpu.dot_dimension_numbers<[1], [0], [0], [1], [0, 0, 1, 1], [], []>} : vector<2x32xf32>, vector<32x128xf32>, vector<2x128xf32> -> vector<2x128xf32>
    %280 = arith.addf %278, %279 : vector<2x128xf32>
    %281 = arith.negf %280 : vector<2x128xf32>
    %282 = math.exp %281 : vector<2x128xf32>
    %cst_54 = arith.constant 1.000000e+00 : f32
    %283 = vector.broadcast %cst_54 : f32 to vector<2x128xf32>
    %284 = arith.addf %283, %282 : vector<2x128xf32>
    %285 = arith.divf %283, %284 : vector<2x128xf32>
    %286 = math.tanh %280 : vector<2x128xf32>
    %287 = vector.extract_strided_slice %285 {offsets = [0, 0], sizes = [2, 32], strides = [1, 1]} : vector<2x128xf32> to vector<2x32xf32>
    %288 = vector.extract_strided_slice %285 {offsets = [0, 32], sizes = [2, 32], strides = [1, 1]} : vector<2x128xf32> to vector<2x32xf32>
    %289 = vector.extract_strided_slice %286 {offsets = [0, 64], sizes = [2, 32], strides = [1, 1]} : vector<2x128xf32> to vector<2x32xf32>
    %290 = vector.extract_strided_slice %285 {offsets = [0, 96], sizes = [2, 32], strides = [1, 1]} : vector<2x128xf32> to vector<2x32xf32>
    %291 = arith.mulf %288, %275 : vector<2x32xf32>
    %292 = arith.mulf %287, %289 : vector<2x32xf32>
    %293 = arith.addf %291, %292 : vector<2x32xf32>
    %294 = math.tanh %293 : vector<2x32xf32>
    %295 = arith.mulf %290, %294 : vector<2x32xf32>
    %296 = vector.extract_strided_slice %167 {offsets = [14, 0], sizes = [2, 128], strides = [1, 1]} : vector<16x128xf32> to vector<2x128xf32>
    %cst_55 = arith.constant dense<0.000000e+00> : vector<2x128xf32>
    %297 = tpu.matmul %295, %162, %cst_55 {dimension_numbers = #tpu.dot_dimension_numbers<[1], [0], [0], [1], [0, 0, 1, 1], [], []>} : vector<2x32xf32>, vector<32x128xf32>, vector<2x128xf32> -> vector<2x128xf32>
    %298 = arith.addf %296, %297 : vector<2x128xf32>
    %299 = arith.negf %298 : vector<2x128xf32>
    %300 = math.exp %299 : vector<2x128xf32>
    %cst_56 = arith.constant 1.000000e+00 : f32
    %301 = vector.broadcast %cst_56 : f32 to vector<2x128xf32>
    %302 = arith.addf %301, %300 : vector<2x128xf32>
    %303 = arith.divf %301, %302 : vector<2x128xf32>
    %304 = math.tanh %298 : vector<2x128xf32>
    %305 = vector.extract_strided_slice %303 {offsets = [0, 0], sizes = [2, 32], strides = [1, 1]} : vector<2x128xf32> to vector<2x32xf32>
    %306 = vector.extract_strided_slice %303 {offsets = [0, 32], sizes = [2, 32], strides = [1, 1]} : vector<2x128xf32> to vector<2x32xf32>
    %307 = vector.extract_strided_slice %304 {offsets = [0, 64], sizes = [2, 32], strides = [1, 1]} : vector<2x128xf32> to vector<2x32xf32>
    %308 = vector.extract_strided_slice %303 {offsets = [0, 96], sizes = [2, 32], strides = [1, 1]} : vector<2x128xf32> to vector<2x32xf32>
    %309 = arith.mulf %306, %293 : vector<2x32xf32>
    %310 = arith.mulf %305, %307 : vector<2x32xf32>
    %311 = arith.addf %309, %310 : vector<2x32xf32>
    %312 = math.tanh %311 : vector<2x32xf32>
    %313 = arith.mulf %308, %312 : vector<2x32xf32>
    %314 = tpu.concatenate %187, %205, %223, %241, %259, %277, %295, %313 in 0 : vector<2x32xf32>, vector<2x32xf32>, vector<2x32xf32>, vector<2x32xf32>, vector<2x32xf32>, vector<2x32xf32>, vector<2x32xf32>, vector<2x32xf32> -> vector<16x32xf32>
    %c1 = arith.constant 1 : index
    %c0_57 = arith.constant 0 : index
    %c0_58 = arith.constant 0 : index
    %315 = vector.load %arg5[%c1, %c0_57, %c0_58] : memref<4x32x128xf32, #tpu.memory_space<vmem>>, vector<1x32x128xf32>
    %316 = vector.shape_cast %315 : vector<1x32x128xf32> to vector<32x128xf32>
    %c1_59 = arith.constant 1 : index
    %c0_60 = arith.constant 0 : index
    %c0_61 = arith.constant 0 : index
    %317 = vector.load %arg6[%c1_59, %c0_60, %c0_61] : memref<4x32x128xf32, #tpu.memory_space<vmem>>, vector<1x32x128xf32>
    %318 = vector.shape_cast %317 : vector<1x32x128xf32> to vector<32x128xf32>
    %c1_62 = arith.constant 1 : index
    %c0_63 = arith.constant 0 : index
    %c0_64 = arith.constant 0 : index
    %319 = vector.load %arg7[%c1_62, %c0_63, %c0_64] : memref<4x1x128xf32, #tpu.memory_space<vmem>>, vector<1x1x128xf32>
    %320 = vector.shape_cast %319 : vector<1x1x128xf32> to vector<1x128xf32>
    %cst_65 = arith.constant dense<0.000000e+00> : vector<16x128xf32>
    %321 = tpu.matmul %314, %316, %cst_65 {dimension_numbers = #tpu.dot_dimension_numbers<[1], [0], [0], [1], [0, 0, 1, 1], [], []>} : vector<16x32xf32>, vector<32x128xf32>, vector<16x128xf32> -> vector<16x128xf32>
    %322 = vector.broadcast %320 : vector<1x128xf32> to vector<16x128xf32>
    %323 = arith.addf %321, %322 : vector<16x128xf32>
    %cst_66 = arith.constant 0.000000e+00 : f32
    %324 = vector.broadcast %cst_66 : f32 to vector<2x32xf32>
    %cst_67 = arith.constant 0.000000e+00 : f32
    %325 = vector.broadcast %cst_67 : f32 to vector<2x32xf32>
    %326 = vector.extract_strided_slice %323 {offsets = [0, 0], sizes = [2, 128], strides = [1, 1]} : vector<16x128xf32> to vector<2x128xf32>
    %cst_68 = arith.constant dense<0.000000e+00> : vector<2x128xf32>
    %327 = tpu.matmul %324, %318, %cst_68 {dimension_numbers = #tpu.dot_dimension_numbers<[1], [0], [0], [1], [0, 0, 1, 1], [], []>} : vector<2x32xf32>, vector<32x128xf32>, vector<2x128xf32> -> vector<2x128xf32>
    %328 = arith.addf %326, %327 : vector<2x128xf32>
    %329 = arith.negf %328 : vector<2x128xf32>
    %330 = math.exp %329 : vector<2x128xf32>
    %cst_69 = arith.constant 1.000000e+00 : f32
    %331 = vector.broadcast %cst_69 : f32 to vector<2x128xf32>
    %332 = arith.addf %331, %330 : vector<2x128xf32>
    %333 = arith.divf %331, %332 : vector<2x128xf32>
    %334 = math.tanh %328 : vector<2x128xf32>
    %335 = vector.extract_strided_slice %333 {offsets = [0, 0], sizes = [2, 32], strides = [1, 1]} : vector<2x128xf32> to vector<2x32xf32>
    %336 = vector.extract_strided_slice %333 {offsets = [0, 32], sizes = [2, 32], strides = [1, 1]} : vector<2x128xf32> to vector<2x32xf32>
    %337 = vector.extract_strided_slice %334 {offsets = [0, 64], sizes = [2, 32], strides = [1, 1]} : vector<2x128xf32> to vector<2x32xf32>
    %338 = vector.extract_strided_slice %333 {offsets = [0, 96], sizes = [2, 32], strides = [1, 1]} : vector<2x128xf32> to vector<2x32xf32>
    %339 = arith.mulf %336, %325 : vector<2x32xf32>
    %340 = arith.mulf %335, %337 : vector<2x32xf32>
    %341 = arith.addf %339, %340 : vector<2x32xf32>
    %342 = math.tanh %341 : vector<2x32xf32>
    %343 = arith.mulf %338, %342 : vector<2x32xf32>
    %344 = vector.extract_strided_slice %323 {offsets = [2, 0], sizes = [2, 128], strides = [1, 1]} : vector<16x128xf32> to vector<2x128xf32>
    %cst_70 = arith.constant dense<0.000000e+00> : vector<2x128xf32>
    %345 = tpu.matmul %343, %318, %cst_70 {dimension_numbers = #tpu.dot_dimension_numbers<[1], [0], [0], [1], [0, 0, 1, 1], [], []>} : vector<2x32xf32>, vector<32x128xf32>, vector<2x128xf32> -> vector<2x128xf32>
    %346 = arith.addf %344, %345 : vector<2x128xf32>
    %347 = arith.negf %346 : vector<2x128xf32>
    %348 = math.exp %347 : vector<2x128xf32>
    %cst_71 = arith.constant 1.000000e+00 : f32
    %349 = vector.broadcast %cst_71 : f32 to vector<2x128xf32>
    %350 = arith.addf %349, %348 : vector<2x128xf32>
    %351 = arith.divf %349, %350 : vector<2x128xf32>
    %352 = math.tanh %346 : vector<2x128xf32>
    %353 = vector.extract_strided_slice %351 {offsets = [0, 0], sizes = [2, 32], strides = [1, 1]} : vector<2x128xf32> to vector<2x32xf32>
    %354 = vector.extract_strided_slice %351 {offsets = [0, 32], sizes = [2, 32], strides = [1, 1]} : vector<2x128xf32> to vector<2x32xf32>
    %355 = vector.extract_strided_slice %352 {offsets = [0, 64], sizes = [2, 32], strides = [1, 1]} : vector<2x128xf32> to vector<2x32xf32>
    %356 = vector.extract_strided_slice %351 {offsets = [0, 96], sizes = [2, 32], strides = [1, 1]} : vector<2x128xf32> to vector<2x32xf32>
    %357 = arith.mulf %354, %341 : vector<2x32xf32>
    %358 = arith.mulf %353, %355 : vector<2x32xf32>
    %359 = arith.addf %357, %358 : vector<2x32xf32>
    %360 = math.tanh %359 : vector<2x32xf32>
    %361 = arith.mulf %356, %360 : vector<2x32xf32>
    %362 = vector.extract_strided_slice %323 {offsets = [4, 0], sizes = [2, 128], strides = [1, 1]} : vector<16x128xf32> to vector<2x128xf32>
    %cst_72 = arith.constant dense<0.000000e+00> : vector<2x128xf32>
    %363 = tpu.matmul %361, %318, %cst_72 {dimension_numbers = #tpu.dot_dimension_numbers<[1], [0], [0], [1], [0, 0, 1, 1], [], []>} : vector<2x32xf32>, vector<32x128xf32>, vector<2x128xf32> -> vector<2x128xf32>
    %364 = arith.addf %362, %363 : vector<2x128xf32>
    %365 = arith.negf %364 : vector<2x128xf32>
    %366 = math.exp %365 : vector<2x128xf32>
    %cst_73 = arith.constant 1.000000e+00 : f32
    %367 = vector.broadcast %cst_73 : f32 to vector<2x128xf32>
    %368 = arith.addf %367, %366 : vector<2x128xf32>
    %369 = arith.divf %367, %368 : vector<2x128xf32>
    %370 = math.tanh %364 : vector<2x128xf32>
    %371 = vector.extract_strided_slice %369 {offsets = [0, 0], sizes = [2, 32], strides = [1, 1]} : vector<2x128xf32> to vector<2x32xf32>
    %372 = vector.extract_strided_slice %369 {offsets = [0, 32], sizes = [2, 32], strides = [1, 1]} : vector<2x128xf32> to vector<2x32xf32>
    %373 = vector.extract_strided_slice %370 {offsets = [0, 64], sizes = [2, 32], strides = [1, 1]} : vector<2x128xf32> to vector<2x32xf32>
    %374 = vector.extract_strided_slice %369 {offsets = [0, 96], sizes = [2, 32], strides = [1, 1]} : vector<2x128xf32> to vector<2x32xf32>
    %375 = arith.mulf %372, %359 : vector<2x32xf32>
    %376 = arith.mulf %371, %373 : vector<2x32xf32>
    %377 = arith.addf %375, %376 : vector<2x32xf32>
    %378 = math.tanh %377 : vector<2x32xf32>
    %379 = arith.mulf %374, %378 : vector<2x32xf32>
    %380 = vector.extract_strided_slice %323 {offsets = [6, 0], sizes = [2, 128], strides = [1, 1]} : vector<16x128xf32> to vector<2x128xf32>
    %cst_74 = arith.constant dense<0.000000e+00> : vector<2x128xf32>
    %381 = tpu.matmul %379, %318, %cst_74 {dimension_numbers = #tpu.dot_dimension_numbers<[1], [0], [0], [1], [0, 0, 1, 1], [], []>} : vector<2x32xf32>, vector<32x128xf32>, vector<2x128xf32> -> vector<2x128xf32>
    %382 = arith.addf %380, %381 : vector<2x128xf32>
    %383 = arith.negf %382 : vector<2x128xf32>
    %384 = math.exp %383 : vector<2x128xf32>
    %cst_75 = arith.constant 1.000000e+00 : f32
    %385 = vector.broadcast %cst_75 : f32 to vector<2x128xf32>
    %386 = arith.addf %385, %384 : vector<2x128xf32>
    %387 = arith.divf %385, %386 : vector<2x128xf32>
    %388 = math.tanh %382 : vector<2x128xf32>
    %389 = vector.extract_strided_slice %387 {offsets = [0, 0], sizes = [2, 32], strides = [1, 1]} : vector<2x128xf32> to vector<2x32xf32>
    %390 = vector.extract_strided_slice %387 {offsets = [0, 32], sizes = [2, 32], strides = [1, 1]} : vector<2x128xf32> to vector<2x32xf32>
    %391 = vector.extract_strided_slice %388 {offsets = [0, 64], sizes = [2, 32], strides = [1, 1]} : vector<2x128xf32> to vector<2x32xf32>
    %392 = vector.extract_strided_slice %387 {offsets = [0, 96], sizes = [2, 32], strides = [1, 1]} : vector<2x128xf32> to vector<2x32xf32>
    %393 = arith.mulf %390, %377 : vector<2x32xf32>
    %394 = arith.mulf %389, %391 : vector<2x32xf32>
    %395 = arith.addf %393, %394 : vector<2x32xf32>
    %396 = math.tanh %395 : vector<2x32xf32>
    %397 = arith.mulf %392, %396 : vector<2x32xf32>
    %398 = vector.extract_strided_slice %323 {offsets = [8, 0], sizes = [2, 128], strides = [1, 1]} : vector<16x128xf32> to vector<2x128xf32>
    %cst_76 = arith.constant dense<0.000000e+00> : vector<2x128xf32>
    %399 = tpu.matmul %397, %318, %cst_76 {dimension_numbers = #tpu.dot_dimension_numbers<[1], [0], [0], [1], [0, 0, 1, 1], [], []>} : vector<2x32xf32>, vector<32x128xf32>, vector<2x128xf32> -> vector<2x128xf32>
    %400 = arith.addf %398, %399 : vector<2x128xf32>
    %401 = arith.negf %400 : vector<2x128xf32>
    %402 = math.exp %401 : vector<2x128xf32>
    %cst_77 = arith.constant 1.000000e+00 : f32
    %403 = vector.broadcast %cst_77 : f32 to vector<2x128xf32>
    %404 = arith.addf %403, %402 : vector<2x128xf32>
    %405 = arith.divf %403, %404 : vector<2x128xf32>
    %406 = math.tanh %400 : vector<2x128xf32>
    %407 = vector.extract_strided_slice %405 {offsets = [0, 0], sizes = [2, 32], strides = [1, 1]} : vector<2x128xf32> to vector<2x32xf32>
    %408 = vector.extract_strided_slice %405 {offsets = [0, 32], sizes = [2, 32], strides = [1, 1]} : vector<2x128xf32> to vector<2x32xf32>
    %409 = vector.extract_strided_slice %406 {offsets = [0, 64], sizes = [2, 32], strides = [1, 1]} : vector<2x128xf32> to vector<2x32xf32>
    %410 = vector.extract_strided_slice %405 {offsets = [0, 96], sizes = [2, 32], strides = [1, 1]} : vector<2x128xf32> to vector<2x32xf32>
    %411 = arith.mulf %408, %395 : vector<2x32xf32>
    %412 = arith.mulf %407, %409 : vector<2x32xf32>
    %413 = arith.addf %411, %412 : vector<2x32xf32>
    %414 = math.tanh %413 : vector<2x32xf32>
    %415 = arith.mulf %410, %414 : vector<2x32xf32>
    %416 = vector.extract_strided_slice %323 {offsets = [10, 0], sizes = [2, 128], strides = [1, 1]} : vector<16x128xf32> to vector<2x128xf32>
    %cst_78 = arith.constant dense<0.000000e+00> : vector<2x128xf32>
    %417 = tpu.matmul %415, %318, %cst_78 {dimension_numbers = #tpu.dot_dimension_numbers<[1], [0], [0], [1], [0, 0, 1, 1], [], []>} : vector<2x32xf32>, vector<32x128xf32>, vector<2x128xf32> -> vector<2x128xf32>
    %418 = arith.addf %416, %417 : vector<2x128xf32>
    %419 = arith.negf %418 : vector<2x128xf32>
    %420 = math.exp %419 : vector<2x128xf32>
    %cst_79 = arith.constant 1.000000e+00 : f32
    %421 = vector.broadcast %cst_79 : f32 to vector<2x128xf32>
    %422 = arith.addf %421, %420 : vector<2x128xf32>
    %423 = arith.divf %421, %422 : vector<2x128xf32>
    %424 = math.tanh %418 : vector<2x128xf32>
    %425 = vector.extract_strided_slice %423 {offsets = [0, 0], sizes = [2, 32], strides = [1, 1]} : vector<2x128xf32> to vector<2x32xf32>
    %426 = vector.extract_strided_slice %423 {offsets = [0, 32], sizes = [2, 32], strides = [1, 1]} : vector<2x128xf32> to vector<2x32xf32>
    %427 = vector.extract_strided_slice %424 {offsets = [0, 64], sizes = [2, 32], strides = [1, 1]} : vector<2x128xf32> to vector<2x32xf32>
    %428 = vector.extract_strided_slice %423 {offsets = [0, 96], sizes = [2, 32], strides = [1, 1]} : vector<2x128xf32> to vector<2x32xf32>
    %429 = arith.mulf %426, %413 : vector<2x32xf32>
    %430 = arith.mulf %425, %427 : vector<2x32xf32>
    %431 = arith.addf %429, %430 : vector<2x32xf32>
    %432 = math.tanh %431 : vector<2x32xf32>
    %433 = arith.mulf %428, %432 : vector<2x32xf32>
    %434 = vector.extract_strided_slice %323 {offsets = [12, 0], sizes = [2, 128], strides = [1, 1]} : vector<16x128xf32> to vector<2x128xf32>
    %cst_80 = arith.constant dense<0.000000e+00> : vector<2x128xf32>
    %435 = tpu.matmul %433, %318, %cst_80 {dimension_numbers = #tpu.dot_dimension_numbers<[1], [0], [0], [1], [0, 0, 1, 1], [], []>} : vector<2x32xf32>, vector<32x128xf32>, vector<2x128xf32> -> vector<2x128xf32>
    %436 = arith.addf %434, %435 : vector<2x128xf32>
    %437 = arith.negf %436 : vector<2x128xf32>
    %438 = math.exp %437 : vector<2x128xf32>
    %cst_81 = arith.constant 1.000000e+00 : f32
    %439 = vector.broadcast %cst_81 : f32 to vector<2x128xf32>
    %440 = arith.addf %439, %438 : vector<2x128xf32>
    %441 = arith.divf %439, %440 : vector<2x128xf32>
    %442 = math.tanh %436 : vector<2x128xf32>
    %443 = vector.extract_strided_slice %441 {offsets = [0, 0], sizes = [2, 32], strides = [1, 1]} : vector<2x128xf32> to vector<2x32xf32>
    %444 = vector.extract_strided_slice %441 {offsets = [0, 32], sizes = [2, 32], strides = [1, 1]} : vector<2x128xf32> to vector<2x32xf32>
    %445 = vector.extract_strided_slice %442 {offsets = [0, 64], sizes = [2, 32], strides = [1, 1]} : vector<2x128xf32> to vector<2x32xf32>
    %446 = vector.extract_strided_slice %441 {offsets = [0, 96], sizes = [2, 32], strides = [1, 1]} : vector<2x128xf32> to vector<2x32xf32>
    %447 = arith.mulf %444, %431 : vector<2x32xf32>
    %448 = arith.mulf %443, %445 : vector<2x32xf32>
    %449 = arith.addf %447, %448 : vector<2x32xf32>
    %450 = math.tanh %449 : vector<2x32xf32>
    %451 = arith.mulf %446, %450 : vector<2x32xf32>
    %452 = vector.extract_strided_slice %323 {offsets = [14, 0], sizes = [2, 128], strides = [1, 1]} : vector<16x128xf32> to vector<2x128xf32>
    %cst_82 = arith.constant dense<0.000000e+00> : vector<2x128xf32>
    %453 = tpu.matmul %451, %318, %cst_82 {dimension_numbers = #tpu.dot_dimension_numbers<[1], [0], [0], [1], [0, 0, 1, 1], [], []>} : vector<2x32xf32>, vector<32x128xf32>, vector<2x128xf32> -> vector<2x128xf32>
    %454 = arith.addf %452, %453 : vector<2x128xf32>
    %455 = arith.negf %454 : vector<2x128xf32>
    %456 = math.exp %455 : vector<2x128xf32>
    %cst_83 = arith.constant 1.000000e+00 : f32
    %457 = vector.broadcast %cst_83 : f32 to vector<2x128xf32>
    %458 = arith.addf %457, %456 : vector<2x128xf32>
    %459 = arith.divf %457, %458 : vector<2x128xf32>
    %460 = math.tanh %454 : vector<2x128xf32>
    %461 = vector.extract_strided_slice %459 {offsets = [0, 0], sizes = [2, 32], strides = [1, 1]} : vector<2x128xf32> to vector<2x32xf32>
    %462 = vector.extract_strided_slice %459 {offsets = [0, 32], sizes = [2, 32], strides = [1, 1]} : vector<2x128xf32> to vector<2x32xf32>
    %463 = vector.extract_strided_slice %460 {offsets = [0, 64], sizes = [2, 32], strides = [1, 1]} : vector<2x128xf32> to vector<2x32xf32>
    %464 = vector.extract_strided_slice %459 {offsets = [0, 96], sizes = [2, 32], strides = [1, 1]} : vector<2x128xf32> to vector<2x32xf32>
    %465 = arith.mulf %462, %449 : vector<2x32xf32>
    %466 = arith.mulf %461, %463 : vector<2x32xf32>
    %467 = arith.addf %465, %466 : vector<2x32xf32>
    %468 = math.tanh %467 : vector<2x32xf32>
    %469 = arith.mulf %464, %468 : vector<2x32xf32>
    %470 = tpu.concatenate %343, %361, %379, %397, %415, %433, %451, %469 in 0 : vector<2x32xf32>, vector<2x32xf32>, vector<2x32xf32>, vector<2x32xf32>, vector<2x32xf32>, vector<2x32xf32>, vector<2x32xf32>, vector<2x32xf32> -> vector<16x32xf32>
    %c2 = arith.constant 2 : index
    %c0_84 = arith.constant 0 : index
    %c0_85 = arith.constant 0 : index
    %471 = vector.load %arg5[%c2, %c0_84, %c0_85] : memref<4x32x128xf32, #tpu.memory_space<vmem>>, vector<1x32x128xf32>
    %472 = vector.shape_cast %471 : vector<1x32x128xf32> to vector<32x128xf32>
    %c2_86 = arith.constant 2 : index
    %c0_87 = arith.constant 0 : index
    %c0_88 = arith.constant 0 : index
    %473 = vector.load %arg6[%c2_86, %c0_87, %c0_88] : memref<4x32x128xf32, #tpu.memory_space<vmem>>, vector<1x32x128xf32>
    %474 = vector.shape_cast %473 : vector<1x32x128xf32> to vector<32x128xf32>
    %c2_89 = arith.constant 2 : index
    %c0_90 = arith.constant 0 : index
    %c0_91 = arith.constant 0 : index
    %475 = vector.load %arg7[%c2_89, %c0_90, %c0_91] : memref<4x1x128xf32, #tpu.memory_space<vmem>>, vector<1x1x128xf32>
    %476 = vector.shape_cast %475 : vector<1x1x128xf32> to vector<1x128xf32>
    %cst_92 = arith.constant dense<0.000000e+00> : vector<16x128xf32>
    %477 = tpu.matmul %470, %472, %cst_92 {dimension_numbers = #tpu.dot_dimension_numbers<[1], [0], [0], [1], [0, 0, 1, 1], [], []>} : vector<16x32xf32>, vector<32x128xf32>, vector<16x128xf32> -> vector<16x128xf32>
    %478 = vector.broadcast %476 : vector<1x128xf32> to vector<16x128xf32>
    %479 = arith.addf %477, %478 : vector<16x128xf32>
    %cst_93 = arith.constant 0.000000e+00 : f32
    %480 = vector.broadcast %cst_93 : f32 to vector<2x32xf32>
    %cst_94 = arith.constant 0.000000e+00 : f32
    %481 = vector.broadcast %cst_94 : f32 to vector<2x32xf32>
    %482 = vector.extract_strided_slice %479 {offsets = [0, 0], sizes = [2, 128], strides = [1, 1]} : vector<16x128xf32> to vector<2x128xf32>
    %cst_95 = arith.constant dense<0.000000e+00> : vector<2x128xf32>
    %483 = tpu.matmul %480, %474, %cst_95 {dimension_numbers = #tpu.dot_dimension_numbers<[1], [0], [0], [1], [0, 0, 1, 1], [], []>} : vector<2x32xf32>, vector<32x128xf32>, vector<2x128xf32> -> vector<2x128xf32>
    %484 = arith.addf %482, %483 : vector<2x128xf32>
    %485 = arith.negf %484 : vector<2x128xf32>
    %486 = math.exp %485 : vector<2x128xf32>
    %cst_96 = arith.constant 1.000000e+00 : f32
    %487 = vector.broadcast %cst_96 : f32 to vector<2x128xf32>
    %488 = arith.addf %487, %486 : vector<2x128xf32>
    %489 = arith.divf %487, %488 : vector<2x128xf32>
    %490 = math.tanh %484 : vector<2x128xf32>
    %491 = vector.extract_strided_slice %489 {offsets = [0, 0], sizes = [2, 32], strides = [1, 1]} : vector<2x128xf32> to vector<2x32xf32>
    %492 = vector.extract_strided_slice %489 {offsets = [0, 32], sizes = [2, 32], strides = [1, 1]} : vector<2x128xf32> to vector<2x32xf32>
    %493 = vector.extract_strided_slice %490 {offsets = [0, 64], sizes = [2, 32], strides = [1, 1]} : vector<2x128xf32> to vector<2x32xf32>
    %494 = vector.extract_strided_slice %489 {offsets = [0, 96], sizes = [2, 32], strides = [1, 1]} : vector<2x128xf32> to vector<2x32xf32>
    %495 = arith.mulf %492, %481 : vector<2x32xf32>
    %496 = arith.mulf %491, %493 : vector<2x32xf32>
    %497 = arith.addf %495, %496 : vector<2x32xf32>
    %498 = math.tanh %497 : vector<2x32xf32>
    %499 = arith.mulf %494, %498 : vector<2x32xf32>
    %c0_i32 = arith.constant 0 : i32
    %500 = vector.broadcast %c0_i32 : i32 to vector<2x1xi32>
    %501 = arith.cmpi eq, %2, %500 : vector<2x1xi32>
    %502 = vector.shape_cast %501 : vector<2x1xi1> to vector<2x1xi1>
    %503 = vector.broadcast %502 : vector<2x1xi1> to vector<2x32xi1>
    %504 = arith.select %503, %499, %3 : vector<2x32xi1>, vector<2x32xf32>
    %505 = vector.extract_strided_slice %479 {offsets = [2, 0], sizes = [2, 128], strides = [1, 1]} : vector<16x128xf32> to vector<2x128xf32>
    %cst_97 = arith.constant dense<0.000000e+00> : vector<2x128xf32>
    %506 = tpu.matmul %499, %474, %cst_97 {dimension_numbers = #tpu.dot_dimension_numbers<[1], [0], [0], [1], [0, 0, 1, 1], [], []>} : vector<2x32xf32>, vector<32x128xf32>, vector<2x128xf32> -> vector<2x128xf32>
    %507 = arith.addf %505, %506 : vector<2x128xf32>
    %508 = arith.negf %507 : vector<2x128xf32>
    %509 = math.exp %508 : vector<2x128xf32>
    %cst_98 = arith.constant 1.000000e+00 : f32
    %510 = vector.broadcast %cst_98 : f32 to vector<2x128xf32>
    %511 = arith.addf %510, %509 : vector<2x128xf32>
    %512 = arith.divf %510, %511 : vector<2x128xf32>
    %513 = math.tanh %507 : vector<2x128xf32>
    %514 = vector.extract_strided_slice %512 {offsets = [0, 0], sizes = [2, 32], strides = [1, 1]} : vector<2x128xf32> to vector<2x32xf32>
    %515 = vector.extract_strided_slice %512 {offsets = [0, 32], sizes = [2, 32], strides = [1, 1]} : vector<2x128xf32> to vector<2x32xf32>
    %516 = vector.extract_strided_slice %513 {offsets = [0, 64], sizes = [2, 32], strides = [1, 1]} : vector<2x128xf32> to vector<2x32xf32>
    %517 = vector.extract_strided_slice %512 {offsets = [0, 96], sizes = [2, 32], strides = [1, 1]} : vector<2x128xf32> to vector<2x32xf32>
    %518 = arith.mulf %515, %497 : vector<2x32xf32>
    %519 = arith.mulf %514, %516 : vector<2x32xf32>
    %520 = arith.addf %518, %519 : vector<2x32xf32>
    %521 = math.tanh %520 : vector<2x32xf32>
    %522 = arith.mulf %517, %521 : vector<2x32xf32>
    %c1_i32_99 = arith.constant 1 : i32
    %523 = vector.broadcast %c1_i32_99 : i32 to vector<2x1xi32>
    %524 = arith.cmpi eq, %2, %523 : vector<2x1xi32>
    %525 = vector.shape_cast %524 : vector<2x1xi1> to vector<2x1xi1>
    %526 = vector.broadcast %525 : vector<2x1xi1> to vector<2x32xi1>
    %527 = arith.select %526, %522, %504 : vector<2x32xi1>, vector<2x32xf32>
    %528 = vector.extract_strided_slice %479 {offsets = [4, 0], sizes = [2, 128], strides = [1, 1]} : vector<16x128xf32> to vector<2x128xf32>
    %cst_100 = arith.constant dense<0.000000e+00> : vector<2x128xf32>
    %529 = tpu.matmul %522, %474, %cst_100 {dimension_numbers = #tpu.dot_dimension_numbers<[1], [0], [0], [1], [0, 0, 1, 1], [], []>} : vector<2x32xf32>, vector<32x128xf32>, vector<2x128xf32> -> vector<2x128xf32>
    %530 = arith.addf %528, %529 : vector<2x128xf32>
    %531 = arith.negf %530 : vector<2x128xf32>
    %532 = math.exp %531 : vector<2x128xf32>
    %cst_101 = arith.constant 1.000000e+00 : f32
    %533 = vector.broadcast %cst_101 : f32 to vector<2x128xf32>
    %534 = arith.addf %533, %532 : vector<2x128xf32>
    %535 = arith.divf %533, %534 : vector<2x128xf32>
    %536 = math.tanh %530 : vector<2x128xf32>
    %537 = vector.extract_strided_slice %535 {offsets = [0, 0], sizes = [2, 32], strides = [1, 1]} : vector<2x128xf32> to vector<2x32xf32>
    %538 = vector.extract_strided_slice %535 {offsets = [0, 32], sizes = [2, 32], strides = [1, 1]} : vector<2x128xf32> to vector<2x32xf32>
    %539 = vector.extract_strided_slice %536 {offsets = [0, 64], sizes = [2, 32], strides = [1, 1]} : vector<2x128xf32> to vector<2x32xf32>
    %540 = vector.extract_strided_slice %535 {offsets = [0, 96], sizes = [2, 32], strides = [1, 1]} : vector<2x128xf32> to vector<2x32xf32>
    %541 = arith.mulf %538, %520 : vector<2x32xf32>
    %542 = arith.mulf %537, %539 : vector<2x32xf32>
    %543 = arith.addf %541, %542 : vector<2x32xf32>
    %544 = math.tanh %543 : vector<2x32xf32>
    %545 = arith.mulf %540, %544 : vector<2x32xf32>
    %c2_i32 = arith.constant 2 : i32
    %546 = vector.broadcast %c2_i32 : i32 to vector<2x1xi32>
    %547 = arith.cmpi eq, %2, %546 : vector<2x1xi32>
    %548 = vector.shape_cast %547 : vector<2x1xi1> to vector<2x1xi1>
    %549 = vector.broadcast %548 : vector<2x1xi1> to vector<2x32xi1>
    %550 = arith.select %549, %545, %527 : vector<2x32xi1>, vector<2x32xf32>
    %551 = vector.extract_strided_slice %479 {offsets = [6, 0], sizes = [2, 128], strides = [1, 1]} : vector<16x128xf32> to vector<2x128xf32>
    %cst_102 = arith.constant dense<0.000000e+00> : vector<2x128xf32>
    %552 = tpu.matmul %545, %474, %cst_102 {dimension_numbers = #tpu.dot_dimension_numbers<[1], [0], [0], [1], [0, 0, 1, 1], [], []>} : vector<2x32xf32>, vector<32x128xf32>, vector<2x128xf32> -> vector<2x128xf32>
    %553 = arith.addf %551, %552 : vector<2x128xf32>
    %554 = arith.negf %553 : vector<2x128xf32>
    %555 = math.exp %554 : vector<2x128xf32>
    %cst_103 = arith.constant 1.000000e+00 : f32
    %556 = vector.broadcast %cst_103 : f32 to vector<2x128xf32>
    %557 = arith.addf %556, %555 : vector<2x128xf32>
    %558 = arith.divf %556, %557 : vector<2x128xf32>
    %559 = math.tanh %553 : vector<2x128xf32>
    %560 = vector.extract_strided_slice %558 {offsets = [0, 0], sizes = [2, 32], strides = [1, 1]} : vector<2x128xf32> to vector<2x32xf32>
    %561 = vector.extract_strided_slice %558 {offsets = [0, 32], sizes = [2, 32], strides = [1, 1]} : vector<2x128xf32> to vector<2x32xf32>
    %562 = vector.extract_strided_slice %559 {offsets = [0, 64], sizes = [2, 32], strides = [1, 1]} : vector<2x128xf32> to vector<2x32xf32>
    %563 = vector.extract_strided_slice %558 {offsets = [0, 96], sizes = [2, 32], strides = [1, 1]} : vector<2x128xf32> to vector<2x32xf32>
    %564 = arith.mulf %561, %543 : vector<2x32xf32>
    %565 = arith.mulf %560, %562 : vector<2x32xf32>
    %566 = arith.addf %564, %565 : vector<2x32xf32>
    %567 = math.tanh %566 : vector<2x32xf32>
    %568 = arith.mulf %563, %567 : vector<2x32xf32>
    %c3_i32 = arith.constant 3 : i32
    %569 = vector.broadcast %c3_i32 : i32 to vector<2x1xi32>
    %570 = arith.cmpi eq, %2, %569 : vector<2x1xi32>
    %571 = vector.shape_cast %570 : vector<2x1xi1> to vector<2x1xi1>
    %572 = vector.broadcast %571 : vector<2x1xi1> to vector<2x32xi1>
    %573 = arith.select %572, %568, %550 : vector<2x32xi1>, vector<2x32xf32>
    %574 = vector.extract_strided_slice %479 {offsets = [8, 0], sizes = [2, 128], strides = [1, 1]} : vector<16x128xf32> to vector<2x128xf32>
    %cst_104 = arith.constant dense<0.000000e+00> : vector<2x128xf32>
    %575 = tpu.matmul %568, %474, %cst_104 {dimension_numbers = #tpu.dot_dimension_numbers<[1], [0], [0], [1], [0, 0, 1, 1], [], []>} : vector<2x32xf32>, vector<32x128xf32>, vector<2x128xf32> -> vector<2x128xf32>
    %576 = arith.addf %574, %575 : vector<2x128xf32>
    %577 = arith.negf %576 : vector<2x128xf32>
    %578 = math.exp %577 : vector<2x128xf32>
    %cst_105 = arith.constant 1.000000e+00 : f32
    %579 = vector.broadcast %cst_105 : f32 to vector<2x128xf32>
    %580 = arith.addf %579, %578 : vector<2x128xf32>
    %581 = arith.divf %579, %580 : vector<2x128xf32>
    %582 = math.tanh %576 : vector<2x128xf32>
    %583 = vector.extract_strided_slice %581 {offsets = [0, 0], sizes = [2, 32], strides = [1, 1]} : vector<2x128xf32> to vector<2x32xf32>
    %584 = vector.extract_strided_slice %581 {offsets = [0, 32], sizes = [2, 32], strides = [1, 1]} : vector<2x128xf32> to vector<2x32xf32>
    %585 = vector.extract_strided_slice %582 {offsets = [0, 64], sizes = [2, 32], strides = [1, 1]} : vector<2x128xf32> to vector<2x32xf32>
    %586 = vector.extract_strided_slice %581 {offsets = [0, 96], sizes = [2, 32], strides = [1, 1]} : vector<2x128xf32> to vector<2x32xf32>
    %587 = arith.mulf %584, %566 : vector<2x32xf32>
    %588 = arith.mulf %583, %585 : vector<2x32xf32>
    %589 = arith.addf %587, %588 : vector<2x32xf32>
    %590 = math.tanh %589 : vector<2x32xf32>
    %591 = arith.mulf %586, %590 : vector<2x32xf32>
    %c4_i32 = arith.constant 4 : i32
    %592 = vector.broadcast %c4_i32 : i32 to vector<2x1xi32>
    %593 = arith.cmpi eq, %2, %592 : vector<2x1xi32>
    %594 = vector.shape_cast %593 : vector<2x1xi1> to vector<2x1xi1>
    %595 = vector.broadcast %594 : vector<2x1xi1> to vector<2x32xi1>
    %596 = arith.select %595, %591, %573 : vector<2x32xi1>, vector<2x32xf32>
    %597 = vector.extract_strided_slice %479 {offsets = [10, 0], sizes = [2, 128], strides = [1, 1]} : vector<16x128xf32> to vector<2x128xf32>
    %cst_106 = arith.constant dense<0.000000e+00> : vector<2x128xf32>
    %598 = tpu.matmul %591, %474, %cst_106 {dimension_numbers = #tpu.dot_dimension_numbers<[1], [0], [0], [1], [0, 0, 1, 1], [], []>} : vector<2x32xf32>, vector<32x128xf32>, vector<2x128xf32> -> vector<2x128xf32>
    %599 = arith.addf %597, %598 : vector<2x128xf32>
    %600 = arith.negf %599 : vector<2x128xf32>
    %601 = math.exp %600 : vector<2x128xf32>
    %cst_107 = arith.constant 1.000000e+00 : f32
    %602 = vector.broadcast %cst_107 : f32 to vector<2x128xf32>
    %603 = arith.addf %602, %601 : vector<2x128xf32>
    %604 = arith.divf %602, %603 : vector<2x128xf32>
    %605 = math.tanh %599 : vector<2x128xf32>
    %606 = vector.extract_strided_slice %604 {offsets = [0, 0], sizes = [2, 32], strides = [1, 1]} : vector<2x128xf32> to vector<2x32xf32>
    %607 = vector.extract_strided_slice %604 {offsets = [0, 32], sizes = [2, 32], strides = [1, 1]} : vector<2x128xf32> to vector<2x32xf32>
    %608 = vector.extract_strided_slice %605 {offsets = [0, 64], sizes = [2, 32], strides = [1, 1]} : vector<2x128xf32> to vector<2x32xf32>
    %609 = vector.extract_strided_slice %604 {offsets = [0, 96], sizes = [2, 32], strides = [1, 1]} : vector<2x128xf32> to vector<2x32xf32>
    %610 = arith.mulf %607, %589 : vector<2x32xf32>
    %611 = arith.mulf %606, %608 : vector<2x32xf32>
    %612 = arith.addf %610, %611 : vector<2x32xf32>
    %613 = math.tanh %612 : vector<2x32xf32>
    %614 = arith.mulf %609, %613 : vector<2x32xf32>
    %c5_i32 = arith.constant 5 : i32
    %615 = vector.broadcast %c5_i32 : i32 to vector<2x1xi32>
    %616 = arith.cmpi eq, %2, %615 : vector<2x1xi32>
    %617 = vector.shape_cast %616 : vector<2x1xi1> to vector<2x1xi1>
    %618 = vector.broadcast %617 : vector<2x1xi1> to vector<2x32xi1>
    %619 = arith.select %618, %614, %596 : vector<2x32xi1>, vector<2x32xf32>
    %620 = vector.extract_strided_slice %479 {offsets = [12, 0], sizes = [2, 128], strides = [1, 1]} : vector<16x128xf32> to vector<2x128xf32>
    %cst_108 = arith.constant dense<0.000000e+00> : vector<2x128xf32>
    %621 = tpu.matmul %614, %474, %cst_108 {dimension_numbers = #tpu.dot_dimension_numbers<[1], [0], [0], [1], [0, 0, 1, 1], [], []>} : vector<2x32xf32>, vector<32x128xf32>, vector<2x128xf32> -> vector<2x128xf32>
    %622 = arith.addf %620, %621 : vector<2x128xf32>
    %623 = arith.negf %622 : vector<2x128xf32>
    %624 = math.exp %623 : vector<2x128xf32>
    %cst_109 = arith.constant 1.000000e+00 : f32
    %625 = vector.broadcast %cst_109 : f32 to vector<2x128xf32>
    %626 = arith.addf %625, %624 : vector<2x128xf32>
    %627 = arith.divf %625, %626 : vector<2x128xf32>
    %628 = math.tanh %622 : vector<2x128xf32>
    %629 = vector.extract_strided_slice %627 {offsets = [0, 0], sizes = [2, 32], strides = [1, 1]} : vector<2x128xf32> to vector<2x32xf32>
    %630 = vector.extract_strided_slice %627 {offsets = [0, 32], sizes = [2, 32], strides = [1, 1]} : vector<2x128xf32> to vector<2x32xf32>
    %631 = vector.extract_strided_slice %628 {offsets = [0, 64], sizes = [2, 32], strides = [1, 1]} : vector<2x128xf32> to vector<2x32xf32>
    %632 = vector.extract_strided_slice %627 {offsets = [0, 96], sizes = [2, 32], strides = [1, 1]} : vector<2x128xf32> to vector<2x32xf32>
    %633 = arith.mulf %630, %612 : vector<2x32xf32>
    %634 = arith.mulf %629, %631 : vector<2x32xf32>
    %635 = arith.addf %633, %634 : vector<2x32xf32>
    %636 = math.tanh %635 : vector<2x32xf32>
    %637 = arith.mulf %632, %636 : vector<2x32xf32>
    %c6_i32 = arith.constant 6 : i32
    %638 = vector.broadcast %c6_i32 : i32 to vector<2x1xi32>
    %639 = arith.cmpi eq, %2, %638 : vector<2x1xi32>
    %640 = vector.shape_cast %639 : vector<2x1xi1> to vector<2x1xi1>
    %641 = vector.broadcast %640 : vector<2x1xi1> to vector<2x32xi1>
    %642 = arith.select %641, %637, %619 : vector<2x32xi1>, vector<2x32xf32>
    %643 = vector.extract_strided_slice %479 {offsets = [14, 0], sizes = [2, 128], strides = [1, 1]} : vector<16x128xf32> to vector<2x128xf32>
    %cst_110 = arith.constant dense<0.000000e+00> : vector<2x128xf32>
    %644 = tpu.matmul %637, %474, %cst_110 {dimension_numbers = #tpu.dot_dimension_numbers<[1], [0], [0], [1], [0, 0, 1, 1], [], []>} : vector<2x32xf32>, vector<32x128xf32>, vector<2x128xf32> -> vector<2x128xf32>
    %645 = arith.addf %643, %644 : vector<2x128xf32>
    %646 = arith.negf %645 : vector<2x128xf32>
    %647 = math.exp %646 : vector<2x128xf32>
    %cst_111 = arith.constant 1.000000e+00 : f32
    %648 = vector.broadcast %cst_111 : f32 to vector<2x128xf32>
    %649 = arith.addf %648, %647 : vector<2x128xf32>
    %650 = arith.divf %648, %649 : vector<2x128xf32>
    %651 = math.tanh %645 : vector<2x128xf32>
    %652 = vector.extract_strided_slice %650 {offsets = [0, 0], sizes = [2, 32], strides = [1, 1]} : vector<2x128xf32> to vector<2x32xf32>
    %653 = vector.extract_strided_slice %650 {offsets = [0, 32], sizes = [2, 32], strides = [1, 1]} : vector<2x128xf32> to vector<2x32xf32>
    %654 = vector.extract_strided_slice %651 {offsets = [0, 64], sizes = [2, 32], strides = [1, 1]} : vector<2x128xf32> to vector<2x32xf32>
    %655 = vector.extract_strided_slice %650 {offsets = [0, 96], sizes = [2, 32], strides = [1, 1]} : vector<2x128xf32> to vector<2x32xf32>
    %656 = arith.mulf %653, %635 : vector<2x32xf32>
    %657 = arith.mulf %652, %654 : vector<2x32xf32>
    %658 = arith.addf %656, %657 : vector<2x32xf32>
    %659 = math.tanh %658 : vector<2x32xf32>
    %660 = arith.mulf %655, %659 : vector<2x32xf32>
    %c7_i32 = arith.constant 7 : i32
    %661 = vector.broadcast %c7_i32 : i32 to vector<2x1xi32>
    %662 = arith.cmpi eq, %2, %661 : vector<2x1xi32>
    %663 = vector.shape_cast %662 : vector<2x1xi1> to vector<2x1xi1>
    %664 = vector.broadcast %663 : vector<2x1xi1> to vector<2x32xi1>
    %665 = arith.select %664, %660, %642 : vector<2x32xi1>, vector<2x32xf32>
    %666 = tpu.concatenate %499, %522, %545, %568, %591, %614, %637, %660 in 0 : vector<2x32xf32>, vector<2x32xf32>, vector<2x32xf32>, vector<2x32xf32>, vector<2x32xf32>, vector<2x32xf32>, vector<2x32xf32>, vector<2x32xf32> -> vector<16x32xf32>
    %c3 = arith.constant 3 : index
    %c0_112 = arith.constant 0 : index
    %c0_113 = arith.constant 0 : index
    %667 = vector.load %arg5[%c3, %c0_112, %c0_113] : memref<4x32x128xf32, #tpu.memory_space<vmem>>, vector<1x32x128xf32>
    %668 = vector.shape_cast %667 : vector<1x32x128xf32> to vector<32x128xf32>
    %c3_114 = arith.constant 3 : index
    %c0_115 = arith.constant 0 : index
    %c0_116 = arith.constant 0 : index
    %669 = vector.load %arg6[%c3_114, %c0_115, %c0_116] : memref<4x32x128xf32, #tpu.memory_space<vmem>>, vector<1x32x128xf32>
    %670 = vector.shape_cast %669 : vector<1x32x128xf32> to vector<32x128xf32>
    %c3_117 = arith.constant 3 : index
    %c0_118 = arith.constant 0 : index
    %c0_119 = arith.constant 0 : index
    %671 = vector.load %arg7[%c3_117, %c0_118, %c0_119] : memref<4x1x128xf32, #tpu.memory_space<vmem>>, vector<1x1x128xf32>
    %672 = vector.shape_cast %671 : vector<1x1x128xf32> to vector<1x128xf32>
    %cst_120 = arith.constant dense<0.000000e+00> : vector<16x128xf32>
    %673 = tpu.matmul %666, %668, %cst_120 {dimension_numbers = #tpu.dot_dimension_numbers<[1], [0], [0], [1], [0, 0, 1, 1], [], []>} : vector<16x32xf32>, vector<32x128xf32>, vector<16x128xf32> -> vector<16x128xf32>
    %674 = vector.broadcast %672 : vector<1x128xf32> to vector<16x128xf32>
    %675 = arith.addf %673, %674 : vector<16x128xf32>
    %cst_121 = arith.constant 0.000000e+00 : f32
    %676 = vector.broadcast %cst_121 : f32 to vector<2x32xf32>
    %cst_122 = arith.constant 0.000000e+00 : f32
    %677 = vector.broadcast %cst_122 : f32 to vector<2x32xf32>
    %678 = vector.extract_strided_slice %675 {offsets = [0, 0], sizes = [2, 128], strides = [1, 1]} : vector<16x128xf32> to vector<2x128xf32>
    %cst_123 = arith.constant dense<0.000000e+00> : vector<2x128xf32>
    %679 = tpu.matmul %676, %670, %cst_123 {dimension_numbers = #tpu.dot_dimension_numbers<[1], [0], [0], [1], [0, 0, 1, 1], [], []>} : vector<2x32xf32>, vector<32x128xf32>, vector<2x128xf32> -> vector<2x128xf32>
    %680 = arith.addf %678, %679 : vector<2x128xf32>
    %681 = arith.negf %680 : vector<2x128xf32>
    %682 = math.exp %681 : vector<2x128xf32>
    %cst_124 = arith.constant 1.000000e+00 : f32
    %683 = vector.broadcast %cst_124 : f32 to vector<2x128xf32>
    %684 = arith.addf %683, %682 : vector<2x128xf32>
    %685 = arith.divf %683, %684 : vector<2x128xf32>
    %686 = math.tanh %680 : vector<2x128xf32>
    %687 = vector.extract_strided_slice %685 {offsets = [0, 0], sizes = [2, 32], strides = [1, 1]} : vector<2x128xf32> to vector<2x32xf32>
    %688 = vector.extract_strided_slice %685 {offsets = [0, 32], sizes = [2, 32], strides = [1, 1]} : vector<2x128xf32> to vector<2x32xf32>
    %689 = vector.extract_strided_slice %686 {offsets = [0, 64], sizes = [2, 32], strides = [1, 1]} : vector<2x128xf32> to vector<2x32xf32>
    %690 = vector.extract_strided_slice %685 {offsets = [0, 96], sizes = [2, 32], strides = [1, 1]} : vector<2x128xf32> to vector<2x32xf32>
    %691 = arith.mulf %688, %677 : vector<2x32xf32>
    %692 = arith.mulf %687, %689 : vector<2x32xf32>
    %693 = arith.addf %691, %692 : vector<2x32xf32>
    %694 = math.tanh %693 : vector<2x32xf32>
    %695 = arith.mulf %690, %694 : vector<2x32xf32>
    %c0_i32_125 = arith.constant 0 : i32
    %696 = vector.broadcast %c0_i32_125 : i32 to vector<2x1xi32>
    %697 = arith.cmpi eq, %2, %696 : vector<2x1xi32>
    %698 = vector.shape_cast %697 : vector<2x1xi1> to vector<2x1xi1>
    %699 = vector.broadcast %698 : vector<2x1xi1> to vector<2x32xi1>
    %700 = arith.select %699, %695, %4 : vector<2x32xi1>, vector<2x32xf32>
    %701 = vector.extract_strided_slice %675 {offsets = [2, 0], sizes = [2, 128], strides = [1, 1]} : vector<16x128xf32> to vector<2x128xf32>
    %cst_126 = arith.constant dense<0.000000e+00> : vector<2x128xf32>
    %702 = tpu.matmul %695, %670, %cst_126 {dimension_numbers = #tpu.dot_dimension_numbers<[1], [0], [0], [1], [0, 0, 1, 1], [], []>} : vector<2x32xf32>, vector<32x128xf32>, vector<2x128xf32> -> vector<2x128xf32>
    %703 = arith.addf %701, %702 : vector<2x128xf32>
    %704 = arith.negf %703 : vector<2x128xf32>
    %705 = math.exp %704 : vector<2x128xf32>
    %cst_127 = arith.constant 1.000000e+00 : f32
    %706 = vector.broadcast %cst_127 : f32 to vector<2x128xf32>
    %707 = arith.addf %706, %705 : vector<2x128xf32>
    %708 = arith.divf %706, %707 : vector<2x128xf32>
    %709 = math.tanh %703 : vector<2x128xf32>
    %710 = vector.extract_strided_slice %708 {offsets = [0, 0], sizes = [2, 32], strides = [1, 1]} : vector<2x128xf32> to vector<2x32xf32>
    %711 = vector.extract_strided_slice %708 {offsets = [0, 32], sizes = [2, 32], strides = [1, 1]} : vector<2x128xf32> to vector<2x32xf32>
    %712 = vector.extract_strided_slice %709 {offsets = [0, 64], sizes = [2, 32], strides = [1, 1]} : vector<2x128xf32> to vector<2x32xf32>
    %713 = vector.extract_strided_slice %708 {offsets = [0, 96], sizes = [2, 32], strides = [1, 1]} : vector<2x128xf32> to vector<2x32xf32>
    %714 = arith.mulf %711, %693 : vector<2x32xf32>
    %715 = arith.mulf %710, %712 : vector<2x32xf32>
    %716 = arith.addf %714, %715 : vector<2x32xf32>
    %717 = math.tanh %716 : vector<2x32xf32>
    %718 = arith.mulf %713, %717 : vector<2x32xf32>
    %c1_i32_128 = arith.constant 1 : i32
    %719 = vector.broadcast %c1_i32_128 : i32 to vector<2x1xi32>
    %720 = arith.cmpi eq, %2, %719 : vector<2x1xi32>
    %721 = vector.shape_cast %720 : vector<2x1xi1> to vector<2x1xi1>
    %722 = vector.broadcast %721 : vector<2x1xi1> to vector<2x32xi1>
    %723 = arith.select %722, %718, %700 : vector<2x32xi1>, vector<2x32xf32>
    %724 = vector.extract_strided_slice %675 {offsets = [4, 0], sizes = [2, 128], strides = [1, 1]} : vector<16x128xf32> to vector<2x128xf32>
    %cst_129 = arith.constant dense<0.000000e+00> : vector<2x128xf32>
    %725 = tpu.matmul %718, %670, %cst_129 {dimension_numbers = #tpu.dot_dimension_numbers<[1], [0], [0], [1], [0, 0, 1, 1], [], []>} : vector<2x32xf32>, vector<32x128xf32>, vector<2x128xf32> -> vector<2x128xf32>
    %726 = arith.addf %724, %725 : vector<2x128xf32>
    %727 = arith.negf %726 : vector<2x128xf32>
    %728 = math.exp %727 : vector<2x128xf32>
    %cst_130 = arith.constant 1.000000e+00 : f32
    %729 = vector.broadcast %cst_130 : f32 to vector<2x128xf32>
    %730 = arith.addf %729, %728 : vector<2x128xf32>
    %731 = arith.divf %729, %730 : vector<2x128xf32>
    %732 = math.tanh %726 : vector<2x128xf32>
    %733 = vector.extract_strided_slice %731 {offsets = [0, 0], sizes = [2, 32], strides = [1, 1]} : vector<2x128xf32> to vector<2x32xf32>
    %734 = vector.extract_strided_slice %731 {offsets = [0, 32], sizes = [2, 32], strides = [1, 1]} : vector<2x128xf32> to vector<2x32xf32>
    %735 = vector.extract_strided_slice %732 {offsets = [0, 64], sizes = [2, 32], strides = [1, 1]} : vector<2x128xf32> to vector<2x32xf32>
    %736 = vector.extract_strided_slice %731 {offsets = [0, 96], sizes = [2, 32], strides = [1, 1]} : vector<2x128xf32> to vector<2x32xf32>
    %737 = arith.mulf %734, %716 : vector<2x32xf32>
    %738 = arith.mulf %733, %735 : vector<2x32xf32>
    %739 = arith.addf %737, %738 : vector<2x32xf32>
    %740 = math.tanh %739 : vector<2x32xf32>
    %741 = arith.mulf %736, %740 : vector<2x32xf32>
    %c2_i32_131 = arith.constant 2 : i32
    %742 = vector.broadcast %c2_i32_131 : i32 to vector<2x1xi32>
    %743 = arith.cmpi eq, %2, %742 : vector<2x1xi32>
    %744 = vector.shape_cast %743 : vector<2x1xi1> to vector<2x1xi1>
    %745 = vector.broadcast %744 : vector<2x1xi1> to vector<2x32xi1>
    %746 = arith.select %745, %741, %723 : vector<2x32xi1>, vector<2x32xf32>
    %747 = vector.extract_strided_slice %675 {offsets = [6, 0], sizes = [2, 128], strides = [1, 1]} : vector<16x128xf32> to vector<2x128xf32>
    %cst_132 = arith.constant dense<0.000000e+00> : vector<2x128xf32>
    %748 = tpu.matmul %741, %670, %cst_132 {dimension_numbers = #tpu.dot_dimension_numbers<[1], [0], [0], [1], [0, 0, 1, 1], [], []>} : vector<2x32xf32>, vector<32x128xf32>, vector<2x128xf32> -> vector<2x128xf32>
    %749 = arith.addf %747, %748 : vector<2x128xf32>
    %750 = arith.negf %749 : vector<2x128xf32>
    %751 = math.exp %750 : vector<2x128xf32>
    %cst_133 = arith.constant 1.000000e+00 : f32
    %752 = vector.broadcast %cst_133 : f32 to vector<2x128xf32>
    %753 = arith.addf %752, %751 : vector<2x128xf32>
    %754 = arith.divf %752, %753 : vector<2x128xf32>
    %755 = math.tanh %749 : vector<2x128xf32>
    %756 = vector.extract_strided_slice %754 {offsets = [0, 0], sizes = [2, 32], strides = [1, 1]} : vector<2x128xf32> to vector<2x32xf32>
    %757 = vector.extract_strided_slice %754 {offsets = [0, 32], sizes = [2, 32], strides = [1, 1]} : vector<2x128xf32> to vector<2x32xf32>
    %758 = vector.extract_strided_slice %755 {offsets = [0, 64], sizes = [2, 32], strides = [1, 1]} : vector<2x128xf32> to vector<2x32xf32>
    %759 = vector.extract_strided_slice %754 {offsets = [0, 96], sizes = [2, 32], strides = [1, 1]} : vector<2x128xf32> to vector<2x32xf32>
    %760 = arith.mulf %757, %739 : vector<2x32xf32>
    %761 = arith.mulf %756, %758 : vector<2x32xf32>
    %762 = arith.addf %760, %761 : vector<2x32xf32>
    %763 = math.tanh %762 : vector<2x32xf32>
    %764 = arith.mulf %759, %763 : vector<2x32xf32>
    %c3_i32_134 = arith.constant 3 : i32
    %765 = vector.broadcast %c3_i32_134 : i32 to vector<2x1xi32>
    %766 = arith.cmpi eq, %2, %765 : vector<2x1xi32>
    %767 = vector.shape_cast %766 : vector<2x1xi1> to vector<2x1xi1>
    %768 = vector.broadcast %767 : vector<2x1xi1> to vector<2x32xi1>
    %769 = arith.select %768, %764, %746 : vector<2x32xi1>, vector<2x32xf32>
    %770 = vector.extract_strided_slice %675 {offsets = [8, 0], sizes = [2, 128], strides = [1, 1]} : vector<16x128xf32> to vector<2x128xf32>
    %cst_135 = arith.constant dense<0.000000e+00> : vector<2x128xf32>
    %771 = tpu.matmul %764, %670, %cst_135 {dimension_numbers = #tpu.dot_dimension_numbers<[1], [0], [0], [1], [0, 0, 1, 1], [], []>} : vector<2x32xf32>, vector<32x128xf32>, vector<2x128xf32> -> vector<2x128xf32>
    %772 = arith.addf %770, %771 : vector<2x128xf32>
    %773 = arith.negf %772 : vector<2x128xf32>
    %774 = math.exp %773 : vector<2x128xf32>
    %cst_136 = arith.constant 1.000000e+00 : f32
    %775 = vector.broadcast %cst_136 : f32 to vector<2x128xf32>
    %776 = arith.addf %775, %774 : vector<2x128xf32>
    %777 = arith.divf %775, %776 : vector<2x128xf32>
    %778 = math.tanh %772 : vector<2x128xf32>
    %779 = vector.extract_strided_slice %777 {offsets = [0, 0], sizes = [2, 32], strides = [1, 1]} : vector<2x128xf32> to vector<2x32xf32>
    %780 = vector.extract_strided_slice %777 {offsets = [0, 32], sizes = [2, 32], strides = [1, 1]} : vector<2x128xf32> to vector<2x32xf32>
    %781 = vector.extract_strided_slice %778 {offsets = [0, 64], sizes = [2, 32], strides = [1, 1]} : vector<2x128xf32> to vector<2x32xf32>
    %782 = vector.extract_strided_slice %777 {offsets = [0, 96], sizes = [2, 32], strides = [1, 1]} : vector<2x128xf32> to vector<2x32xf32>
    %783 = arith.mulf %780, %762 : vector<2x32xf32>
    %784 = arith.mulf %779, %781 : vector<2x32xf32>
    %785 = arith.addf %783, %784 : vector<2x32xf32>
    %786 = math.tanh %785 : vector<2x32xf32>
    %787 = arith.mulf %782, %786 : vector<2x32xf32>
    %c4_i32_137 = arith.constant 4 : i32
    %788 = vector.broadcast %c4_i32_137 : i32 to vector<2x1xi32>
    %789 = arith.cmpi eq, %2, %788 : vector<2x1xi32>
    %790 = vector.shape_cast %789 : vector<2x1xi1> to vector<2x1xi1>
    %791 = vector.broadcast %790 : vector<2x1xi1> to vector<2x32xi1>
    %792 = arith.select %791, %787, %769 : vector<2x32xi1>, vector<2x32xf32>
    %793 = vector.extract_strided_slice %675 {offsets = [10, 0], sizes = [2, 128], strides = [1, 1]} : vector<16x128xf32> to vector<2x128xf32>
    %cst_138 = arith.constant dense<0.000000e+00> : vector<2x128xf32>
    %794 = tpu.matmul %787, %670, %cst_138 {dimension_numbers = #tpu.dot_dimension_numbers<[1], [0], [0], [1], [0, 0, 1, 1], [], []>} : vector<2x32xf32>, vector<32x128xf32>, vector<2x128xf32> -> vector<2x128xf32>
    %795 = arith.addf %793, %794 : vector<2x128xf32>
    %796 = arith.negf %795 : vector<2x128xf32>
    %797 = math.exp %796 : vector<2x128xf32>
    %cst_139 = arith.constant 1.000000e+00 : f32
    %798 = vector.broadcast %cst_139 : f32 to vector<2x128xf32>
    %799 = arith.addf %798, %797 : vector<2x128xf32>
    %800 = arith.divf %798, %799 : vector<2x128xf32>
    %801 = math.tanh %795 : vector<2x128xf32>
    %802 = vector.extract_strided_slice %800 {offsets = [0, 0], sizes = [2, 32], strides = [1, 1]} : vector<2x128xf32> to vector<2x32xf32>
    %803 = vector.extract_strided_slice %800 {offsets = [0, 32], sizes = [2, 32], strides = [1, 1]} : vector<2x128xf32> to vector<2x32xf32>
    %804 = vector.extract_strided_slice %801 {offsets = [0, 64], sizes = [2, 32], strides = [1, 1]} : vector<2x128xf32> to vector<2x32xf32>
    %805 = vector.extract_strided_slice %800 {offsets = [0, 96], sizes = [2, 32], strides = [1, 1]} : vector<2x128xf32> to vector<2x32xf32>
    %806 = arith.mulf %803, %785 : vector<2x32xf32>
    %807 = arith.mulf %802, %804 : vector<2x32xf32>
    %808 = arith.addf %806, %807 : vector<2x32xf32>
    %809 = math.tanh %808 : vector<2x32xf32>
    %810 = arith.mulf %805, %809 : vector<2x32xf32>
    %c5_i32_140 = arith.constant 5 : i32
    %811 = vector.broadcast %c5_i32_140 : i32 to vector<2x1xi32>
    %812 = arith.cmpi eq, %2, %811 : vector<2x1xi32>
    %813 = vector.shape_cast %812 : vector<2x1xi1> to vector<2x1xi1>
    %814 = vector.broadcast %813 : vector<2x1xi1> to vector<2x32xi1>
    %815 = arith.select %814, %810, %792 : vector<2x32xi1>, vector<2x32xf32>
    %816 = vector.extract_strided_slice %675 {offsets = [12, 0], sizes = [2, 128], strides = [1, 1]} : vector<16x128xf32> to vector<2x128xf32>
    %cst_141 = arith.constant dense<0.000000e+00> : vector<2x128xf32>
    %817 = tpu.matmul %810, %670, %cst_141 {dimension_numbers = #tpu.dot_dimension_numbers<[1], [0], [0], [1], [0, 0, 1, 1], [], []>} : vector<2x32xf32>, vector<32x128xf32>, vector<2x128xf32> -> vector<2x128xf32>
    %818 = arith.addf %816, %817 : vector<2x128xf32>
    %819 = arith.negf %818 : vector<2x128xf32>
    %820 = math.exp %819 : vector<2x128xf32>
    %cst_142 = arith.constant 1.000000e+00 : f32
    %821 = vector.broadcast %cst_142 : f32 to vector<2x128xf32>
    %822 = arith.addf %821, %820 : vector<2x128xf32>
    %823 = arith.divf %821, %822 : vector<2x128xf32>
    %824 = math.tanh %818 : vector<2x128xf32>
    %825 = vector.extract_strided_slice %823 {offsets = [0, 0], sizes = [2, 32], strides = [1, 1]} : vector<2x128xf32> to vector<2x32xf32>
    %826 = vector.extract_strided_slice %823 {offsets = [0, 32], sizes = [2, 32], strides = [1, 1]} : vector<2x128xf32> to vector<2x32xf32>
    %827 = vector.extract_strided_slice %824 {offsets = [0, 64], sizes = [2, 32], strides = [1, 1]} : vector<2x128xf32> to vector<2x32xf32>
    %828 = vector.extract_strided_slice %823 {offsets = [0, 96], sizes = [2, 32], strides = [1, 1]} : vector<2x128xf32> to vector<2x32xf32>
    %829 = arith.mulf %826, %808 : vector<2x32xf32>
    %830 = arith.mulf %825, %827 : vector<2x32xf32>
    %831 = arith.addf %829, %830 : vector<2x32xf32>
    %832 = math.tanh %831 : vector<2x32xf32>
    %833 = arith.mulf %828, %832 : vector<2x32xf32>
    %c6_i32_143 = arith.constant 6 : i32
    %834 = vector.broadcast %c6_i32_143 : i32 to vector<2x1xi32>
    %835 = arith.cmpi eq, %2, %834 : vector<2x1xi32>
    %836 = vector.shape_cast %835 : vector<2x1xi1> to vector<2x1xi1>
    %837 = vector.broadcast %836 : vector<2x1xi1> to vector<2x32xi1>
    %838 = arith.select %837, %833, %815 : vector<2x32xi1>, vector<2x32xf32>
    %839 = vector.extract_strided_slice %675 {offsets = [14, 0], sizes = [2, 128], strides = [1, 1]} : vector<16x128xf32> to vector<2x128xf32>
    %cst_144 = arith.constant dense<0.000000e+00> : vector<2x128xf32>
    %840 = tpu.matmul %833, %670, %cst_144 {dimension_numbers = #tpu.dot_dimension_numbers<[1], [0], [0], [1], [0, 0, 1, 1], [], []>} : vector<2x32xf32>, vector<32x128xf32>, vector<2x128xf32> -> vector<2x128xf32>
    %841 = arith.addf %839, %840 : vector<2x128xf32>
    %842 = arith.negf %841 : vector<2x128xf32>
    %843 = math.exp %842 : vector<2x128xf32>
    %cst_145 = arith.constant 1.000000e+00 : f32
    %844 = vector.broadcast %cst_145 : f32 to vector<2x128xf32>
    %845 = arith.addf %844, %843 : vector<2x128xf32>
    %846 = arith.divf %844, %845 : vector<2x128xf32>
    %847 = math.tanh %841 : vector<2x128xf32>
    %848 = vector.extract_strided_slice %846 {offsets = [0, 0], sizes = [2, 32], strides = [1, 1]} : vector<2x128xf32> to vector<2x32xf32>
    %849 = vector.extract_strided_slice %846 {offsets = [0, 32], sizes = [2, 32], strides = [1, 1]} : vector<2x128xf32> to vector<2x32xf32>
    %850 = vector.extract_strided_slice %847 {offsets = [0, 64], sizes = [2, 32], strides = [1, 1]} : vector<2x128xf32> to vector<2x32xf32>
    %851 = vector.extract_strided_slice %846 {offsets = [0, 96], sizes = [2, 32], strides = [1, 1]} : vector<2x128xf32> to vector<2x32xf32>
    %852 = arith.mulf %849, %831 : vector<2x32xf32>
    %853 = arith.mulf %848, %850 : vector<2x32xf32>
    %854 = arith.addf %852, %853 : vector<2x32xf32>
    %855 = math.tanh %854 : vector<2x32xf32>
    %856 = arith.mulf %851, %855 : vector<2x32xf32>
    %c7_i32_146 = arith.constant 7 : i32
    %857 = vector.broadcast %c7_i32_146 : i32 to vector<2x1xi32>
    %858 = arith.cmpi eq, %2, %857 : vector<2x1xi32>
    %859 = vector.shape_cast %858 : vector<2x1xi1> to vector<2x1xi1>
    %860 = vector.broadcast %859 : vector<2x1xi1> to vector<2x32xi1>
    %861 = arith.select %860, %856, %838 : vector<2x32xi1>, vector<2x32xf32>
    %c0_147 = arith.constant 0 : index
    %c0_148 = arith.constant 0 : index
    %862 = vector.load %arg8[%c0_147, %c0_148] : memref<64x2xf32, #tpu.memory_space<vmem>>, vector<64x2xf32>
    %863 = vector.extract_strided_slice %862 {offsets = [0, 0], sizes = [32, 2], strides = [1, 1]} : vector<64x2xf32> to vector<32x2xf32>
    %cst_149 = arith.constant dense<0.000000e+00> : vector<2x2xf32>
    %864 = tpu.matmul %665, %863, %cst_149 {dimension_numbers = #tpu.dot_dimension_numbers<[1], [0], [0], [1], [0, 0, 1, 1], [], []>} : vector<2x32xf32>, vector<32x2xf32>, vector<2x2xf32> -> vector<2x2xf32>
    %865 = vector.extract_strided_slice %862 {offsets = [32, 0], sizes = [32, 2], strides = [1, 1]} : vector<64x2xf32> to vector<32x2xf32>
    %cst_150 = arith.constant dense<0.000000e+00> : vector<2x2xf32>
    %866 = tpu.matmul %861, %865, %cst_150 {dimension_numbers = #tpu.dot_dimension_numbers<[1], [0], [0], [1], [0, 0, 1, 1], [], []>} : vector<2x32xf32>, vector<32x2xf32>, vector<2x2xf32> -> vector<2x2xf32>
    %867 = arith.addf %864, %866 : vector<2x2xf32>
    %c0_151 = arith.constant 0 : index
    %c0_152 = arith.constant 0 : index
    %868 = vector.load %arg9[%c0_151, %c0_152] : memref<1x2xf32, #tpu.memory_space<vmem>>, vector<1x2xf32>
    %869 = vector.broadcast %868 : vector<1x2xf32> to vector<2x2xf32>
    %870 = arith.addf %867, %869 : vector<2x2xf32>
    %c0_153 = arith.constant 0 : index
    %c0_154 = arith.constant 0 : index
    %871 = vector.load %arg10[%c0_153, %c0_154] : memref<2x2xf32, #tpu.memory_space<vmem>>, vector<2x2xf32>
    tpu.vector_store %arg10[%c0_153, %c0_154], %870 {strides = array<i32>} : memref<2x2xf32, #tpu.memory_space<vmem>>, vector<2x2xf32>,
    return
  }
}

</mosaic_0001>

<llo_original>
// kernel: tpu_custom_call.1
$region0: #{tpu_custom_call.1}
  #allocation0 [shape = 'u32[]', space=smem, size = 0x4, offset = 0x4, fixed_abs, tag = 'smem constant byte address 0x4 - core index']
  #allocation1 [shape = 'u32[144,128]{1,0:T(1,128)}', space=vmem, size = 0x12000, scoped, tag = 'internal scratch']
  %s0 = inlined_call_operand.vmem [shape: s32[2,1], index: 0, kind: input, shape index: {}]
  %s1 = inlined_call_operand.vmem [shape: f32[16,50], index: 1, kind: input, shape index: {}]
  %s2 = inlined_call_operand.vmem [shape: f32[50,128], index: 2, kind: input, shape index: {}]
  %s3 = inlined_call_operand.hbm [shape: f32[32,128], index: 3, kind: input, shape index: {}]
  %s4 = inlined_call_operand.vmem [shape: f32[1,128], index: 4, kind: input, shape index: {}]
  %s5 = inlined_call_operand.hbm [shape: f32[4,32,128], index: 5, kind: input, shape index: {}]
  %s6 = inlined_call_operand.hbm [shape: f32[4,32,128], index: 6, kind: input, shape index: {}]
  %s7 = inlined_call_operand.vmem [shape: f32[4,1,128], index: 7, kind: input, shape index: {}]
  %s8 = inlined_call_operand.vmem [shape: f32[64,2], index: 8, kind: input, shape index: {}]
  %s9 = inlined_call_operand.vmem [shape: f32[1,2], index: 9, kind: input, shape index: {}]
  %s10 = inlined_call_operand.hbm [shape: f32[2,2], index: 10, kind: output, shape index: {}]
  %s11 = sld [smem:[#allocation0]]
  $region62: #{tpu_custom_call.1} parent=0
    _
  %s13 = ssub.s32 1, %s11
  %s14 = scalar_select 0, %s13, %s11
  $region1: #{tpu_custom_call.1} parent=0
    #allocation2 [shape = 'u8[16384]{0}', space=vmem, size = 0x4000, scoped, tag = 'input window, operand 3, single buffered']
    #allocation3 [shape = 's32[1]{0}', space=sflag, size = 0x4, scoped, tag = 'scoped memory for tpu_custom_call.1']
    #allocation4 [shape = 's32[1]{0}', space=sflag, size = 0x4, scoped, tag = 'scoped memory for tpu_custom_call.1']
    #allocation5 [shape = 'u8[65536]{0}', space=vmem, size = 0x10000, scoped, tag = 'input window, operand 5, single buffered']
    #allocation6 [shape = 's32[1]{0}', space=sflag, size = 0x4, scoped, tag = 'scoped memory for tpu_custom_call.1']
    #allocation7 [shape = 'u8[65536]{0}', space=vmem, size = 0x10000, scoped, tag = 'input window, operand 6, single buffered']
    #allocation8 [shape = 'u8[1024]{0}', space=vmem, size = 0x400, scoped, tag = 'output window, operand 0, single buffered']
    %15 = vsyncpa [#allocation3], 0
    %16 = vsyncpa [#allocation6], 0
    %17 = vsyncpa [#allocation4], 0
    // Predicated region
    $region2: #{tpu_custom_call.1} parent=1 // pred_check
      _
    $region3: #{tpu_custom_call.1} parent=1 // pred_check_branch
      %19 = sbr.rel (0) target = $region5
    $region4: #{tpu_custom_call.1} parent=1 // pred_region
      _
    $region5: #{tpu_custom_call.1} parent=1 // pred_fallthru
      _
    // Predicated region
    $region6: #{tpu_custom_call.1} parent=1 // pred_check
      _
    $region7: #{tpu_custom_call.1} parent=1 // pred_check_branch
      %21 = sbr.rel (0) target = $region9
    $region8: #{tpu_custom_call.1} parent=1 // pred_region
      _
    $region9: #{tpu_custom_call.1} parent=1 // pred_fallthru
      _
    // Predicated region
    $region10: #{tpu_custom_call.1} parent=1 // pred_check
      _
    $region11: #{tpu_custom_call.1} parent=1 // pred_check_branch
      %23 = sbr.rel (0) target = $region13
    $region12: #{tpu_custom_call.1} parent=1 // pred_region
      _
    $region13: #{tpu_custom_call.1} parent=1 // pred_fallthru
      _
    // Predicated region
    $region14: #{tpu_custom_call.1} parent=1 // pred_check
      _
    $region15: #{tpu_custom_call.1} parent=1 // pred_check_branch
      %25 = sbr.rel (0) target = $region17
    $region16: #{tpu_custom_call.1} parent=1 // pred_region
      %s27 = ssub.s32 512, 512
      %28 = vsyncadd [#allocation3], %s27
      %s29 = sshll.u32 [#allocation2], 4
      %s30 = int_to_ptr.vmem [resolvable:$true] %s29
      %35 = dma.hbm_to_vmem [thread:$0]  %s3, 512, %s30, [#allocation3], 128, 128, 8
    $region17: #{tpu_custom_call.1} parent=1 // pred_fallthru
      _
    // Predicated region
    $region18: #{tpu_custom_call.1} parent=1 // pred_check
      _
    $region19: #{tpu_custom_call.1} parent=1 // pred_check_branch
      %37 = sbr.rel (0) target = $region21
    $region20: #{tpu_custom_call.1} parent=1 // pred_region
      _
    $region21: #{tpu_custom_call.1} parent=1 // pred_fallthru
      _
    // Predicated region
    $region22: #{tpu_custom_call.1} parent=1 // pred_check
      _
    $region23: #{tpu_custom_call.1} parent=1 // pred_check_branch
      %39 = sbr.rel (0) target = $region25
    $region24: #{tpu_custom_call.1} parent=1 // pred_region
      %s41 = ssub.s32 2048, 2048
      %42 = vsyncadd [#allocation6], %s41
      %s43 = sshll.u32 [#allocation5], 4
      %s44 = int_to_ptr.vmem [resolvable:$true] %s43
      %49 = dma.hbm_to_vmem [thread:$0]  %s5, 2048, %s44, [#allocation6], 128, 128, 8
    $region25: #{tpu_custom_call.1} parent=1 // pred_fallthru
      _
    // Predicated region
    $region26: #{tpu_custom_call.1} parent=1 // pred_check
      _
    $region27: #{tpu_custom_call.1} parent=1 // pred_check_branch
      %51 = sbr.rel (0) target = $region29
    $region28: #{tpu_custom_call.1} parent=1 // pred_region
      %s53 = ssub.s32 2048, 2048
      %54 = vsyncadd [#allocation6], %s53
      %s55 = sshll.u32 [#allocation7], 4
      %s56 = int_to_ptr.vmem [resolvable:$true] %s55
      %61 = dma.hbm_to_vmem [thread:$0]  %s6, 2048, %s56, [#allocation6], 128, 128, 8
    $region29: #{tpu_custom_call.1} parent=1 // pred_fallthru
      _
    // Predicated region
    $region30: #{tpu_custom_call.1} parent=1 // pred_check
      _
    $region31: #{tpu_custom_call.1} parent=1 // pred_check_branch
      %63 = sbr.rel (0) target = $region33
    $region32: #{tpu_custom_call.1} parent=1 // pred_region
      _
    $region33: #{tpu_custom_call.1} parent=1 // pred_fallthru
      _
    // Predicated region
    $region34: #{tpu_custom_call.1} parent=1 // pred_check
      _
    $region35: #{tpu_custom_call.1} parent=1 // pred_check_branch
      %65 = sbr.rel (0) target = $region37
    $region36: #{tpu_custom_call.1} parent=1 // pred_region
      _
    $region37: #{tpu_custom_call.1} parent=1 // pred_fallthru
      _
    // Predicated region
    $region38: #{tpu_custom_call.1} parent=1 // pred_check
      _
    $region39: #{tpu_custom_call.1} parent=1 // pred_check_branch
      %67 = sbr.rel (0) target = $region41
    $region40: #{tpu_custom_call.1} parent=1 // pred_region
      _
    $region41: #{tpu_custom_call.1} parent=1 // pred_fallthru
      _
    // Predicated region
    $region42: #{tpu_custom_call.1} parent=1 // pred_check
      _
    $region43: #{tpu_custom_call.1} parent=1 // pred_check_branch
      %69 = sbr.rel (0) target = $region45
    $region44: #{tpu_custom_call.1} parent=1 // pred_region
      %70 = dma.done [#allocation3], 512
    $region45: #{tpu_custom_call.1} parent=1 // pred_fallthru
      _
    // Predicated region
    $region46: #{tpu_custom_call.1} parent=1 // pred_check
      _
    $region47: #{tpu_custom_call.1} parent=1 // pred_check_branch
      %72 = sbr.rel (0) target = $region49
    $region48: #{tpu_custom_call.1} parent=1 // pred_region
      %73 = dma.done [#allocation6], 2048
    $region49: #{tpu_custom_call.1} parent=1 // pred_fallthru
      _
    // Predicated region
    $region50: #{tpu_custom_call.1} parent=1 // pred_check
      _
    $region51: #{tpu_custom_call.1} parent=1 // pred_check_branch
      %75 = sbr.rel (0) target = $region53
    $region52: #{tpu_custom_call.1} parent=1 // pred_region
      %76 = dma.done [#allocation6], 2048
    $region53: #{tpu_custom_call.1} parent=1 // pred_fallthru
      _
    %v77 = vld [vmem:[%s0] sm:$0x3]
    %v78 = vsub.s32 %v77, 1
    %v79 = vld [vmem:[%s1] sm:$0xff]
    %v80 = vld [vmem:[%s1 + $0x8] sm:$0xff]
    %v81 = vld [vmem:[%s2] sm:$0xff]
    %v82 = vld [vmem:[%s2 + $0x8] sm:$0xff]
    %v83 = vld [vmem:[%s2 + $0x10] sm:$0xff]
    %v84 = vld [vmem:[%s2 + $0x18] sm:$0xff]
    %v85 = vld [vmem:[%s2 + $0x20] sm:$0xff]
    %v86 = vld [vmem:[%s2 + $0x28] sm:$0xff]
    %v87 = vld [vmem:[%s2 + $0x30] sm:$0x3]
    %v88 = vld [vmem:[#allocation2] sm:$0xff]
    %v89 = vld [vmem:[#allocation2 + $0x8] sm:$0xff]
    %v90 = vld [vmem:[#allocation2 + $0x10] sm:$0xff]
    %v91 = vld [vmem:[#allocation2 + $0x18] sm:$0xff]
    %v92 = vld [vmem:[%s4] sm:$0x1]
    %v94 = vlaneseq
    %v95 = vshrl.u32 %v94, 7
    %v96 = vsub.s32 0, %v95
    %v97 = vrot.slane %v92, %v96
    %vm99 = vcmask 408576
    %v101 = vsel %vm99, %v79, 0
    %v104 = vsel %vm99, %v80, 0
    %vm106 = vcmask 1041408
    %v108 = vsel %vm106, %v87, 0
    %110 = vmatprep.subr.mxu0 0.0
    %111 = vmatpush1.msra.mxu0 %v81
    %112 = vmatprep.subr.mxu0 0.0
    %113 = vmatpush1.msra.mxu0 %v82
    %114 = vmatprep.subr.mxu0 0.0
    %115 = vmatpush1.msra.mxu0 %v83
    %116 = vmatprep.subr.mxu0 0.0
    %117 = vmatpush1.msra.mxu0 %v84
    %118 = vmatprep.subr.mxu0 0.0
    %119 = vmatpush1.msra.mxu0 %v85
    %120 = vmatprep.subr.mxu0 0.0
    %121 = vmatpush1.msra.mxu0 %v86
    %122 = vmatprep.subr.mxu0 0.0
    %123 = vmatpush1.msra.mxu0 %v108
    %124 = vmatprep.subr.mxu0 0.0
    %125 = vmatpush1.msra.mxu0 0.0
    %126 = vmatprep.subr.mxu0 0.0
    %127 = vmatpush1.msra.mxu0 0.0
    %128 = vmatprep.subr.mxu0 0.0
    %129 = vmatpush1.msra.mxu0 0.0
    %130 = vmatprep.subr.mxu0 0.0
    %131 = vmatpush1.msra.mxu0 0.0
    %132 = vmatprep.subr.mxu0 0.0
    %133 = vmatpush1.msra.mxu0 0.0
    %134 = vmatprep.subr.mxu0 0.0
    %135 = vmatpush1.msra.mxu0 0.0
    %136 = vmatprep.subr.mxu0 0.0
    %137 = vmatpush1.msra.mxu0 0.0
    %138 = vmatprep.subr.mxu0 0.0
    %139 = vmatpush1.msra.mxu0 0.0
    %140 = vmatprep.subr.mxu0 0.0
    %141 = vmatpush1.msra.mxu0 0.0
    %142 = vmatprep.subr.mxu0 0.0
    %143 = vmatpush1.msra.mxu0 0.0
    %144 = vmatprep.subr.mxu0 0.0
    %145 = vmatpush1.msra.mxu0 0.0
    %146 = vmatprep.subr.mxu0 0.0
    %147 = vmatpush1.msra.mxu0 0.0
    %148 = vmatprep.subr.mxu0 0.0
    %149 = vmatpush1.msra.mxu0 0.0
    %150 = vmatprep.subr.mxu0 0.0
    %151 = vmatpush1.msra.mxu0 0.0
    %152 = vmatprep.subr.mxu0 0.0
    %153 = vmatpush1.msra.mxu0 0.0
    %154 = vmatprep.subr.mxu0 0.0
    %155 = vmatpush1.msra.mxu0 0.0
    %156 = vmatprep.subr.mxu0 0.0
    %157 = vmatpush1.msra.mxu0 0.0
    %158 = vmatprep.subr.mxu0 0.0
    %159 = vmatpush1.msra.mxu0 0.0
    %160 = vmatprep.subr.mxu0 0.0
    %161 = vmatpush1.msra.mxu0 0.0
    %162 = vmatprep.subr.mxu0 0.0
    %163 = vmatpush1.msra.mxu0 0.0
    %164 = vmatprep.subr.mxu0 0.0
    %165 = vmatpush1.msra.mxu0 0.0
    %166 = vmatprep.subr.mxu0 0.0
    %167 = vmatpush1.msra.mxu0 0.0
    %168 = vmatprep.subr.mxu0 0.0
    %169 = vmatpush1.msra.mxu0 0.0
    %170 = vmatprep.subr.mxu0 0.0
    %171 = vmatpush1.msra.mxu0 0.0
    %172 = vmatprep.subr.mxu0 0.0
    %173 = vmatpush1.msra.mxu0 0.0
    %174 = vmatprep.mubr.f32.mxu0 0.0
    %175 = vmatmul.mubr.f32.gmra.mrb[0].mxu0 %v101
    %v176 = vpop.f32.mrb[0].mxu0
    %v177 = vadd.f32 %v97, %v176
    %v178 = vpop.f32.mrb[0].mxu0
    %179 = vmatprep.mubr.f32.mxu0 0.0
    %180 = vmatmul.mubr.f32.gmra.mrb[0].mxu0 %v104
    %v181 = vpop.f32.mrb[0].mxu0
    %v182 = vadd.f32 %v97, %v181
    %v183 = vpop.f32.mrb[0].mxu0
    %184 = vdwg.mxu0
    %vm185 = vcmask 261120
    %v187 = vsel %vm185, 0.0, 0
    %189 = vmatprep.subr.mxu0 0.0
    %190 = vmatpush1.msra.mxu0 %v88
    %191 = vmatprep.subr.mxu0 0.0
    %192 = vmatpush1.msra.mxu0 %v89
    %193 = vmatprep.subr.mxu0 0.0
    %194 = vmatpush1.msra.mxu0 %v90
    %195 = vmatprep.subr.mxu0 0.0
    %196 = vmatpush1.msra.mxu0 %v91
    %197 = vmatprep.subr.mxu0 0.0
    %198 = vmatpush1.msra.mxu0 0.0
    %199 = vmatprep.subr.mxu0 0.0
    %200 = vmatpush1.msra.mxu0 0.0
    %201 = vmatprep.subr.mxu0 0.0
    %202 = vmatpush1.msra.mxu0 0.0
    %203 = vmatprep.subr.mxu0 0.0
    %204 = vmatpush1.msra.mxu0 0.0
    %205 = vmatprep.subr.mxu0 0.0
    %206 = vmatpush1.msra.mxu0 0.0
    %207 = vmatprep.subr.mxu0 0.0
    %208 = vmatpush1.msra.mxu0 0.0
    %209 = vmatprep.subr.mxu0 0.0
    %210 = vmatpush1.msra.mxu0 0.0
    %211 = vmatprep.subr.mxu0 0.0
    %212 = vmatpush1.msra.mxu0 0.0
    %213 = vmatprep.subr.mxu0 0.0
    %214 = vmatpush1.msra.mxu0 0.0
    %215 = vmatprep.subr.mxu0 0.0
    %216 = vmatpush1.msra.mxu0 0.0
    %217 = vmatprep.subr.mxu0 0.0
    %218 = vmatpush1.msra.mxu0 0.0
    %219 = vmatprep.subr.mxu0 0.0
    %220 = vmatpush1.msra.mxu0 0.0
    %221 = vmatprep.subr.mxu0 0.0
    %222 = vmatpush1.msra.mxu0 0.0
    %223 = vmatprep.subr.mxu0 0.0
    %224 = vmatpush1.msra.mxu0 0.0
    %225 = vmatprep.subr.mxu0 0.0
    %226 = vmatpush1.msra.mxu0 0.0
    %227 = vmatprep.subr.mxu0 0.0
    %228 = vmatpush1.msra.mxu0 0.0
    %229 = vmatprep.subr.mxu0 0.0
    %230 = vmatpush1.msra.mxu0 0.0
    %231 = vmatprep.subr.mxu0 0.0
    %232 = vmatpush1.msra.mxu0 0.0
    %233 = vmatprep.subr.mxu0 0.0
    %234 = vmatpush1.msra.mxu0 0.0
    %235 = vmatprep.subr.mxu0 0.0
    %236 = vmatpush1.msra.mxu0 0.0
    %237 = vmatprep.subr.mxu0 0.0
    %238 = vmatpush1.msra.mxu0 0.0
    %239 = vmatprep.subr.mxu0 0.0
    %240 = vmatpush1.msra.mxu0 0.0
    %241 = vmatprep.subr.mxu0 0.0
    %242 = vmatpush1.msra.mxu0 0.0
    %243 = vmatprep.subr.mxu0 0.0
    %244 = vmatpush1.msra.mxu0 0.0
    %245 = vmatprep.subr.mxu0 0.0
    %246 = vmatpush1.msra.mxu0 0.0
    %247 = vmatprep.subr.mxu0 0.0
    %248 = vmatpush1.msra.mxu0 0.0
    %249 = vmatprep.subr.mxu0 0.0
    %250 = vmatpush1.msra.mxu0 0.0
    %251 = vmatprep.subr.mxu0 0.0
    %252 = vmatpush1.msra.mxu0 0.0
    %253 = vmatprep.mubr.f32.mxu0 0.0
    %254 = vmatmul.mubr.f32.gmra.mrb[0].mxu0 %v187
    %v255 = vpop.f32.mrb[0].mxu0
    %v256 = vadd.f32 0.0, %v255
    %v257 = vpop.f32.mrb[0].mxu0
    %258 = vdwg.mxu0
    %v259 = vadd.f32 %v177, %v256
    %v260 = vxor.u32 %v259, 2147483648
    %v261 = vmul.f32 %v260, 1.442695
    %v262 = vpow.pop %v261
    %v263 = vadd.f32 %v262, 1.0
    %v264 = vrcp.pop %v263
    %v265 = vmul.f32 1.0, %v264
    %v266 = vtanh.pop %v259
    %v267 = vmul.f32 %v265, 0.0
    %269 = vrot.lane.b32.xlu0 %v266, 64
    %v270 = vpop.permute.xlu0 %269
    %v272 = vmul.f32 %v265, %v270
    %274 = vrot.lane.b32.xlu0 %v272, 32
    %v275 = vpop.permute.xlu0 %274
    %v277 = vadd.f32 %v267, %v275
    %v278 = vtanh.pop %v277
    %280 = vrot.lane.b32.xlu0 %v278, 64
    %v281 = vpop.permute.xlu0 %280
    %v283 = vmul.f32 %v265, %v281
    %285 = vrot.lane.b32.xlu0 %v283, 32
    %v286 = vpop.permute.xlu0 %285
    %v287 = vsel %vm185, %v286, 0
    %289 = vmatprep.subr.mxu0 0.0
    %290 = vmatpush1.msra.mxu0 %v88
    %291 = vmatprep.subr.mxu0 0.0
    %292 = vmatpush1.msra.mxu0 %v89
    %293 = vmatprep.subr.mxu0 0.0
    %294 = vmatpush1.msra.mxu0 %v90
    %295 = vmatprep.subr.mxu0 0.0
    %296 = vmatpush1.msra.mxu0 %v91
    %297 = vmatprep.subr.mxu0 0.0
    %298 = vmatpush1.msra.mxu0 0.0
    %299 = vmatprep.subr.mxu0 0.0
    %300 = vmatpush1.msra.mxu0 0.0
    %301 = vmatprep.subr.mxu0 0.0
    %302 = vmatpush1.msra.mxu0 0.0
    %303 = vmatprep.subr.mxu0 0.0
    %304 = vmatpush1.msra.mxu0 0.0
    %305 = vmatprep.subr.mxu0 0.0
    %306 = vmatpush1.msra.mxu0 0.0
    %307 = vmatprep.subr.mxu0 0.0
    %308 = vmatpush1.msra.mxu0 0.0
    %309 = vmatprep.subr.mxu0 0.0
    %310 = vmatpush1.msra.mxu0 0.0
    %311 = vmatprep.subr.mxu0 0.0
    %312 = vmatpush1.msra.mxu0 0.0
    %313 = vmatprep.subr.mxu0 0.0
    %314 = vmatpush1.msra.mxu0 0.0
    %315 = vmatprep.subr.mxu0 0.0
    %316 = vmatpush1.msra.mxu0 0.0
    %317 = vmatprep.subr.mxu0 0.0
    %318 = vmatpush1.msra.mxu0 0.0
    %319 = vmatprep.subr.mxu0 0.0
    %320 = vmatpush1.msra.mxu0 0.0
    %321 = vmatprep.subr.mxu0 0.0
    %322 = vmatpush1.msra.mxu0 0.0
    %323 = vmatprep.subr.mxu0 0.0
    %324 = vmatpush1.msra.mxu0 0.0
    %325 = vmatprep.subr.mxu0 0.0
    %326 = vmatpush1.msra.mxu0 0.0
    %327 = vmatprep.subr.mxu0 0.0
    %328 = vmatpush1.msra.mxu0 0.0
    %329 = vmatprep.subr.mxu0 0.0
    %330 = vmatpush1.msra.mxu0 0.0
    %331 = vmatprep.subr.mxu0 0.0
    %332 = vmatpush1.msra.mxu0 0.0
    %333 = vmatprep.subr.mxu0 0.0
    %334 = vmatpush1.msra.mxu0 0.0
    %335 = vmatprep.subr.mxu0 0.0
    %336 = vmatpush1.msra.mxu0 0.0
    %337 = vmatprep.subr.mxu0 0.0
    %338 = vmatpush1.msra.mxu0 0.0
    %339 = vmatprep.subr.mxu0 0.0
    %340 = vmatpush1.msra.mxu0 0.0
    %341 = vmatprep.subr.mxu0 0.0
    %342 = vmatpush1.msra.mxu0 0.0
    %343 = vmatprep.subr.mxu0 0.0
    %344 = vmatpush1.msra.mxu0 0.0
    %345 = vmatprep.subr.mxu0 0.0
    %346 = vmatpush1.msra.mxu0 0.0
    %347 = vmatprep.subr.mxu0 0.0
    %348 = vmatpush1.msra.mxu0 0.0
    %349 = vmatprep.subr.mxu0 0.0
    %350 = vmatpush1.msra.mxu0 0.0
    %351 = vmatprep.subr.mxu0 0.0
    %352 = vmatpush1.msra.mxu0 0.0
    %353 = vmatprep.mubr.f32.mxu0 0.0
    %354 = vmatmul.mubr.f32.gmra.mrb[0].mxu0 %v287
    %v355 = vpop.f32.mrb[0].mxu0
    %v356 = vadd.f32 0.0, %v355
    %v357 = vpop.f32.mrb[0].mxu0
    %358 = vdwg.mxu0
    %v360 = vrot.slane %v356, 6
    %v362 = vadd.f32 %v177, %v360
    %v363 = vxor.u32 %v362, 2147483648
    %v364 = vmul.f32 %v363, 1.442695
    %v365 = vpow.pop %v364
    %v366 = vadd.f32 %v365, 1.0
    %v367 = vrcp.pop %v366
    %v368 = vmul.f32 1.0, %v367
    %v369 = vtanh.pop %v362
    %v371 = vrot.slane %v277, 6
    %v373 = vmul.f32 %v368, %v371
    %375 = vrot.lane.b32.xlu0 %v369, 64
    %v376 = vpop.permute.xlu0 %375
    %v378 = vmul.f32 %v368, %v376
    %380 = vrot.lane.b32.xlu0 %v378, 32
    %v381 = vpop.permute.xlu0 %380
    %v383 = vadd.f32 %v373, %v381
    %v384 = vtanh.pop %v383
    %386 = vrot.lane.b32.xlu0 %v384, 64
    %v387 = vpop.permute.xlu0 %386
    %v389 = vmul.f32 %v368, %v387
    %v391 = vrot.slane %v389, 2
    %392 = vrot.lane.b32.xlu0 %v391, 32
    %v393 = vpop.permute.xlu0 %392
    %v394 = vsel %vm185, %v393, 0
    %396 = vmatprep.subr.mxu0 0.0
    %397 = vmatpush1.msra.mxu0 %v88
    %398 = vmatprep.subr.mxu0 0.0
    %399 = vmatpush1.msra.mxu0 %v89
    %400 = vmatprep.subr.mxu0 0.0
    %401 = vmatpush1.msra.mxu0 %v90
    %402 = vmatprep.subr.mxu0 0.0
    %403 = vmatpush1.msra.mxu0 %v91
    %404 = vmatprep.subr.mxu0 0.0
    %405 = vmatpush1.msra.mxu0 0.0
    %406 = vmatprep.subr.mxu0 0.0
    %407 = vmatpush1.msra.mxu0 0.0
    %408 = vmatprep.subr.mxu0 0.0
    %409 = vmatpush1.msra.mxu0 0.0
    %410 = vmatprep.subr.mxu0 0.0
    %411 = vmatpush1.msra.mxu0 0.0
    %412 = vmatprep.subr.mxu0 0.0
    %413 = vmatpush1.msra.mxu0 0.0
    %414 = vmatprep.subr.mxu0 0.0
    %415 = vmatpush1.msra.mxu0 0.0
    %416 = vmatprep.subr.mxu0 0.0
    %417 = vmatpush1.msra.mxu0 0.0
    %418 = vmatprep.subr.mxu0 0.0
    %419 = vmatpush1.msra.mxu0 0.0
    %420 = vmatprep.subr.mxu0 0.0
    %421 = vmatpush1.msra.mxu0 0.0
    %422 = vmatprep.subr.mxu0 0.0
    %423 = vmatpush1.msra.mxu0 0.0
    %424 = vmatprep.subr.mxu0 0.0
    %425 = vmatpush1.msra.mxu0 0.0
    %426 = vmatprep.subr.mxu0 0.0
    %427 = vmatpush1.msra.mxu0 0.0
    %428 = vmatprep.subr.mxu0 0.0
    %429 = vmatpush1.msra.mxu0 0.0
    %430 = vmatprep.subr.mxu0 0.0
    %431 = vmatpush1.msra.mxu0 0.0
    %432 = vmatprep.subr.mxu0 0.0
    %433 = vmatpush1.msra.mxu0 0.0
    %434 = vmatprep.subr.mxu0 0.0
    %435 = vmatpush1.msra.mxu0 0.0
    %436 = vmatprep.subr.mxu0 0.0
    %437 = vmatpush1.msra.mxu0 0.0
    %438 = vmatprep.subr.mxu0 0.0
    %439 = vmatpush1.msra.mxu0 0.0
    %440 = vmatprep.subr.mxu0 0.0
    %441 = vmatpush1.msra.mxu0 0.0
    %442 = vmatprep.subr.mxu0 0.0
    %443 = vmatpush1.msra.mxu0 0.0
    %444 = vmatprep.subr.mxu0 0.0
    %445 = vmatpush1.msra.mxu0 0.0
    %446 = vmatprep.subr.mxu0 0.0
    %447 = vmatpush1.msra.mxu0 0.0
    %448 = vmatprep.subr.mxu0 0.0
    %449 = vmatpush1.msra.mxu0 0.0
    %450 = vmatprep.subr.mxu0 0.0
    %451 = vmatpush1.msra.mxu0 0.0
    %452 = vmatprep.subr.mxu0 0.0
    %453 = vmatpush1.msra.mxu0 0.0
    %454 = vmatprep.subr.mxu0 0.0
    %455 = vmatpush1.msra.mxu0 0.0
    %456 = vmatprep.subr.mxu0 0.0
    %457 = vmatpush1.msra.mxu0 0.0
    %458 = vmatprep.subr.mxu0 0.0
    %459 = vmatpush1.msra.mxu0 0.0
    %460 = vmatprep.mubr.f32.mxu0 0.0
    %461 = vmatmul.mubr.f32.gmra.mrb[0].mxu0 %v394
    %v462 = vpop.f32.mrb[0].mxu0
    %v463 = vadd.f32 0.0, %v462
    %v464 = vpop.f32.mrb[0].mxu0
    %465 = vdwg.mxu0
    %v467 = vrot.slane %v463, 4
    %v469 = vadd.f32 %v177, %v467
    %v470 = vxor.u32 %v469, 2147483648
    %v471 = vmul.f32 %v470, 1.442695
    %v472 = vpow.pop %v471
    %v473 = vadd.f32 %v472, 1.0
    %v474 = vrcp.pop %v473
    %v475 = vmul.f32 1.0, %v474
    %v476 = vtanh.pop %v469
    %v478 = vrot.slane %v383, 6
    %v480 = vmul.f32 %v475, %v478
    %482 = vrot.lane.b32.xlu0 %v476, 64
    %v483 = vpop.permute.xlu0 %482
    %v485 = vmul.f32 %v475, %v483
    %487 = vrot.lane.b32.xlu0 %v485, 32
    %v488 = vpop.permute.xlu0 %487
    %v490 = vadd.f32 %v480, %v488
    %v491 = vtanh.pop %v490
    %493 = vrot.lane.b32.xlu0 %v491, 64
    %v494 = vpop.permute.xlu0 %493
    %v496 = vmul.f32 %v475, %v494
    %v498 = vrot.slane %v496, 4
    %499 = vrot.lane.b32.xlu0 %v498, 32
    %v500 = vpop.permute.xlu0 %499
    %v501 = vsel %vm185, %v500, 0
    %503 = vmatprep.subr.mxu0 0.0
    %504 = vmatpush1.msra.mxu0 %v88
    %505 = vmatprep.subr.mxu0 0.0
    %506 = vmatpush1.msra.mxu0 %v89
    %507 = vmatprep.subr.mxu0 0.0
    %508 = vmatpush1.msra.mxu0 %v90
    %509 = vmatprep.subr.mxu0 0.0
    %510 = vmatpush1.msra.mxu0 %v91
    %511 = vmatprep.subr.mxu0 0.0
    %512 = vmatpush1.msra.mxu0 0.0
    %513 = vmatprep.subr.mxu0 0.0
    %514 = vmatpush1.msra.mxu0 0.0
    %515 = vmatprep.subr.mxu0 0.0
    %516 = vmatpush1.msra.mxu0 0.0
    %517 = vmatprep.subr.mxu0 0.0
    %518 = vmatpush1.msra.mxu0 0.0
    %519 = vmatprep.subr.mxu0 0.0
    %520 = vmatpush1.msra.mxu0 0.0
    %521 = vmatprep.subr.mxu0 0.0
    %522 = vmatpush1.msra.mxu0 0.0
    %523 = vmatprep.subr.mxu0 0.0
    %524 = vmatpush1.msra.mxu0 0.0
    %525 = vmatprep.subr.mxu0 0.0
    %526 = vmatpush1.msra.mxu0 0.0
    %527 = vmatprep.subr.mxu0 0.0
    %528 = vmatpush1.msra.mxu0 0.0
    %529 = vmatprep.subr.mxu0 0.0
    %530 = vmatpush1.msra.mxu0 0.0
    %531 = vmatprep.subr.mxu0 0.0
    %532 = vmatpush1.msra.mxu0 0.0
    %533 = vmatprep.subr.mxu0 0.0
    %534 = vmatpush1.msra.mxu0 0.0
    %535 = vmatprep.subr.mxu0 0.0
    %536 = vmatpush1.msra.mxu0 0.0
    %537 = vmatprep.subr.mxu0 0.0
    %538 = vmatpush1.msra.mxu0 0.0
    %539 = vmatprep.subr.mxu0 0.0
    %540 = vmatpush1.msra.mxu0 0.0
    %541 = vmatprep.subr.mxu0 0.0
    %542 = vmatpush1.msra.mxu0 0.0
    %543 = vmatprep.subr.mxu0 0.0
    %544 = vmatpush1.msra.mxu0 0.0
    %545 = vmatprep.subr.mxu0 0.0
    %546 = vmatpush1.msra.mxu0 0.0
    %547 = vmatprep.subr.mxu0 0.0
    %548 = vmatpush1.msra.mxu0 0.0
    %549 = vmatprep.subr.mxu0 0.0
    %550 = vmatpush1.msra.mxu0 0.0
    %551 = vmatprep.subr.mxu0 0.0
    %552 = vmatpush1.msra.mxu0 0.0
    %553 = vmatprep.subr.mxu0 0.0
    %554 = vmatpush1.msra.mxu0 0.0
    %555 = vmatprep.subr.mxu0 0.0
    %556 = vmatpush1.msra.mxu0 0.0
    %557 = vmatprep.subr.mxu0 0.0
    %558 = vmatpush1.msra.mxu0 0.0
    %559 = vmatprep.subr.mxu0 0.0
    %560 = vmatpush1.msra.mxu0 0.0
    %561 = vmatprep.subr.mxu0 0.0
    %562 = vmatpush1.msra.mxu0 0.0
    %563 = vmatprep.subr.mxu0 0.0
    %564 = vmatpush1.msra.mxu0 0.0
    %565 = vmatprep.subr.mxu0 0.0
    %566 = vmatpush1.msra.mxu0 0.0
    %567 = vmatprep.mubr.f32.mxu0 0.0
    %568 = vmatmul.mubr.f32.gmra.mrb[0].mxu0 %v501
    %v569 = vpop.f32.mrb[0].mxu0
    %v570 = vadd.f32 0.0, %v569
    %v571 = vpop.f32.mrb[0].mxu0
    %572 = vdwg.mxu0
    %v574 = vrot.slane %v570, 2
    %v576 = vadd.f32 %v177, %v574
    %v577 = vxor.u32 %v576, 2147483648
    %v578 = vmul.f32 %v577, 1.442695
    %v579 = vpow.pop %v578
    %v580 = vadd.f32 %v579, 1.0
    %v581 = vrcp.pop %v580
    %v582 = vmul.f32 1.0, %v581
    %v583 = vtanh.pop %v576
    %v585 = vrot.slane %v490, 6
    %v587 = vmul.f32 %v582, %v585
    %589 = vrot.lane.b32.xlu0 %v583, 64
    %v590 = vpop.permute.xlu0 %589
    %v592 = vmul.f32 %v582, %v590
    %594 = vrot.lane.b32.xlu0 %v592, 32
    %v595 = vpop.permute.xlu0 %594
    %v597 = vadd.f32 %v587, %v595
    %v598 = vtanh.pop %v597
    %600 = vrot.lane.b32.xlu0 %v598, 64
    %v601 = vpop.permute.xlu0 %600
    %v603 = vmul.f32 %v582, %v601
    %v605 = vrot.slane %v603, 6
    %606 = vrot.lane.b32.xlu0 %v605, 32
    %v607 = vpop.permute.xlu0 %606
    %v608 = vsel %vm185, %v607, 0
    %610 = vmatprep.subr.mxu0 0.0
    %611 = vmatpush1.msra.mxu0 %v88
    %612 = vmatprep.subr.mxu0 0.0
    %613 = vmatpush1.msra.mxu0 %v89
    %614 = vmatprep.subr.mxu0 0.0
    %615 = vmatpush1.msra.mxu0 %v90
    %616 = vmatprep.subr.mxu0 0.0
    %617 = vmatpush1.msra.mxu0 %v91
    %618 = vmatprep.subr.mxu0 0.0
    %619 = vmatpush1.msra.mxu0 0.0
    %620 = vmatprep.subr.mxu0 0.0
    %621 = vmatpush1.msra.mxu0 0.0
    %622 = vmatprep.subr.mxu0 0.0
    %623 = vmatpush1.msra.mxu0 0.0
    %624 = vmatprep.subr.mxu0 0.0
    %625 = vmatpush1.msra.mxu0 0.0
    %626 = vmatprep.subr.mxu0 0.0
    %627 = vmatpush1.msra.mxu0 0.0
    %628 = vmatprep.subr.mxu0 0.0
    %629 = vmatpush1.msra.mxu0 0.0
    %630 = vmatprep.subr.mxu0 0.0
    %631 = vmatpush1.msra.mxu0 0.0
    %632 = vmatprep.subr.mxu0 0.0
    %633 = vmatpush1.msra.mxu0 0.0
    %634 = vmatprep.subr.mxu0 0.0
    %635 = vmatpush1.msra.mxu0 0.0
    %636 = vmatprep.subr.mxu0 0.0
    %637 = vmatpush1.msra.mxu0 0.0
    %638 = vmatprep.subr.mxu0 0.0
    %639 = vmatpush1.msra.mxu0 0.0
    %640 = vmatprep.subr.mxu0 0.0
    %641 = vmatpush1.msra.mxu0 0.0
    %642 = vmatprep.subr.mxu0 0.0
    %643 = vmatpush1.msra.mxu0 0.0
    %644 = vmatprep.subr.mxu0 0.0
    %645 = vmatpush1.msra.mxu0 0.0
    %646 = vmatprep.subr.mxu0 0.0
    %647 = vmatpush1.msra.mxu0 0.0
    %648 = vmatprep.subr.mxu0 0.0
    %649 = vmatpush1.msra.mxu0 0.0
    %650 = vmatprep.subr.mxu0 0.0
    %651 = vmatpush1.msra.mxu0 0.0
    %652 = vmatprep.subr.mxu0 0.0
    %653 = vmatpush1.msra.mxu0 0.0
    %654 = vmatprep.subr.mxu0 0.0
    %655 = vmatpush1.msra.mxu0 0.0
    %656 = vmatprep.subr.mxu0 0.0
    %657 = vmatpush1.msra.mxu0 0.0
    %658 = vmatprep.subr.mxu0 0.0
    %659 = vmatpush1.msra.mxu0 0.0
    %660 = vmatprep.subr.mxu0 0.0
    %661 = vmatpush1.msra.mxu0 0.0
    %662 = vmatprep.subr.mxu0 0.0
    %663 = vmatpush1.msra.mxu0 0.0
    %664 = vmatprep.subr.mxu0 0.0
    %665 = vmatpush1.msra.mxu0 0.0
    %666 = vmatprep.subr.mxu0 0.0
    %667 = vmatpush1.msra.mxu0 0.0
    %668 = vmatprep.subr.mxu0 0.0
    %669 = vmatpush1.msra.mxu0 0.0
    %670 = vmatprep.subr.mxu0 0.0
    %671 = vmatpush1.msra.mxu0 0.0
    %672 = vmatprep.subr.mxu0 0.0
    %673 = vmatpush1.msra.mxu0 0.0
    %674 = vmatprep.mubr.f32.mxu0 0.0
    %675 = vmatmul.mubr.f32.gmra.mrb[0].mxu0 %v608
    %v676 = vpop.f32.mrb[0].mxu0
    %v677 = vadd.f32 0.0, %v676
    %v678 = vpop.f32.mrb[0].mxu0
    %679 = vdwg.mxu0
    %v680 = vadd.f32 %v182, %v677
    %v681 = vxor.u32 %v680, 2147483648
    %v682 = vmul.f32 %v681, 1.442695
    %v683 = vpow.pop %v682
    %v684 = vadd.f32 %v683, 1.0
    %v685 = vrcp.pop %v684
    %v686 = vmul.f32 1.0, %v685
    %v687 = vtanh.pop %v680
    %v689 = vrot.slane %v597, 6
    %v691 = vmul.f32 %v686, %v689
    %693 = vrot.lane.b32.xlu0 %v687, 64
    %v694 = vpop.permute.xlu0 %693
    %v696 = vmul.f32 %v686, %v694
    %698 = vrot.lane.b32.xlu0 %v696, 32
    %v699 = vpop.permute.xlu0 %698
    %v701 = vadd.f32 %v691, %v699
    %v702 = vtanh.pop %v701
    %704 = vrot.lane.b32.xlu0 %v702, 64
    %v705 = vpop.permute.xlu0 %704
    %v707 = vmul.f32 %v686, %v705
    %709 = vrot.lane.b32.xlu0 %v707, 32
    %v710 = vpop.permute.xlu0 %709
    %v711 = vsel %vm185, %v710, 0
    %713 = vmatprep.subr.mxu0 0.0
    %714 = vmatpush1.msra.mxu0 %v88
    %715 = vmatprep.subr.mxu0 0.0
    %716 = vmatpush1.msra.mxu0 %v89
    %717 = vmatprep.subr.mxu0 0.0
    %718 = vmatpush1.msra.mxu0 %v90
    %719 = vmatprep.subr.mxu0 0.0
    %720 = vmatpush1.msra.mxu0 %v91
    %721 = vmatprep.subr.mxu0 0.0
    %722 = vmatpush1.msra.mxu0 0.0
    %723 = vmatprep.subr.mxu0 0.0
    %724 = vmatpush1.msra.mxu0 0.0
    %725 = vmatprep.subr.mxu0 0.0
    %726 = vmatpush1.msra.mxu0 0.0
    %727 = vmatprep.subr.mxu0 0.0
    %728 = vmatpush1.msra.mxu0 0.0
    %729 = vmatprep.subr.mxu0 0.0
    %730 = vmatpush1.msra.mxu0 0.0
    %731 = vmatprep.subr.mxu0 0.0
    %732 = vmatpush1.msra.mxu0 0.0
    %733 = vmatprep.subr.mxu0 0.0
    %734 = vmatpush1.msra.mxu0 0.0
    %735 = vmatprep.subr.mxu0 0.0
    %736 = vmatpush1.msra.mxu0 0.0
    %737 = vmatprep.subr.mxu0 0.0
    %738 = vmatpush1.msra.mxu0 0.0
    %739 = vmatprep.subr.mxu0 0.0
    %740 = vmatpush1.msra.mxu0 0.0
    %741 = vmatprep.subr.mxu0 0.0
    %742 = vmatpush1.msra.mxu0 0.0
    %743 = vmatprep.subr.mxu0 0.0
    %744 = vmatpush1.msra.mxu0 0.0
    %745 = vmatprep.subr.mxu0 0.0
    %746 = vmatpush1.msra.mxu0 0.0
    %747 = vmatprep.subr.mxu0 0.0
    %748 = vmatpush1.msra.mxu0 0.0
    %749 = vmatprep.subr.mxu0 0.0
    %750 = vmatpush1.msra.mxu0 0.0
    %751 = vmatprep.subr.mxu0 0.0
    %752 = vmatpush1.msra.mxu0 0.0
    %753 = vmatprep.subr.mxu0 0.0
    %754 = vmatpush1.msra.mxu0 0.0
    %755 = vmatprep.subr.mxu0 0.0
    %756 = vmatpush1.msra.mxu0 0.0
    %757 = vmatprep.subr.mxu0 0.0
    %758 = vmatpush1.msra.mxu0 0.0
    %759 = vmatprep.subr.mxu0 0.0
    %760 = vmatpush1.msra.mxu0 0.0
    %761 = vmatprep.subr.mxu0 0.0
    %762 = vmatpush1.msra.mxu0 0.0
    %763 = vmatprep.subr.mxu0 0.0
    %764 = vmatpush1.msra.mxu0 0.0
    %765 = vmatprep.subr.mxu0 0.0
    %766 = vmatpush1.msra.mxu0 0.0
    %767 = vmatprep.subr.mxu0 0.0
    %768 = vmatpush1.msra.mxu0 0.0
    %769 = vmatprep.subr.mxu0 0.0
    %770 = vmatpush1.msra.mxu0 0.0
    %771 = vmatprep.subr.mxu0 0.0
    %772 = vmatpush1.msra.mxu0 0.0
    %773 = vmatprep.subr.mxu0 0.0
    %774 = vmatpush1.msra.mxu0 0.0
    %775 = vmatprep.subr.mxu0 0.0
    %776 = vmatpush1.msra.mxu0 0.0
    %777 = vmatprep.mubr.f32.mxu0 0.0
    %778 = vmatmul.mubr.f32.gmra.mrb[0].mxu0 %v711
    %v779 = vpop.f32.mrb[0].mxu0
    %v780 = vadd.f32 0.0, %v779
    %v781 = vpop.f32.mrb[0].mxu0
    %782 = vdwg.mxu0
    %v784 = vrot.slane %v780, 6
    %v786 = vadd.f32 %v182, %v784
    %v787 = vxor.u32 %v786, 2147483648
    %v788 = vmul.f32 %v787, 1.442695
    %v789 = vpow.pop %v788
    %v790 = vadd.f32 %v789, 1.0
    %v791 = vrcp.pop %v790
    %v792 = vmul.f32 1.0, %v791
    %v793 = vtanh.pop %v786
    %v795 = vrot.slane %v701, 6
    %v797 = vmul.f32 %v792, %v795
    %799 = vrot.lane.b32.xlu0 %v793, 64
    %v800 = vpop.permute.xlu0 %799
    %v802 = vmul.f32 %v792, %v800
    %804 = vrot.lane.b32.xlu0 %v802, 32
    %v805 = vpop.permute.xlu0 %804
    %v807 = vadd.f32 %v797, %v805
    %v808 = vtanh.pop %v807
    %810 = vrot.lane.b32.xlu0 %v808, 64
    %v811 = vpop.permute.xlu0 %810
    %v813 = vmul.f32 %v792, %v811
    %v815 = vrot.slane %v813, 2
    %816 = vrot.lane.b32.xlu0 %v815, 32
    %v817 = vpop.permute.xlu0 %816
    %v818 = vsel %vm185, %v817, 0
    %820 = vmatprep.subr.mxu0 0.0
    %821 = vmatpush1.msra.mxu0 %v88
    %822 = vmatprep.subr.mxu0 0.0
    %823 = vmatpush1.msra.mxu0 %v89
    %824 = vmatprep.subr.mxu0 0.0
    %825 = vmatpush1.msra.mxu0 %v90
    %826 = vmatprep.subr.mxu0 0.0
    %827 = vmatpush1.msra.mxu0 %v91
    %828 = vmatprep.subr.mxu0 0.0
    %829 = vmatpush1.msra.mxu0 0.0
    %830 = vmatprep.subr.mxu0 0.0
    %831 = vmatpush1.msra.mxu0 0.0
    %832 = vmatprep.subr.mxu0 0.0
    %833 = vmatpush1.msra.mxu0 0.0
    %834 = vmatprep.subr.mxu0 0.0
    %835 = vmatpush1.msra.mxu0 0.0
    %836 = vmatprep.subr.mxu0 0.0
    %837 = vmatpush1.msra.mxu0 0.0
    %838 = vmatprep.subr.mxu0 0.0
    %839 = vmatpush1.msra.mxu0 0.0
    %840 = vmatprep.subr.mxu0 0.0
    %841 = vmatpush1.msra.mxu0 0.0
    %842 = vmatprep.subr.mxu0 0.0
    %843 = vmatpush1.msra.mxu0 0.0
    %844 = vmatprep.subr.mxu0 0.0
    %845 = vmatpush1.msra.mxu0 0.0
    %846 = vmatprep.subr.mxu0 0.0
    %847 = vmatpush1.msra.mxu0 0.0
    %848 = vmatprep.subr.mxu0 0.0
    %849 = vmatpush1.msra.mxu0 0.0
    %850 = vmatprep.subr.mxu0 0.0
    %851 = vmatpush1.msra.mxu0 0.0
    %852 = vmatprep.subr.mxu0 0.0
    %853 = vmatpush1.msra.mxu0 0.0
    %854 = vmatprep.subr.mxu0 0.0
    %855 = vmatpush1.msra.mxu0 0.0
    %856 = vmatprep.subr.mxu0 0.0
    %857 = vmatpush1.msra.mxu0 0.0
    %858 = vmatprep.subr.mxu0 0.0
    %859 = vmatpush1.msra.mxu0 0.0
    %860 = vmatprep.subr.mxu0 0.0
    %861 = vmatpush1.msra.mxu0 0.0
    %862 = vmatprep.subr.mxu0 0.0
    %863 = vmatpush1.msra.mxu0 0.0
    %864 = vmatprep.subr.mxu0 0.0
    %865 = vmatpush1.msra.mxu0 0.0
    %866 = vmatprep.subr.mxu0 0.0
    %867 = vmatpush1.msra.mxu0 0.0
    %868 = vmatprep.subr.mxu0 0.0
    %869 = vmatpush1.msra.mxu0 0.0
    %870 = vmatprep.subr.mxu0 0.0
    %871 = vmatpush1.msra.mxu0 0.0
    %872 = vmatprep.subr.mxu0 0.0
    %873 = vmatpush1.msra.mxu0 0.0
    %874 = vmatprep.subr.mxu0 0.0
    %875 = vmatpush1.msra.mxu0 0.0
    %876 = vmatprep.subr.mxu0 0.0
    %877 = vmatpush1.msra.mxu0 0.0
    %878 = vmatprep.subr.mxu0 0.0
    %879 = vmatpush1.msra.mxu0 0.0
    %880 = vmatprep.subr.mxu0 0.0
    %881 = vmatpush1.msra.mxu0 0.0
    %882 = vmatprep.subr.mxu0 0.0
    %883 = vmatpush1.msra.mxu0 0.0
    %884 = vmatprep.mubr.f32.mxu0 0.0
    %885 = vmatmul.mubr.f32.gmra.mrb[0].mxu0 %v818
    %v886 = vpop.f32.mrb[0].mxu0
    %v887 = vadd.f32 0.0, %v886
    %v888 = vpop.f32.mrb[0].mxu0
    %889 = vdwg.mxu0
    %v891 = vrot.slane %v887, 4
    %v893 = vadd.f32 %v182, %v891
    %v894 = vxor.u32 %v893, 2147483648
    %v895 = vmul.f32 %v894, 1.442695
    %v896 = vpow.pop %v895
    %v897 = vadd.f32 %v896, 1.0
    %v898 = vrcp.pop %v897
    %v899 = vmul.f32 1.0, %v898
    %v900 = vtanh.pop %v893
    %v902 = vrot.slane %v807, 6
    %v904 = vmul.f32 %v899, %v902
    %906 = vrot.lane.b32.xlu0 %v900, 64
    %v907 = vpop.permute.xlu0 %906
    %v909 = vmul.f32 %v899, %v907
    %911 = vrot.lane.b32.xlu0 %v909, 32
    %v912 = vpop.permute.xlu0 %911
    %v914 = vadd.f32 %v904, %v912
    %v915 = vtanh.pop %v914
    %917 = vrot.lane.b32.xlu0 %v915, 64
    %v918 = vpop.permute.xlu0 %917
    %v920 = vmul.f32 %v899, %v918
    %v922 = vrot.slane %v920, 4
    %923 = vrot.lane.b32.xlu0 %v922, 32
    %v924 = vpop.permute.xlu0 %923
    %v925 = vsel %vm185, %v924, 0
    %927 = vmatprep.subr.mxu0 0.0
    %928 = vmatpush1.msra.mxu0 %v88
    %929 = vmatprep.subr.mxu0 0.0
    %930 = vmatpush1.msra.mxu0 %v89
    %931 = vmatprep.subr.mxu0 0.0
    %932 = vmatpush1.msra.mxu0 %v90
    %933 = vmatprep.subr.mxu0 0.0
    %934 = vmatpush1.msra.mxu0 %v91
    %935 = vmatprep.subr.mxu0 0.0
    %936 = vmatpush1.msra.mxu0 0.0
    %937 = vmatprep.subr.mxu0 0.0
    %938 = vmatpush1.msra.mxu0 0.0
    %939 = vmatprep.subr.mxu0 0.0
    %940 = vmatpush1.msra.mxu0 0.0
    %941 = vmatprep.subr.mxu0 0.0
    %942 = vmatpush1.msra.mxu0 0.0
    %943 = vmatprep.subr.mxu0 0.0
    %944 = vmatpush1.msra.mxu0 0.0
    %945 = vmatprep.subr.mxu0 0.0
    %946 = vmatpush1.msra.mxu0 0.0
    %947 = vmatprep.subr.mxu0 0.0
    %948 = vmatpush1.msra.mxu0 0.0
    %949 = vmatprep.subr.mxu0 0.0
    %950 = vmatpush1.msra.mxu0 0.0
    %951 = vmatprep.subr.mxu0 0.0
    %952 = vmatpush1.msra.mxu0 0.0
    %953 = vmatprep.subr.mxu0 0.0
    %954 = vmatpush1.msra.mxu0 0.0
    %955 = vmatprep.subr.mxu0 0.0
    %956 = vmatpush1.msra.mxu0 0.0
    %957 = vmatprep.subr.mxu0 0.0
    %958 = vmatpush1.msra.mxu0 0.0
    %959 = vmatprep.subr.mxu0 0.0
    %960 = vmatpush1.msra.mxu0 0.0
    %961 = vmatprep.subr.mxu0 0.0
    %962 = vmatpush1.msra.mxu0 0.0
    %963 = vmatprep.subr.mxu0 0.0
    %964 = vmatpush1.msra.mxu0 0.0
    %965 = vmatprep.subr.mxu0 0.0
    %966 = vmatpush1.msra.mxu0 0.0
    %967 = vmatprep.subr.mxu0 0.0
    %968 = vmatpush1.msra.mxu0 0.0
    %969 = vmatprep.subr.mxu0 0.0
    %970 = vmatpush1.msra.mxu0 0.0
    %971 = vmatprep.subr.mxu0 0.0
    %972 = vmatpush1.msra.mxu0 0.0
    %973 = vmatprep.subr.mxu0 0.0
    %974 = vmatpush1.msra.mxu0 0.0
    %975 = vmatprep.subr.mxu0 0.0
    %976 = vmatpush1.msra.mxu0 0.0
    %977 = vmatprep.subr.mxu0 0.0
    %978 = vmatpush1.msra.mxu0 0.0
    %979 = vmatprep.subr.mxu0 0.0
    %980 = vmatpush1.msra.mxu0 0.0
    %981 = vmatprep.subr.mxu0 0.0
    %982 = vmatpush1.msra.mxu0 0.0
    %983 = vmatprep.subr.mxu0 0.0
    %984 = vmatpush1.msra.mxu0 0.0
    %985 = vmatprep.subr.mxu0 0.0
    %986 = vmatpush1.msra.mxu0 0.0
    %987 = vmatprep.subr.mxu0 0.0
    %988 = vmatpush1.msra.mxu0 0.0
    %989 = vmatprep.subr.mxu0 0.0
    %990 = vmatpush1.msra.mxu0 0.0
    %991 = vmatprep.mubr.f32.mxu0 0.0
    %992 = vmatmul.mubr.f32.gmra.mrb[0].mxu0 %v925
    %v993 = vpop.f32.mrb[0].mxu0
    %v994 = vadd.f32 0.0, %v993
    %v995 = vpop.f32.mrb[0].mxu0
    %996 = vdwg.mxu0
    %v998 = vrot.slane %v994, 2
    %v1000 = vadd.f32 %v182, %v998
    %v1001 = vxor.u32 %v1000, 2147483648
    %v1002 = vmul.f32 %v1001, 1.442695
    %v1003 = vpow.pop %v1002
    %v1004 = vadd.f32 %v1003, 1.0
    %v1005 = vrcp.pop %v1004
    %v1006 = vmul.f32 1.0, %v1005
    %v1007 = vtanh.pop %v1000
    %v1009 = vrot.slane %v914, 6
    %v1011 = vmul.f32 %v1006, %v1009
    %1013 = vrot.lane.b32.xlu0 %v1007, 64
    %v1014 = vpop.permute.xlu0 %1013
    %v1016 = vmul.f32 %v1006, %v1014
    %1018 = vrot.lane.b32.xlu0 %v1016, 32
    %v1019 = vpop.permute.xlu0 %1018
    %v1021 = vadd.f32 %v1011, %v1019
    %v1022 = vtanh.pop %v1021
    %1024 = vrot.lane.b32.xlu0 %v1022, 64
    %v1025 = vpop.permute.xlu0 %1024
    %v1027 = vmul.f32 %v1006, %v1025
    %v1028 = vsel %vm106, %v283, %v389
    %vm1029 = vcmask 1043456
    %v1030 = vsel %vm1029, %v1028, %v496
    %vm1031 = vcmask 1045504
    %v1032 = vsel %vm1031, %v1030, %v603
    %v1033 = vsel %vm106, %v707, %v813
    %v1034 = vsel %vm1029, %v1033, %v920
    %v1035 = vsel %vm1031, %v1034, %v1027
    %v1036 = vld [vmem:[#allocation5] sm:$0xff]
    %v1037 = vld [vmem:[#allocation5 + $0x8] sm:$0xff]
    %v1038 = vld [vmem:[#allocation5 + $0x10] sm:$0xff]
    %v1039 = vld [vmem:[#allocation5 + $0x18] sm:$0xff]
    %v1040 = vld [vmem:[#allocation7] sm:$0xff]
    %v1041 = vld [vmem:[#allocation7 + $0x8] sm:$0xff]
    %v1042 = vld [vmem:[#allocation7 + $0x10] sm:$0xff]
    %v1043 = vld [vmem:[#allocation7 + $0x18] sm:$0xff]
    %v1044 = vld [vmem:[%s7] sm:$0x1]
    %v1046 = vlaneseq
    %v1047 = vshrl.u32 %v1046, 7
    %v1048 = vsub.s32 0, %v1047
    %v1049 = vrot.slane %v1044, %v1048
    %1053 = vrot.lane.b32.xlu0 %v1032, 32
    %v1054 = vpop.permute.xlu0 %1053
    %1055 = vrot.lane.b32.xlu0 %v1035, 32
    %v1056 = vpop.permute.xlu0 %1055
    %v1057 = vsel %vm185, %v1054, 0
    %v1059 = vsel %vm185, %v1056, 0
    %1061 = vmatprep.subr.mxu0 0.0
    %1062 = vmatpush1.msra.mxu0 %v1036
    %1063 = vmatprep.subr.mxu0 0.0
    %1064 = vmatpush1.msra.mxu0 %v1037
    %1065 = vmatprep.subr.mxu0 0.0
    %1066 = vmatpush1.msra.mxu0 %v1038
    %1067 = vmatprep.subr.mxu0 0.0
    %1068 = vmatpush1.msra.mxu0 %v1039
    %1069 = vmatprep.subr.mxu0 0.0
    %1070 = vmatpush1.msra.mxu0 0.0
    %1071 = vmatprep.subr.mxu0 0.0
    %1072 = vmatpush1.msra.mxu0 0.0
    %1073 = vmatprep.subr.mxu0 0.0
    %1074 = vmatpush1.msra.mxu0 0.0
    %1075 = vmatprep.subr.mxu0 0.0
    %1076 = vmatpush1.msra.mxu0 0.0
    %1077 = vmatprep.subr.mxu0 0.0
    %1078 = vmatpush1.msra.mxu0 0.0
    %1079 = vmatprep.subr.mxu0 0.0
    %1080 = vmatpush1.msra.mxu0 0.0
    %1081 = vmatprep.subr.mxu0 0.0
    %1082 = vmatpush1.msra.mxu0 0.0
    %1083 = vmatprep.subr.mxu0 0.0
    %1084 = vmatpush1.msra.mxu0 0.0
    %1085 = vmatprep.subr.mxu0 0.0
    %1086 = vmatpush1.msra.mxu0 0.0
    %1087 = vmatprep.subr.mxu0 0.0
    %1088 = vmatpush1.msra.mxu0 0.0
    %1089 = vmatprep.subr.mxu0 0.0
    %1090 = vmatpush1.msra.mxu0 0.0
    %1091 = vmatprep.subr.mxu0 0.0
    %1092 = vmatpush1.msra.mxu0 0.0
    %1093 = vmatprep.subr.mxu0 0.0
    %1094 = vmatpush1.msra.mxu0 0.0
    %1095 = vmatprep.subr.mxu0 0.0
    %1096 = vmatpush1.msra.mxu0 0.0
    %1097 = vmatprep.subr.mxu0 0.0
    %1098 = vmatpush1.msra.mxu0 0.0
    %1099 = vmatprep.subr.mxu0 0.0
    %1100 = vmatpush1.msra.mxu0 0.0
    %1101 = vmatprep.subr.mxu0 0.0
    %1102 = vmatpush1.msra.mxu0 0.0
    %1103 = vmatprep.subr.mxu0 0.0
    %1104 = vmatpush1.msra.mxu0 0.0
    %1105 = vmatprep.subr.mxu0 0.0
    %1106 = vmatpush1.msra.mxu0 0.0
    %1107 = vmatprep.subr.mxu0 0.0
    %1108 = vmatpush1.msra.mxu0 0.0
    %1109 = vmatprep.subr.mxu0 0.0
    %1110 = vmatpush1.msra.mxu0 0.0
    %1111 = vmatprep.subr.mxu0 0.0
    %1112 = vmatpush1.msra.mxu0 0.0
    %1113 = vmatprep.subr.mxu0 0.0
    %1114 = vmatpush1.msra.mxu0 0.0
    %1115 = vmatprep.subr.mxu0 0.0
    %1116 = vmatpush1.msra.mxu0 0.0
    %1117 = vmatprep.subr.mxu0 0.0
    %1118 = vmatpush1.msra.mxu0 0.0
    %1119 = vmatprep.subr.mxu0 0.0
    %1120 = vmatpush1.msra.mxu0 0.0
    %1121 = vmatprep.subr.mxu0 0.0
    %1122 = vmatpush1.msra.mxu0 0.0
    %1123 = vmatprep.subr.mxu0 0.0
    %1124 = vmatpush1.msra.mxu0 0.0
    %1125 = vmatprep.mubr.f32.mxu0 0.0
    %1126 = vmatmul.mubr.f32.gmra.mrb[0].mxu0 %v1057
    %v1127 = vpop.f32.mrb[0].mxu0
    %v1128 = vadd.f32 %v1049, %v1127
    %v1129 = vpop.f32.mrb[0].mxu0
    %1130 = vmatprep.mubr.f32.mxu0 0.0
    %1131 = vmatmul.mubr.f32.gmra.mrb[0].mxu0 %v1059
    %v1132 = vpop.f32.mrb[0].mxu0
    %v1133 = vadd.f32 %v1049, %v1132
    %v1134 = vpop.f32.mrb[0].mxu0
    %1135 = vdwg.mxu0
    %1136 = vmatprep.subr.mxu0 0.0
    %1137 = vmatpush1.msra.mxu0 %v1040
    %1138 = vmatprep.subr.mxu0 0.0
    %1139 = vmatpush1.msra.mxu0 %v1041
    %1140 = vmatprep.subr.mxu0 0.0
    %1141 = vmatpush1.msra.mxu0 %v1042
    %1142 = vmatprep.subr.mxu0 0.0
    %1143 = vmatpush1.msra.mxu0 %v1043
    %1144 = vmatprep.subr.mxu0 0.0
    %1145 = vmatpush1.msra.mxu0 0.0
    %1146 = vmatprep.subr.mxu0 0.0
    %1147 = vmatpush1.msra.mxu0 0.0
    %1148 = vmatprep.subr.mxu0 0.0
    %1149 = vmatpush1.msra.mxu0 0.0
    %1150 = vmatprep.subr.mxu0 0.0
    %1151 = vmatpush1.msra.mxu0 0.0
    %1152 = vmatprep.subr.mxu0 0.0
    %1153 = vmatpush1.msra.mxu0 0.0
    %1154 = vmatprep.subr.mxu0 0.0
    %1155 = vmatpush1.msra.mxu0 0.0
    %1156 = vmatprep.subr.mxu0 0.0
    %1157 = vmatpush1.msra.mxu0 0.0
    %1158 = vmatprep.subr.mxu0 0.0
    %1159 = vmatpush1.msra.mxu0 0.0
    %1160 = vmatprep.subr.mxu0 0.0
    %1161 = vmatpush1.msra.mxu0 0.0
    %1162 = vmatprep.subr.mxu0 0.0
    %1163 = vmatpush1.msra.mxu0 0.0
    %1164 = vmatprep.subr.mxu0 0.0
    %1165 = vmatpush1.msra.mxu0 0.0
    %1166 = vmatprep.subr.mxu0 0.0
    %1167 = vmatpush1.msra.mxu0 0.0
    %1168 = vmatprep.subr.mxu0 0.0
    %1169 = vmatpush1.msra.mxu0 0.0
    %1170 = vmatprep.subr.mxu0 0.0
    %1171 = vmatpush1.msra.mxu0 0.0
    %1172 = vmatprep.subr.mxu0 0.0
    %1173 = vmatpush1.msra.mxu0 0.0
    %1174 = vmatprep.subr.mxu0 0.0
    %1175 = vmatpush1.msra.mxu0 0.0
    %1176 = vmatprep.subr.mxu0 0.0
    %1177 = vmatpush1.msra.mxu0 0.0
    %1178 = vmatprep.subr.mxu0 0.0
    %1179 = vmatpush1.msra.mxu0 0.0
    %1180 = vmatprep.subr.mxu0 0.0
    %1181 = vmatpush1.msra.mxu0 0.0
    %1182 = vmatprep.subr.mxu0 0.0
    %1183 = vmatpush1.msra.mxu0 0.0
    %1184 = vmatprep.subr.mxu0 0.0
    %1185 = vmatpush1.msra.mxu0 0.0
    %1186 = vmatprep.subr.mxu0 0.0
    %1187 = vmatpush1.msra.mxu0 0.0
    %1188 = vmatprep.subr.mxu0 0.0
    %1189 = vmatpush1.msra.mxu0 0.0
    %1190 = vmatprep.subr.mxu0 0.0
    %1191 = vmatpush1.msra.mxu0 0.0
    %1192 = vmatprep.subr.mxu0 0.0
    %1193 = vmatpush1.msra.mxu0 0.0
    %1194 = vmatprep.subr.mxu0 0.0
    %1195 = vmatpush1.msra.mxu0 0.0
    %1196 = vmatprep.subr.mxu0 0.0
    %1197 = vmatpush1.msra.mxu0 0.0
    %1198 = vmatprep.subr.mxu0 0.0
    %1199 = vmatpush1.msra.mxu0 0.0
    %1200 = vmatprep.mubr.f32.mxu0 0.0
    %1201 = vmatmul.mubr.f32.gmra.mrb[0].mxu0 %v187
    %v1202 = vpop.f32.mrb[0].mxu0
    %v1203 = vadd.f32 0.0, %v1202
    %v1204 = vpop.f32.mrb[0].mxu0
    %1205 = vdwg.mxu0
    %v1206 = vadd.f32 %v1128, %v1203
    %v1207 = vxor.u32 %v1206, 2147483648
    %v1208 = vmul.f32 %v1207, 1.442695
    %v1209 = vpow.pop %v1208
    %v1210 = vadd.f32 %v1209, 1.0
    %v1211 = vrcp.pop %v1210
    %v1212 = vmul.f32 1.0, %v1211
    %v1213 = vtanh.pop %v1206
    %v1214 = vmul.f32 %v1212, 0.0
    %1216 = vrot.lane.b32.xlu0 %v1213, 64
    %v1217 = vpop.permute.xlu0 %1216
    %v1219 = vmul.f32 %v1212, %v1217
    %1221 = vrot.lane.b32.xlu0 %v1219, 32
    %v1222 = vpop.permute.xlu0 %1221
    %v1224 = vadd.f32 %v1214, %v1222
    %v1225 = vtanh.pop %v1224
    %1227 = vrot.lane.b32.xlu0 %v1225, 64
    %v1228 = vpop.permute.xlu0 %1227
    %v1230 = vmul.f32 %v1212, %v1228
    %1232 = vrot.lane.b32.xlu0 %v1230, 32
    %v1233 = vpop.permute.xlu0 %1232
    %v1234 = vsel %vm185, %v1233, 0
    %1236 = vmatprep.subr.mxu0 0.0
    %1237 = vmatpush1.msra.mxu0 %v1040
    %1238 = vmatprep.subr.mxu0 0.0
    %1239 = vmatpush1.msra.mxu0 %v1041
    %1240 = vmatprep.subr.mxu0 0.0
    %1241 = vmatpush1.msra.mxu0 %v1042
    %1242 = vmatprep.subr.mxu0 0.0
    %1243 = vmatpush1.msra.mxu0 %v1043
    %1244 = vmatprep.subr.mxu0 0.0
    %1245 = vmatpush1.msra.mxu0 0.0
    %1246 = vmatprep.subr.mxu0 0.0
    %1247 = vmatpush1.msra.mxu0 0.0
    %1248 = vmatprep.subr.mxu0 0.0
    %1249 = vmatpush1.msra.mxu0 0.0
    %1250 = vmatprep.subr.mxu0 0.0
    %1251 = vmatpush1.msra.mxu0 0.0
    %1252 = vmatprep.subr.mxu0 0.0
    %1253 = vmatpush1.msra.mxu0 0.0
    %1254 = vmatprep.subr.mxu0 0.0
    %1255 = vmatpush1.msra.mxu0 0.0
    %1256 = vmatprep.subr.mxu0 0.0
    %1257 = vmatpush1.msra.mxu0 0.0
    %1258 = vmatprep.subr.mxu0 0.0
    %1259 = vmatpush1.msra.mxu0 0.0
    %1260 = vmatprep.subr.mxu0 0.0
    %1261 = vmatpush1.msra.mxu0 0.0
    %1262 = vmatprep.subr.mxu0 0.0
    %1263 = vmatpush1.msra.mxu0 0.0
    %1264 = vmatprep.subr.mxu0 0.0
    %1265 = vmatpush1.msra.mxu0 0.0
    %1266 = vmatprep.subr.mxu0 0.0
    %1267 = vmatpush1.msra.mxu0 0.0
    %1268 = vmatprep.subr.mxu0 0.0
    %1269 = vmatpush1.msra.mxu0 0.0
    %1270 = vmatprep.subr.mxu0 0.0
    %1271 = vmatpush1.msra.mxu0 0.0
    %1272 = vmatprep.subr.mxu0 0.0
    %1273 = vmatpush1.msra.mxu0 0.0
    %1274 = vmatprep.subr.mxu0 0.0
    %1275 = vmatpush1.msra.mxu0 0.0
    %1276 = vmatprep.subr.mxu0 0.0
    %1277 = vmatpush1.msra.mxu0 0.0
    %1278 = vmatprep.subr.mxu0 0.0
    %1279 = vmatpush1.msra.mxu0 0.0
    %1280 = vmatprep.subr.mxu0 0.0
    %1281 = vmatpush1.msra.mxu0 0.0
    %1282 = vmatprep.subr.mxu0 0.0
    %1283 = vmatpush1.msra.mxu0 0.0
    %1284 = vmatprep.subr.mxu0 0.0
    %1285 = vmatpush1.msra.mxu0 0.0
    %1286 = vmatprep.subr.mxu0 0.0
    %1287 = vmatpush1.msra.mxu0 0.0
    %1288 = vmatprep.subr.mxu0 0.0
    %1289 = vmatpush1.msra.mxu0 0.0
    %1290 = vmatprep.subr.mxu0 0.0
    %1291 = vmatpush1.msra.mxu0 0.0
    %1292 = vmatprep.subr.mxu0 0.0
    %1293 = vmatpush1.msra.mxu0 0.0
    %1294 = vmatprep.subr.mxu0 0.0
    %1295 = vmatpush1.msra.mxu0 0.0
    %1296 = vmatprep.subr.mxu0 0.0
    %1297 = vmatpush1.msra.mxu0 0.0
    %1298 = vmatprep.subr.mxu0 0.0
    %1299 = vmatpush1.msra.mxu0 0.0
    %1300 = vmatprep.mubr.f32.mxu0 0.0
    %1301 = vmatmul.mubr.f32.gmra.mrb[0].mxu0 %v1234
    %v1302 = vpop.f32.mrb[0].mxu0
    %v1303 = vadd.f32 0.0, %v1302
    %v1304 = vpop.f32.mrb[0].mxu0
    %1305 = vdwg.mxu0
    %v1307 = vrot.slane %v1303, 6
    %v1309 = vadd.f32 %v1128, %v1307
    %v1310 = vxor.u32 %v1309, 2147483648
    %v1311 = vmul.f32 %v1310, 1.442695
    %v1312 = vpow.pop %v1311
    %v1313 = vadd.f32 %v1312, 1.0
    %v1314 = vrcp.pop %v1313
    %v1315 = vmul.f32 1.0, %v1314
    %v1316 = vtanh.pop %v1309
    %v1318 = vrot.slane %v1224, 6
    %v1320 = vmul.f32 %v1315, %v1318
    %1322 = vrot.lane.b32.xlu0 %v1316, 64
    %v1323 = vpop.permute.xlu0 %1322
    %v1325 = vmul.f32 %v1315, %v1323
    %1327 = vrot.lane.b32.xlu0 %v1325, 32
    %v1328 = vpop.permute.xlu0 %1327
    %v1330 = vadd.f32 %v1320, %v1328
    %v1331 = vtanh.pop %v1330
    %1333 = vrot.lane.b32.xlu0 %v1331, 64
    %v1334 = vpop.permute.xlu0 %1333
    %v1336 = vmul.f32 %v1315, %v1334
    %v1338 = vrot.slane %v1336, 2
    %1339 = vrot.lane.b32.xlu0 %v1338, 32
    %v1340 = vpop.permute.xlu0 %1339
    %v1341 = vsel %vm185, %v1340, 0
    %1343 = vmatprep.subr.mxu0 0.0
    %1344 = vmatpush1.msra.mxu0 %v1040
    %1345 = vmatprep.subr.mxu0 0.0
    %1346 = vmatpush1.msra.mxu0 %v1041
    %1347 = vmatprep.subr.mxu0 0.0
    %1348 = vmatpush1.msra.mxu0 %v1042
    %1349 = vmatprep.subr.mxu0 0.0
    %1350 = vmatpush1.msra.mxu0 %v1043
    %1351 = vmatprep.subr.mxu0 0.0
    %1352 = vmatpush1.msra.mxu0 0.0
    %1353 = vmatprep.subr.mxu0 0.0
    %1354 = vmatpush1.msra.mxu0 0.0
    %1355 = vmatprep.subr.mxu0 0.0
    %1356 = vmatpush1.msra.mxu0 0.0
    %1357 = vmatprep.subr.mxu0 0.0
    %1358 = vmatpush1.msra.mxu0 0.0
    %1359 = vmatprep.subr.mxu0 0.0
    %1360 = vmatpush1.msra.mxu0 0.0
    %1361 = vmatprep.subr.mxu0 0.0
    %1362 = vmatpush1.msra.mxu0 0.0
    %1363 = vmatprep.subr.mxu0 0.0
    %1364 = vmatpush1.msra.mxu0 0.0
    %1365 = vmatprep.subr.mxu0 0.0
    %1366 = vmatpush1.msra.mxu0 0.0
    %1367 = vmatprep.subr.mxu0 0.0
    %1368 = vmatpush1.msra.mxu0 0.0
    %1369 = vmatprep.subr.mxu0 0.0
    %1370 = vmatpush1.msra.mxu0 0.0
    %1371 = vmatprep.subr.mxu0 0.0
    %1372 = vmatpush1.msra.mxu0 0.0
    %1373 = vmatprep.subr.mxu0 0.0
    %1374 = vmatpush1.msra.mxu0 0.0
    %1375 = vmatprep.subr.mxu0 0.0
    %1376 = vmatpush1.msra.mxu0 0.0
    %1377 = vmatprep.subr.mxu0 0.0
    %1378 = vmatpush1.msra.mxu0 0.0
    %1379 = vmatprep.subr.mxu0 0.0
    %1380 = vmatpush1.msra.mxu0 0.0
    %1381 = vmatprep.subr.mxu0 0.0
    %1382 = vmatpush1.msra.mxu0 0.0
    %1383 = vmatprep.subr.mxu0 0.0
    %1384 = vmatpush1.msra.mxu0 0.0
    %1385 = vmatprep.subr.mxu0 0.0
    %1386 = vmatpush1.msra.mxu0 0.0
    %1387 = vmatprep.subr.mxu0 0.0
    %1388 = vmatpush1.msra.mxu0 0.0
    %1389 = vmatprep.subr.mxu0 0.0
    %1390 = vmatpush1.msra.mxu0 0.0
    %1391 = vmatprep.subr.mxu0 0.0
    %1392 = vmatpush1.msra.mxu0 0.0
    %1393 = vmatprep.subr.mxu0 0.0
    %1394 = vmatpush1.msra.mxu0 0.0
    %1395 = vmatprep.subr.mxu0 0.0
    %1396 = vmatpush1.msra.mxu0 0.0
    %1397 = vmatprep.subr.mxu0 0.0
    %1398 = vmatpush1.msra.mxu0 0.0
    %1399 = vmatprep.subr.mxu0 0.0
    %1400 = vmatpush1.msra.mxu0 0.0
    %1401 = vmatprep.subr.mxu0 0.0
    %1402 = vmatpush1.msra.mxu0 0.0
    %1403 = vmatprep.subr.mxu0 0.0
    %1404 = vmatpush1.msra.mxu0 0.0
    %1405 = vmatprep.subr.mxu0 0.0
    %1406 = vmatpush1.msra.mxu0 0.0
    %1407 = vmatprep.mubr.f32.mxu0 0.0
    %1408 = vmatmul.mubr.f32.gmra.mrb[0].mxu0 %v1341
    %v1409 = vpop.f32.mrb[0].mxu0
    %v1410 = vadd.f32 0.0, %v1409
    %v1411 = vpop.f32.mrb[0].mxu0
    %1412 = vdwg.mxu0
    %v1414 = vrot.slane %v1410, 4
    %v1416 = vadd.f32 %v1128, %v1414
    %v1417 = vxor.u32 %v1416, 2147483648
    %v1418 = vmul.f32 %v1417, 1.442695
    %v1419 = vpow.pop %v1418
    %v1420 = vadd.f32 %v1419, 1.0
    %v1421 = vrcp.pop %v1420
    %v1422 = vmul.f32 1.0, %v1421
    %v1423 = vtanh.pop %v1416
    %v1425 = vrot.slane %v1330, 6
    %v1427 = vmul.f32 %v1422, %v1425
    %1429 = vrot.lane.b32.xlu0 %v1423, 64
    %v1430 = vpop.permute.xlu0 %1429
    %v1432 = vmul.f32 %v1422, %v1430
    %1434 = vrot.lane.b32.xlu0 %v1432, 32
    %v1435 = vpop.permute.xlu0 %1434
    %v1437 = vadd.f32 %v1427, %v1435
    %v1438 = vtanh.pop %v1437
    %1440 = vrot.lane.b32.xlu0 %v1438, 64
    %v1441 = vpop.permute.xlu0 %1440
    %v1443 = vmul.f32 %v1422, %v1441
    %v1445 = vrot.slane %v1443, 4
    %1446 = vrot.lane.b32.xlu0 %v1445, 32
    %v1447 = vpop.permute.xlu0 %1446
    %v1448 = vsel %vm185, %v1447, 0
    %1450 = vmatprep.subr.mxu0 0.0
    %1451 = vmatpush1.msra.mxu0 %v1040
    %1452 = vmatprep.subr.mxu0 0.0
    %1453 = vmatpush1.msra.mxu0 %v1041
    %1454 = vmatprep.subr.mxu0 0.0
    %1455 = vmatpush1.msra.mxu0 %v1042
    %1456 = vmatprep.subr.mxu0 0.0
    %1457 = vmatpush1.msra.mxu0 %v1043
    %1458 = vmatprep.subr.mxu0 0.0
    %1459 = vmatpush1.msra.mxu0 0.0
    %1460 = vmatprep.subr.mxu0 0.0
    %1461 = vmatpush1.msra.mxu0 0.0
    %1462 = vmatprep.subr.mxu0 0.0
    %1463 = vmatpush1.msra.mxu0 0.0
    %1464 = vmatprep.subr.mxu0 0.0
    %1465 = vmatpush1.msra.mxu0 0.0
    %1466 = vmatprep.subr.mxu0 0.0
    %1467 = vmatpush1.msra.mxu0 0.0
    %1468 = vmatprep.subr.mxu0 0.0
    %1469 = vmatpush1.msra.mxu0 0.0
    %1470 = vmatprep.subr.mxu0 0.0
    %1471 = vmatpush1.msra.mxu0 0.0
    %1472 = vmatprep.subr.mxu0 0.0
    %1473 = vmatpush1.msra.mxu0 0.0
    %1474 = vmatprep.subr.mxu0 0.0
    %1475 = vmatpush1.msra.mxu0 0.0
    %1476 = vmatprep.subr.mxu0 0.0
    %1477 = vmatpush1.msra.mxu0 0.0
    %1478 = vmatprep.subr.mxu0 0.0
    %1479 = vmatpush1.msra.mxu0 0.0
    %1480 = vmatprep.subr.mxu0 0.0
    %1481 = vmatpush1.msra.mxu0 0.0
    %1482 = vmatprep.subr.mxu0 0.0
    %1483 = vmatpush1.msra.mxu0 0.0
    %1484 = vmatprep.subr.mxu0 0.0
    %1485 = vmatpush1.msra.mxu0 0.0
    %1486 = vmatprep.subr.mxu0 0.0
    %1487 = vmatpush1.msra.mxu0 0.0
    %1488 = vmatprep.subr.mxu0 0.0
    %1489 = vmatpush1.msra.mxu0 0.0
    %1490 = vmatprep.subr.mxu0 0.0
    %1491 = vmatpush1.msra.mxu0 0.0
    %1492 = vmatprep.subr.mxu0 0.0
    %1493 = vmatpush1.msra.mxu0 0.0
    %1494 = vmatprep.subr.mxu0 0.0
    %1495 = vmatpush1.msra.mxu0 0.0
    %1496 = vmatprep.subr.mxu0 0.0
    %1497 = vmatpush1.msra.mxu0 0.0
    %1498 = vmatprep.subr.mxu0 0.0
    %1499 = vmatpush1.msra.mxu0 0.0
    %1500 = vmatprep.subr.mxu0 0.0
    %1501 = vmatpush1.msra.mxu0 0.0
    %1502 = vmatprep.subr.mxu0 0.0
    %1503 = vmatpush1.msra.mxu0 0.0
    %1504 = vmatprep.subr.mxu0 0.0
    %1505 = vmatpush1.msra.mxu0 0.0
    %1506 = vmatprep.subr.mxu0 0.0
    %1507 = vmatpush1.msra.mxu0 0.0
    %1508 = vmatprep.subr.mxu0 0.0
    %1509 = vmatpush1.msra.mxu0 0.0
    %1510 = vmatprep.subr.mxu0 0.0
    %1511 = vmatpush1.msra.mxu0 0.0
    %1512 = vmatprep.subr.mxu0 0.0
    %1513 = vmatpush1.msra.mxu0 0.0
    %1514 = vmatprep.mubr.f32.mxu0 0.0
    %1515 = vmatmul.mubr.f32.gmra.mrb[0].mxu0 %v1448
    %v1516 = vpop.f32.mrb[0].mxu0
    %v1517 = vadd.f32 0.0, %v1516
    %v1518 = vpop.f32.mrb[0].mxu0
    %1519 = vdwg.mxu0
    %v1521 = vrot.slane %v1517, 2
    %v1523 = vadd.f32 %v1128, %v1521
    %v1524 = vxor.u32 %v1523, 2147483648
    %v1525 = vmul.f32 %v1524, 1.442695
    %v1526 = vpow.pop %v1525
    %v1527 = vadd.f32 %v1526, 1.0
    %v1528 = vrcp.pop %v1527
    %v1529 = vmul.f32 1.0, %v1528
    %v1530 = vtanh.pop %v1523
    %v1532 = vrot.slane %v1437, 6
    %v1534 = vmul.f32 %v1529, %v1532
    %1536 = vrot.lane.b32.xlu0 %v1530, 64
    %v1537 = vpop.permute.xlu0 %1536
    %v1539 = vmul.f32 %v1529, %v1537
    %1541 = vrot.lane.b32.xlu0 %v1539, 32
    %v1542 = vpop.permute.xlu0 %1541
    %v1544 = vadd.f32 %v1534, %v1542
    %v1545 = vtanh.pop %v1544
    %1547 = vrot.lane.b32.xlu0 %v1545, 64
    %v1548 = vpop.permute.xlu0 %1547
    %v1550 = vmul.f32 %v1529, %v1548
    %v1552 = vrot.slane %v1550, 6
    %1553 = vrot.lane.b32.xlu0 %v1552, 32
    %v1554 = vpop.permute.xlu0 %1553
    %v1555 = vsel %vm185, %v1554, 0
    %1557 = vmatprep.subr.mxu0 0.0
    %1558 = vmatpush1.msra.mxu0 %v1040
    %1559 = vmatprep.subr.mxu0 0.0
    %1560 = vmatpush1.msra.mxu0 %v1041
    %1561 = vmatprep.subr.mxu0 0.0
    %1562 = vmatpush1.msra.mxu0 %v1042
    %1563 = vmatprep.subr.mxu0 0.0
    %1564 = vmatpush1.msra.mxu0 %v1043
    %1565 = vmatprep.subr.mxu0 0.0
    %1566 = vmatpush1.msra.mxu0 0.0
    %1567 = vmatprep.subr.mxu0 0.0
    %1568 = vmatpush1.msra.mxu0 0.0
    %1569 = vmatprep.subr.mxu0 0.0
    %1570 = vmatpush1.msra.mxu0 0.0
    %1571 = vmatprep.subr.mxu0 0.0
    %1572 = vmatpush1.msra.mxu0 0.0
    %1573 = vmatprep.subr.mxu0 0.0
    %1574 = vmatpush1.msra.mxu0 0.0
    %1575 = vmatprep.subr.mxu0 0.0
    %1576 = vmatpush1.msra.mxu0 0.0
    %1577 = vmatprep.subr.mxu0 0.0
    %1578 = vmatpush1.msra.mxu0 0.0
    %1579 = vmatprep.subr.mxu0 0.0
    %1580 = vmatpush1.msra.mxu0 0.0
    %1581 = vmatprep.subr.mxu0 0.0
    %1582 = vmatpush1.msra.mxu0 0.0
    %1583 = vmatprep.subr.mxu0 0.0
    %1584 = vmatpush1.msra.mxu0 0.0
    %1585 = vmatprep.subr.mxu0 0.0
    %1586 = vmatpush1.msra.mxu0 0.0
    %1587 = vmatprep.subr.mxu0 0.0
    %1588 = vmatpush1.msra.mxu0 0.0
    %1589 = vmatprep.subr.mxu0 0.0
    %1590 = vmatpush1.msra.mxu0 0.0
    %1591 = vmatprep.subr.mxu0 0.0
    %1592 = vmatpush1.msra.mxu0 0.0
    %1593 = vmatprep.subr.mxu0 0.0
    %1594 = vmatpush1.msra.mxu0 0.0
    %1595 = vmatprep.subr.mxu0 0.0
    %1596 = vmatpush1.msra.mxu0 0.0
    %1597 = vmatprep.subr.mxu0 0.0
    %1598 = vmatpush1.msra.mxu0 0.0
    %1599 = vmatprep.subr.mxu0 0.0
    %1600 = vmatpush1.msra.mxu0 0.0
    %1601 = vmatprep.subr.mxu0 0.0
    %1602 = vmatpush1.msra.mxu0 0.0
    %1603 = vmatprep.subr.mxu0 0.0
    %1604 = vmatpush1.msra.mxu0 0.0
    %1605 = vmatprep.subr.mxu0 0.0
    %1606 = vmatpush1.msra.mxu0 0.0
    %1607 = vmatprep.subr.mxu0 0.0
    %1608 = vmatpush1.msra.mxu0 0.0
    %1609 = vmatprep.subr.mxu0 0.0
    %1610 = vmatpush1.msra.mxu0 0.0
    %1611 = vmatprep.subr.mxu0 0.0
    %1612 = vmatpush1.msra.mxu0 0.0
    %1613 = vmatprep.subr.mxu0 0.0
    %1614 = vmatpush1.msra.mxu0 0.0
    %1615 = vmatprep.subr.mxu0 0.0
    %1616 = vmatpush1.msra.mxu0 0.0
    %1617 = vmatprep.subr.mxu0 0.0
    %1618 = vmatpush1.msra.mxu0 0.0
    %1619 = vmatprep.subr.mxu0 0.0
    %1620 = vmatpush1.msra.mxu0 0.0
    %1621 = vmatprep.mubr.f32.mxu0 0.0
    %1622 = vmatmul.mubr.f32.gmra.mrb[0].mxu0 %v1555
    %v1623 = vpop.f32.mrb[0].mxu0
    %v1624 = vadd.f32 0.0, %v1623
    %v1625 = vpop.f32.mrb[0].mxu0
    %1626 = vdwg.mxu0
    %v1627 = vadd.f32 %v1133, %v1624
    %v1628 = vxor.u32 %v1627, 2147483648
    %v1629 = vmul.f32 %v1628, 1.442695
    %v1630 = vpow.pop %v1629
    %v1631 = vadd.f32 %v1630, 1.0
    %v1632 = vrcp.pop %v1631
    %v1633 = vmul.f32 1.0, %v1632
    %v1634 = vtanh.pop %v1627
    %v1636 = vrot.slane %v1544, 6
    %v1638 = vmul.f32 %v1633, %v1636
    %1640 = vrot.lane.b32.xlu0 %v1634, 64
    %v1641 = vpop.permute.xlu0 %1640
    %v1643 = vmul.f32 %v1633, %v1641
    %1645 = vrot.lane.b32.xlu0 %v1643, 32
    %v1646 = vpop.permute.xlu0 %1645
    %v1648 = vadd.f32 %v1638, %v1646
    %v1649 = vtanh.pop %v1648
    %1651 = vrot.lane.b32.xlu0 %v1649, 64
    %v1652 = vpop.permute.xlu0 %1651
    %v1654 = vmul.f32 %v1633, %v1652
    %1656 = vrot.lane.b32.xlu0 %v1654, 32
    %v1657 = vpop.permute.xlu0 %1656
    %v1658 = vsel %vm185, %v1657, 0
    %1660 = vmatprep.subr.mxu0 0.0
    %1661 = vmatpush1.msra.mxu0 %v1040
    %1662 = vmatprep.subr.mxu0 0.0
    %1663 = vmatpush1.msra.mxu0 %v1041
    %1664 = vmatprep.subr.mxu0 0.0
    %1665 = vmatpush1.msra.mxu0 %v1042
    %1666 = vmatprep.subr.mxu0 0.0
    %1667 = vmatpush1.msra.mxu0 %v1043
    %1668 = vmatprep.subr.mxu0 0.0
    %1669 = vmatpush1.msra.mxu0 0.0
    %1670 = vmatprep.subr.mxu0 0.0
    %1671 = vmatpush1.msra.mxu0 0.0
    %1672 = vmatprep.subr.mxu0 0.0
    %1673 = vmatpush1.msra.mxu0 0.0
    %1674 = vmatprep.subr.mxu0 0.0
    %1675 = vmatpush1.msra.mxu0 0.0
    %1676 = vmatprep.subr.mxu0 0.0
    %1677 = vmatpush1.msra.mxu0 0.0
    %1678 = vmatprep.subr.mxu0 0.0
    %1679 = vmatpush1.msra.mxu0 0.0
    %1680 = vmatprep.subr.mxu0 0.0
    %1681 = vmatpush1.msra.mxu0 0.0
    %1682 = vmatprep.subr.mxu0 0.0
    %1683 = vmatpush1.msra.mxu0 0.0
    %1684 = vmatprep.subr.mxu0 0.0
    %1685 = vmatpush1.msra.mxu0 0.0
    %1686 = vmatprep.subr.mxu0 0.0
    %1687 = vmatpush1.msra.mxu0 0.0
    %1688 = vmatprep.subr.mxu0 0.0
    %1689 = vmatpush1.msra.mxu0 0.0
    %1690 = vmatprep.subr.mxu0 0.0
    %1691 = vmatpush1.msra.mxu0 0.0
    %1692 = vmatprep.subr.mxu0 0.0
    %1693 = vmatpush1.msra.mxu0 0.0
    %1694 = vmatprep.subr.mxu0 0.0
    %1695 = vmatpush1.msra.mxu0 0.0
    %1696 = vmatprep.subr.mxu0 0.0
    %1697 = vmatpush1.msra.mxu0 0.0
    %1698 = vmatprep.subr.mxu0 0.0
    %1699 = vmatpush1.msra.mxu0 0.0
    %1700 = vmatprep.subr.mxu0 0.0
    %1701 = vmatpush1.msra.mxu0 0.0
    %1702 = vmatprep.subr.mxu0 0.0
    %1703 = vmatpush1.msra.mxu0 0.0
    %1704 = vmatprep.subr.mxu0 0.0
    %1705 = vmatpush1.msra.mxu0 0.0
    %1706 = vmatprep.subr.mxu0 0.0
    %1707 = vmatpush1.msra.mxu0 0.0
    %1708 = vmatprep.subr.mxu0 0.0
    %1709 = vmatpush1.msra.mxu0 0.0
    %1710 = vmatprep.subr.mxu0 0.0
    %1711 = vmatpush1.msra.mxu0 0.0
    %1712 = vmatprep.subr.mxu0 0.0
    %1713 = vmatpush1.msra.mxu0 0.0
    %1714 = vmatprep.subr.mxu0 0.0
    %1715 = vmatpush1.msra.mxu0 0.0
    %1716 = vmatprep.subr.mxu0 0.0
    %1717 = vmatpush1.msra.mxu0 0.0
    %1718 = vmatprep.subr.mxu0 0.0
    %1719 = vmatpush1.msra.mxu0 0.0
    %1720 = vmatprep.subr.mxu0 0.0
    %1721 = vmatpush1.msra.mxu0 0.0
    %1722 = vmatprep.subr.mxu0 0.0
    %1723 = vmatpush1.msra.mxu0 0.0
    %1724 = vmatprep.mubr.f32.mxu0 0.0
    %1725 = vmatmul.mubr.f32.gmra.mrb[0].mxu0 %v1658
    %v1726 = vpop.f32.mrb[0].mxu0
    %v1727 = vadd.f32 0.0, %v1726
    %v1728 = vpop.f32.mrb[0].mxu0
    %1729 = vdwg.mxu0
    %v1731 = vrot.slane %v1727, 6
    %v1733 = vadd.f32 %v1133, %v1731
    %v1734 = vxor.u32 %v1733, 2147483648
    %v1735 = vmul.f32 %v1734, 1.442695
    %v1736 = vpow.pop %v1735
    %v1737 = vadd.f32 %v1736, 1.0
    %v1738 = vrcp.pop %v1737
    %v1739 = vmul.f32 1.0, %v1738
    %v1740 = vtanh.pop %v1733
    %v1742 = vrot.slane %v1648, 6
    %v1744 = vmul.f32 %v1739, %v1742
    %1746 = vrot.lane.b32.xlu0 %v1740, 64
    %v1747 = vpop.permute.xlu0 %1746
    %v1749 = vmul.f32 %v1739, %v1747
    %1751 = vrot.lane.b32.xlu0 %v1749, 32
    %v1752 = vpop.permute.xlu0 %1751
    %v1754 = vadd.f32 %v1744, %v1752
    %v1755 = vtanh.pop %v1754
    %1757 = vrot.lane.b32.xlu0 %v1755, 64
    %v1758 = vpop.permute.xlu0 %1757
    %v1760 = vmul.f32 %v1739, %v1758
    %v1762 = vrot.slane %v1760, 2
    %1763 = vrot.lane.b32.xlu0 %v1762, 32
    %v1764 = vpop.permute.xlu0 %1763
    %v1765 = vsel %vm185, %v1764, 0
    %1767 = vmatprep.subr.mxu0 0.0
    %1768 = vmatpush1.msra.mxu0 %v1040
    %1769 = vmatprep.subr.mxu0 0.0
    %1770 = vmatpush1.msra.mxu0 %v1041
    %1771 = vmatprep.subr.mxu0 0.0
    %1772 = vmatpush1.msra.mxu0 %v1042
    %1773 = vmatprep.subr.mxu0 0.0
    %1774 = vmatpush1.msra.mxu0 %v1043
    %1775 = vmatprep.subr.mxu0 0.0
    %1776 = vmatpush1.msra.mxu0 0.0
    %1777 = vmatprep.subr.mxu0 0.0
    %1778 = vmatpush1.msra.mxu0 0.0
    %1779 = vmatprep.subr.mxu0 0.0
    %1780 = vmatpush1.msra.mxu0 0.0
    %1781 = vmatprep.subr.mxu0 0.0
    %1782 = vmatpush1.msra.mxu0 0.0
    %1783 = vmatprep.subr.mxu0 0.0
    %1784 = vmatpush1.msra.mxu0 0.0
    %1785 = vmatprep.subr.mxu0 0.0
    %1786 = vmatpush1.msra.mxu0 0.0
    %1787 = vmatprep.subr.mxu0 0.0
    %1788 = vmatpush1.msra.mxu0 0.0
    %1789 = vmatprep.subr.mxu0 0.0
    %1790 = vmatpush1.msra.mxu0 0.0
    %1791 = vmatprep.subr.mxu0 0.0
    %1792 = vmatpush1.msra.mxu0 0.0
    %1793 = vmatprep.subr.mxu0 0.0
    %1794 = vmatpush1.msra.mxu0 0.0
    %1795 = vmatprep.subr.mxu0 0.0
    %1796 = vmatpush1.msra.mxu0 0.0
    %1797 = vmatprep.subr.mxu0 0.0
    %1798 = vmatpush1.msra.mxu0 0.0
    %1799 = vmatprep.subr.mxu0 0.0
    %1800 = vmatpush1.msra.mxu0 0.0
    %1801 = vmatprep.subr.mxu0 0.0
    %1802 = vmatpush1.msra.mxu0 0.0
    %1803 = vmatprep.subr.mxu0 0.0
    %1804 = vmatpush1.msra.mxu0 0.0
    %1805 = vmatprep.subr.mxu0 0.0
    %1806 = vmatpush1.msra.mxu0 0.0
    %1807 = vmatprep.subr.mxu0 0.0
    %1808 = vmatpush1.msra.mxu0 0.0
    %1809 = vmatprep.subr.mxu0 0.0
    %1810 = vmatpush1.msra.mxu0 0.0
    %1811 = vmatprep.subr.mxu0 0.0
    %1812 = vmatpush1.msra.mxu0 0.0
    %1813 = vmatprep.subr.mxu0 0.0
    %1814 = vmatpush1.msra.mxu0 0.0
    %1815 = vmatprep.subr.mxu0 0.0
    %1816 = vmatpush1.msra.mxu0 0.0
    %1817 = vmatprep.subr.mxu0 0.0
    %1818 = vmatpush1.msra.mxu0 0.0
    %1819 = vmatprep.subr.mxu0 0.0
    %1820 = vmatpush1.msra.mxu0 0.0
    %1821 = vmatprep.subr.mxu0 0.0
    %1822 = vmatpush1.msra.mxu0 0.0
    %1823 = vmatprep.subr.mxu0 0.0
    %1824 = vmatpush1.msra.mxu0 0.0
    %1825 = vmatprep.subr.mxu0 0.0
    %1826 = vmatpush1.msra.mxu0 0.0
    %1827 = vmatprep.subr.mxu0 0.0
    %1828 = vmatpush1.msra.mxu0 0.0
    %1829 = vmatprep.subr.mxu0 0.0
    %1830 = vmatpush1.msra.mxu0 0.0
    %1831 = vmatprep.mubr.f32.mxu0 0.0
    %1832 = vmatmul.mubr.f32.gmra.mrb[0].mxu0 %v1765
    %v1833 = vpop.f32.mrb[0].mxu0
    %v1834 = vadd.f32 0.0, %v1833
    %v1835 = vpop.f32.mrb[0].mxu0
    %1836 = vdwg.mxu0
    %v1838 = vrot.slane %v1834, 4
    %v1840 = vadd.f32 %v1133, %v1838
    %v1841 = vxor.u32 %v1840, 2147483648
    %v1842 = vmul.f32 %v1841, 1.442695
    %v1843 = vpow.pop %v1842
    %v1844 = vadd.f32 %v1843, 1.0
    %v1845 = vrcp.pop %v1844
    %v1846 = vmul.f32 1.0, %v1845
    %v1847 = vtanh.pop %v1840
    %v1849 = vrot.slane %v1754, 6
    %v1851 = vmul.f32 %v1846, %v1849
    %1853 = vrot.lane.b32.xlu0 %v1847, 64
    %v1854 = vpop.permute.xlu0 %1853
    %v1856 = vmul.f32 %v1846, %v1854
    %1858 = vrot.lane.b32.xlu0 %v1856, 32
    %v1859 = vpop.permute.xlu0 %1858
    %v1861 = vadd.f32 %v1851, %v1859
    %v1862 = vtanh.pop %v1861
    %1864 = vrot.lane.b32.xlu0 %v1862, 64
    %v1865 = vpop.permute.xlu0 %1864
    %v1867 = vmul.f32 %v1846, %v1865
    %v1869 = vrot.slane %v1867, 4
    %1870 = vrot.lane.b32.xlu0 %v1869, 32
    %v1871 = vpop.permute.xlu0 %1870
    %v1872 = vsel %vm185, %v1871, 0
    %1874 = vmatprep.subr.mxu0 0.0
    %1875 = vmatpush1.msra.mxu0 %v1040
    %1876 = vmatprep.subr.mxu0 0.0
    %1877 = vmatpush1.msra.mxu0 %v1041
    %1878 = vmatprep.subr.mxu0 0.0
    %1879 = vmatpush1.msra.mxu0 %v1042
    %1880 = vmatprep.subr.mxu0 0.0
    %1881 = vmatpush1.msra.mxu0 %v1043
    %1882 = vmatprep.subr.mxu0 0.0
    %1883 = vmatpush1.msra.mxu0 0.0
    %1884 = vmatprep.subr.mxu0 0.0
    %1885 = vmatpush1.msra.mxu0 0.0
    %1886 = vmatprep.subr.mxu0 0.0
    %1887 = vmatpush1.msra.mxu0 0.0
    %1888 = vmatprep.subr.mxu0 0.0
    %1889 = vmatpush1.msra.mxu0 0.0
    %1890 = vmatprep.subr.mxu0 0.0
    %1891 = vmatpush1.msra.mxu0 0.0
    %1892 = vmatprep.subr.mxu0 0.0
    %1893 = vmatpush1.msra.mxu0 0.0
    %1894 = vmatprep.subr.mxu0 0.0
    %1895 = vmatpush1.msra.mxu0 0.0
    %1896 = vmatprep.subr.mxu0 0.0
    %1897 = vmatpush1.msra.mxu0 0.0
    %1898 = vmatprep.subr.mxu0 0.0
    %1899 = vmatpush1.msra.mxu0 0.0
    %1900 = vmatprep.subr.mxu0 0.0
    %1901 = vmatpush1.msra.mxu0 0.0
    %1902 = vmatprep.subr.mxu0 0.0
    %1903 = vmatpush1.msra.mxu0 0.0
    %1904 = vmatprep.subr.mxu0 0.0
    %1905 = vmatpush1.msra.mxu0 0.0
    %1906 = vmatprep.subr.mxu0 0.0
    %1907 = vmatpush1.msra.mxu0 0.0
    %1908 = vmatprep.subr.mxu0 0.0
    %1909 = vmatpush1.msra.mxu0 0.0
    %1910 = vmatprep.subr.mxu0 0.0
    %1911 = vmatpush1.msra.mxu0 0.0
    %1912 = vmatprep.subr.mxu0 0.0
    %1913 = vmatpush1.msra.mxu0 0.0
    %1914 = vmatprep.subr.mxu0 0.0
    %1915 = vmatpush1.msra.mxu0 0.0
    %1916 = vmatprep.subr.mxu0 0.0
    %1917 = vmatpush1.msra.mxu0 0.0
    %1918 = vmatprep.subr.mxu0 0.0
    %1919 = vmatpush1.msra.mxu0 0.0
    %1920 = vmatprep.subr.mxu0 0.0
    %1921 = vmatpush1.msra.mxu0 0.0
    %1922 = vmatprep.subr.mxu0 0.0
    %1923 = vmatpush1.msra.mxu0 0.0
    %1924 = vmatprep.subr.mxu0 0.0
    %1925 = vmatpush1.msra.mxu0 0.0
    %1926 = vmatprep.subr.mxu0 0.0
    %1927 = vmatpush1.msra.mxu0 0.0
    %1928 = vmatprep.subr.mxu0 0.0
    %1929 = vmatpush1.msra.mxu0 0.0
    %1930 = vmatprep.subr.mxu0 0.0
    %1931 = vmatpush1.msra.mxu0 0.0
    %1932 = vmatprep.subr.mxu0 0.0
    %1933 = vmatpush1.msra.mxu0 0.0
    %1934 = vmatprep.subr.mxu0 0.0
    %1935 = vmatpush1.msra.mxu0 0.0
    %1936 = vmatprep.subr.mxu0 0.0
    %1937 = vmatpush1.msra.mxu0 0.0
    %1938 = vmatprep.mubr.f32.mxu0 0.0
    %1939 = vmatmul.mubr.f32.gmra.mrb[0].mxu0 %v1872
    %v1940 = vpop.f32.mrb[0].mxu0
    %v1941 = vadd.f32 0.0, %v1940
    %v1942 = vpop.f32.mrb[0].mxu0
    %1943 = vdwg.mxu0
    %v1945 = vrot.slane %v1941, 2
    %v1947 = vadd.f32 %v1133, %v1945
    %v1948 = vxor.u32 %v1947, 2147483648
    %v1949 = vmul.f32 %v1948, 1.442695
    %v1950 = vpow.pop %v1949
    %v1951 = vadd.f32 %v1950, 1.0
    %v1952 = vrcp.pop %v1951
    %v1953 = vmul.f32 1.0, %v1952
    %v1954 = vtanh.pop %v1947
    %v1956 = vrot.slane %v1861, 6
    %v1958 = vmul.f32 %v1953, %v1956
    %1960 = vrot.lane.b32.xlu0 %v1954, 64
    %v1961 = vpop.permute.xlu0 %1960
    %v1963 = vmul.f32 %v1953, %v1961
    %1965 = vrot.lane.b32.xlu0 %v1963, 32
    %v1966 = vpop.permute.xlu0 %1965
    %v1968 = vadd.f32 %v1958, %v1966
    %v1969 = vtanh.pop %v1968
    %1971 = vrot.lane.b32.xlu0 %v1969, 64
    %v1972 = vpop.permute.xlu0 %1971
    %v1974 = vmul.f32 %v1953, %v1972
    %v1975 = vsel %vm106, %v1230, %v1336
    %v1976 = vsel %vm1029, %v1975, %v1443
    %v1977 = vsel %vm1031, %v1976, %v1550
    %v1978 = vsel %vm106, %v1654, %v1760
    %v1979 = vsel %vm1029, %v1978, %v1867
    %v1980 = vsel %vm1031, %v1979, %v1974
    %s1981 = scalar_lea.vmem [#allocation5], 32
    %v1982 = vld [vmem:[%s1981] sm:$0xff]
    %v1983 = vld [vmem:[%s1981 + $0x8] sm:$0xff]
    %v1984 = vld [vmem:[%s1981 + $0x10] sm:$0xff]
    %v1985 = vld [vmem:[%s1981 + $0x18] sm:$0xff]
    %s1986 = scalar_lea.vmem [#allocation7], 32
    %v1987 = vld [vmem:[%s1986] sm:$0xff]
    %v1988 = vld [vmem:[%s1986 + $0x8] sm:$0xff]
    %v1989 = vld [vmem:[%s1986 + $0x10] sm:$0xff]
    %v1990 = vld [vmem:[%s1986 + $0x18] sm:$0xff]
    %s1991 = scalar_lea.vmem %s7, 1
    %v1992 = vld [vmem:[%s1991] sm:$0x1]
    %v1994 = vlaneseq
    %v1995 = vshrl.u32 %v1994, 7
    %v1996 = vsub.s32 0, %v1995
    %v1997 = vrot.slane %v1992, %v1996
    %2001 = vrot.lane.b32.xlu0 %v1977, 32
    %v2002 = vpop.permute.xlu0 %2001
    %2003 = vrot.lane.b32.xlu0 %v1980, 32
    %v2004 = vpop.permute.xlu0 %2003
    %v2005 = vsel %vm185, %v2002, 0
    %v2007 = vsel %vm185, %v2004, 0
    %2009 = vmatprep.subr.mxu0 0.0
    %2010 = vmatpush1.msra.mxu0 %v1982
    %2011 = vmatprep.subr.mxu0 0.0
    %2012 = vmatpush1.msra.mxu0 %v1983
    %2013 = vmatprep.subr.mxu0 0.0
    %2014 = vmatpush1.msra.mxu0 %v1984
    %2015 = vmatprep.subr.mxu0 0.0
    %2016 = vmatpush1.msra.mxu0 %v1985
    %2017 = vmatprep.subr.mxu0 0.0
    %2018 = vmatpush1.msra.mxu0 0.0
    %2019 = vmatprep.subr.mxu0 0.0
    %2020 = vmatpush1.msra.mxu0 0.0
    %2021 = vmatprep.subr.mxu0 0.0
    %2022 = vmatpush1.msra.mxu0 0.0
    %2023 = vmatprep.subr.mxu0 0.0
    %2024 = vmatpush1.msra.mxu0 0.0
    %2025 = vmatprep.subr.mxu0 0.0
    %2026 = vmatpush1.msra.mxu0 0.0
    %2027 = vmatprep.subr.mxu0 0.0
    %2028 = vmatpush1.msra.mxu0 0.0
    %2029 = vmatprep.subr.mxu0 0.0
    %2030 = vmatpush1.msra.mxu0 0.0
    %2031 = vmatprep.subr.mxu0 0.0
    %2032 = vmatpush1.msra.mxu0 0.0
    %2033 = vmatprep.subr.mxu0 0.0
    %2034 = vmatpush1.msra.mxu0 0.0
    %2035 = vmatprep.subr.mxu0 0.0
    %2036 = vmatpush1.msra.mxu0 0.0
    %2037 = vmatprep.subr.mxu0 0.0
    %2038 = vmatpush1.msra.mxu0 0.0
    %2039 = vmatprep.subr.mxu0 0.0
    %2040 = vmatpush1.msra.mxu0 0.0
    %2041 = vmatprep.subr.mxu0 0.0
    %2042 = vmatpush1.msra.mxu0 0.0
    %2043 = vmatprep.subr.mxu0 0.0
    %2044 = vmatpush1.msra.mxu0 0.0
    %2045 = vmatprep.subr.mxu0 0.0
    %2046 = vmatpush1.msra.mxu0 0.0
    %2047 = vmatprep.subr.mxu0 0.0
    %2048 = vmatpush1.msra.mxu0 0.0
    %2049 = vmatprep.subr.mxu0 0.0
    %2050 = vmatpush1.msra.mxu0 0.0
    %2051 = vmatprep.subr.mxu0 0.0
    %2052 = vmatpush1.msra.mxu0 0.0
    %2053 = vmatprep.subr.mxu0 0.0
    %2054 = vmatpush1.msra.mxu0 0.0
    %2055 = vmatprep.subr.mxu0 0.0
    %2056 = vmatpush1.msra.mxu0 0.0
    %2057 = vmatprep.subr.mxu0 0.0
    %2058 = vmatpush1.msra.mxu0 0.0
    %2059 = vmatprep.subr.mxu0 0.0
    %2060 = vmatpush1.msra.mxu0 0.0
    %2061 = vmatprep.subr.mxu0 0.0
    %2062 = vmatpush1.msra.mxu0 0.0
    %2063 = vmatprep.subr.mxu0 0.0
    %2064 = vmatpush1.msra.mxu0 0.0
    %2065 = vmatprep.subr.mxu0 0.0
    %2066 = vmatpush1.msra.mxu0 0.0
    %2067 = vmatprep.subr.mxu0 0.0
    %2068 = vmatpush1.msra.mxu0 0.0
    %2069 = vmatprep.subr.mxu0 0.0
    %2070 = vmatpush1.msra.mxu0 0.0
    %2071 = vmatprep.subr.mxu0 0.0
    %2072 = vmatpush1.msra.mxu0 0.0
    %2073 = vmatprep.mubr.f32.mxu0 0.0
    %2074 = vmatmul.mubr.f32.gmra.mrb[0].mxu0 %v2005
    %v2075 = vpop.f32.mrb[0].mxu0
    %v2076 = vadd.f32 %v1997, %v2075
    %v2077 = vpop.f32.mrb[0].mxu0
    %2078 = vmatprep.mubr.f32.mxu0 0.0
    %2079 = vmatmul.mubr.f32.gmra.mrb[0].mxu0 %v2007
    %v2080 = vpop.f32.mrb[0].mxu0
    %v2081 = vadd.f32 %v1997, %v2080
    %v2082 = vpop.f32.mrb[0].mxu0
    %2083 = vdwg.mxu0
    %2084 = vmatprep.subr.mxu0 0.0
    %2085 = vmatpush1.msra.mxu0 %v1987
    %2086 = vmatprep.subr.mxu0 0.0
    %2087 = vmatpush1.msra.mxu0 %v1988
    %2088 = vmatprep.subr.mxu0 0.0
    %2089 = vmatpush1.msra.mxu0 %v1989
    %2090 = vmatprep.subr.mxu0 0.0
    %2091 = vmatpush1.msra.mxu0 %v1990
    %2092 = vmatprep.subr.mxu0 0.0
    %2093 = vmatpush1.msra.mxu0 0.0
    %2094 = vmatprep.subr.mxu0 0.0
    %2095 = vmatpush1.msra.mxu0 0.0
    %2096 = vmatprep.subr.mxu0 0.0
    %2097 = vmatpush1.msra.mxu0 0.0
    %2098 = vmatprep.subr.mxu0 0.0
    %2099 = vmatpush1.msra.mxu0 0.0
    %2100 = vmatprep.subr.mxu0 0.0
    %2101 = vmatpush1.msra.mxu0 0.0
    %2102 = vmatprep.subr.mxu0 0.0
    %2103 = vmatpush1.msra.mxu0 0.0
    %2104 = vmatprep.subr.mxu0 0.0
    %2105 = vmatpush1.msra.mxu0 0.0
    %2106 = vmatprep.subr.mxu0 0.0
    %2107 = vmatpush1.msra.mxu0 0.0
    %2108 = vmatprep.subr.mxu0 0.0
    %2109 = vmatpush1.msra.mxu0 0.0
    %2110 = vmatprep.subr.mxu0 0.0
    %2111 = vmatpush1.msra.mxu0 0.0
    %2112 = vmatprep.subr.mxu0 0.0
    %2113 = vmatpush1.msra.mxu0 0.0
    %2114 = vmatprep.subr.mxu0 0.0
    %2115 = vmatpush1.msra.mxu0 0.0
    %2116 = vmatprep.subr.mxu0 0.0
    %2117 = vmatpush1.msra.mxu0 0.0
    %2118 = vmatprep.subr.mxu0 0.0
    %2119 = vmatpush1.msra.mxu0 0.0
    %2120 = vmatprep.subr.mxu0 0.0
    %2121 = vmatpush1.msra.mxu0 0.0
    %2122 = vmatprep.subr.mxu0 0.0
    %2123 = vmatpush1.msra.mxu0 0.0
    %2124 = vmatprep.subr.mxu0 0.0
    %2125 = vmatpush1.msra.mxu0 0.0
    %2126 = vmatprep.subr.mxu0 0.0
    %2127 = vmatpush1.msra.mxu0 0.0
    %2128 = vmatprep.subr.mxu0 0.0
    %2129 = vmatpush1.msra.mxu0 0.0
    %2130 = vmatprep.subr.mxu0 0.0
    %2131 = vmatpush1.msra.mxu0 0.0
    %2132 = vmatprep.subr.mxu0 0.0
    %2133 = vmatpush1.msra.mxu0 0.0
    %2134 = vmatprep.subr.mxu0 0.0
    %2135 = vmatpush1.msra.mxu0 0.0
    %2136 = vmatprep.subr.mxu0 0.0
    %2137 = vmatpush1.msra.mxu0 0.0
    %2138 = vmatprep.subr.mxu0 0.0
    %2139 = vmatpush1.msra.mxu0 0.0
    %2140 = vmatprep.subr.mxu0 0.0
    %2141 = vmatpush1.msra.mxu0 0.0
    %2142 = vmatprep.subr.mxu0 0.0
    %2143 = vmatpush1.msra.mxu0 0.0
    %2144 = vmatprep.subr.mxu0 0.0
    %2145 = vmatpush1.msra.mxu0 0.0
    %2146 = vmatprep.subr.mxu0 0.0
    %2147 = vmatpush1.msra.mxu0 0.0
    %2148 = vmatprep.mubr.f32.mxu0 0.0
    %2149 = vmatmul.mubr.f32.gmra.mrb[0].mxu0 %v187
    %v2150 = vpop.f32.mrb[0].mxu0
    %v2151 = vadd.f32 0.0, %v2150
    %v2152 = vpop.f32.mrb[0].mxu0
    %2153 = vdwg.mxu0
    %v2154 = vadd.f32 %v2076, %v2151
    %v2155 = vxor.u32 %v2154, 2147483648
    %v2156 = vmul.f32 %v2155, 1.442695
    %v2157 = vpow.pop %v2156
    %v2158 = vadd.f32 %v2157, 1.0
    %v2159 = vrcp.pop %v2158
    %v2160 = vmul.f32 1.0, %v2159
    %v2161 = vtanh.pop %v2154
    %v2162 = vmul.f32 %v2160, 0.0
    %2164 = vrot.lane.b32.xlu0 %v2161, 64
    %v2165 = vpop.permute.xlu0 %2164
    %v2167 = vmul.f32 %v2160, %v2165
    %2169 = vrot.lane.b32.xlu0 %v2167, 32
    %v2170 = vpop.permute.xlu0 %2169
    %v2172 = vadd.f32 %v2162, %v2170
    %v2173 = vtanh.pop %v2172
    %2175 = vrot.lane.b32.xlu0 %v2173, 64
    %v2176 = vpop.permute.xlu0 %2175
    %v2178 = vmul.f32 %v2160, %v2176
    %2180 = vrot.lane.b32.xlu0 %v2178, 32
    %v2181 = vpop.permute.xlu0 %2180
    %v2182 = vsel %vm185, %v2181, 0
    %2184 = vmatprep.subr.mxu0 0.0
    %2185 = vmatpush1.msra.mxu0 %v1987
    %2186 = vmatprep.subr.mxu0 0.0
    %2187 = vmatpush1.msra.mxu0 %v1988
    %2188 = vmatprep.subr.mxu0 0.0
    %2189 = vmatpush1.msra.mxu0 %v1989
    %2190 = vmatprep.subr.mxu0 0.0
    %2191 = vmatpush1.msra.mxu0 %v1990
    %2192 = vmatprep.subr.mxu0 0.0
    %2193 = vmatpush1.msra.mxu0 0.0
    %2194 = vmatprep.subr.mxu0 0.0
    %2195 = vmatpush1.msra.mxu0 0.0
    %2196 = vmatprep.subr.mxu0 0.0
    %2197 = vmatpush1.msra.mxu0 0.0
    %2198 = vmatprep.subr.mxu0 0.0
    %2199 = vmatpush1.msra.mxu0 0.0
    %2200 = vmatprep.subr.mxu0 0.0
    %2201 = vmatpush1.msra.mxu0 0.0
    %2202 = vmatprep.subr.mxu0 0.0
    %2203 = vmatpush1.msra.mxu0 0.0
    %2204 = vmatprep.subr.mxu0 0.0
    %2205 = vmatpush1.msra.mxu0 0.0
    %2206 = vmatprep.subr.mxu0 0.0
    %2207 = vmatpush1.msra.mxu0 0.0
    %2208 = vmatprep.subr.mxu0 0.0
    %2209 = vmatpush1.msra.mxu0 0.0
    %2210 = vmatprep.subr.mxu0 0.0
    %2211 = vmatpush1.msra.mxu0 0.0
    %2212 = vmatprep.subr.mxu0 0.0
    %2213 = vmatpush1.msra.mxu0 0.0
    %2214 = vmatprep.subr.mxu0 0.0
    %2215 = vmatpush1.msra.mxu0 0.0
    %2216 = vmatprep.subr.mxu0 0.0
    %2217 = vmatpush1.msra.mxu0 0.0
    %2218 = vmatprep.subr.mxu0 0.0
    %2219 = vmatpush1.msra.mxu0 0.0
    %2220 = vmatprep.subr.mxu0 0.0
    %2221 = vmatpush1.msra.mxu0 0.0
    %2222 = vmatprep.subr.mxu0 0.0
    %2223 = vmatpush1.msra.mxu0 0.0
    %2224 = vmatprep.subr.mxu0 0.0
    %2225 = vmatpush1.msra.mxu0 0.0
    %2226 = vmatprep.subr.mxu0 0.0
    %2227 = vmatpush1.msra.mxu0 0.0
    %2228 = vmatprep.subr.mxu0 0.0
    %2229 = vmatpush1.msra.mxu0 0.0
    %2230 = vmatprep.subr.mxu0 0.0
    %2231 = vmatpush1.msra.mxu0 0.0
    %2232 = vmatprep.subr.mxu0 0.0
    %2233 = vmatpush1.msra.mxu0 0.0
    %2234 = vmatprep.subr.mxu0 0.0
    %2235 = vmatpush1.msra.mxu0 0.0
    %2236 = vmatprep.subr.mxu0 0.0
    %2237 = vmatpush1.msra.mxu0 0.0
    %2238 = vmatprep.subr.mxu0 0.0
    %2239 = vmatpush1.msra.mxu0 0.0
    %2240 = vmatprep.subr.mxu0 0.0
    %2241 = vmatpush1.msra.mxu0 0.0
    %2242 = vmatprep.subr.mxu0 0.0
    %2243 = vmatpush1.msra.mxu0 0.0
    %2244 = vmatprep.subr.mxu0 0.0
    %2245 = vmatpush1.msra.mxu0 0.0
    %2246 = vmatprep.subr.mxu0 0.0
    %2247 = vmatpush1.msra.mxu0 0.0
    %2248 = vmatprep.mubr.f32.mxu0 0.0
    %2249 = vmatmul.mubr.f32.gmra.mrb[0].mxu0 %v2182
    %v2250 = vpop.f32.mrb[0].mxu0
    %v2251 = vadd.f32 0.0, %v2250
    %v2252 = vpop.f32.mrb[0].mxu0
    %2253 = vdwg.mxu0
    %v2255 = vrot.slane %v2251, 6
    %v2257 = vadd.f32 %v2076, %v2255
    %v2258 = vxor.u32 %v2257, 2147483648
    %v2259 = vmul.f32 %v2258, 1.442695
    %v2260 = vpow.pop %v2259
    %v2261 = vadd.f32 %v2260, 1.0
    %v2262 = vrcp.pop %v2261
    %v2263 = vmul.f32 1.0, %v2262
    %v2264 = vtanh.pop %v2257
    %v2266 = vrot.slane %v2172, 6
    %v2268 = vmul.f32 %v2263, %v2266
    %2270 = vrot.lane.b32.xlu0 %v2264, 64
    %v2271 = vpop.permute.xlu0 %2270
    %v2273 = vmul.f32 %v2263, %v2271
    %2275 = vrot.lane.b32.xlu0 %v2273, 32
    %v2276 = vpop.permute.xlu0 %2275
    %v2278 = vadd.f32 %v2268, %v2276
    %v2279 = vtanh.pop %v2278
    %2281 = vrot.lane.b32.xlu0 %v2279, 64
    %v2282 = vpop.permute.xlu0 %2281
    %v2284 = vmul.f32 %v2263, %v2282
    %v2286 = vrot.slane %v2284, 2
    %2287 = vrot.lane.b32.xlu0 %v2286, 32
    %v2288 = vpop.permute.xlu0 %2287
    %v2289 = vsel %vm185, %v2288, 0
    %2291 = vmatprep.subr.mxu0 0.0
    %2292 = vmatpush1.msra.mxu0 %v1987
    %2293 = vmatprep.subr.mxu0 0.0
    %2294 = vmatpush1.msra.mxu0 %v1988
    %2295 = vmatprep.subr.mxu0 0.0
    %2296 = vmatpush1.msra.mxu0 %v1989
    %2297 = vmatprep.subr.mxu0 0.0
    %2298 = vmatpush1.msra.mxu0 %v1990
    %2299 = vmatprep.subr.mxu0 0.0
    %2300 = vmatpush1.msra.mxu0 0.0
    %2301 = vmatprep.subr.mxu0 0.0
    %2302 = vmatpush1.msra.mxu0 0.0
    %2303 = vmatprep.subr.mxu0 0.0
    %2304 = vmatpush1.msra.mxu0 0.0
    %2305 = vmatprep.subr.mxu0 0.0
    %2306 = vmatpush1.msra.mxu0 0.0
    %2307 = vmatprep.subr.mxu0 0.0
    %2308 = vmatpush1.msra.mxu0 0.0
    %2309 = vmatprep.subr.mxu0 0.0
    %2310 = vmatpush1.msra.mxu0 0.0
    %2311 = vmatprep.subr.mxu0 0.0
    %2312 = vmatpush1.msra.mxu0 0.0
    %2313 = vmatprep.subr.mxu0 0.0
    %2314 = vmatpush1.msra.mxu0 0.0
    %2315 = vmatprep.subr.mxu0 0.0
    %2316 = vmatpush1.msra.mxu0 0.0
    %2317 = vmatprep.subr.mxu0 0.0
    %2318 = vmatpush1.msra.mxu0 0.0
    %2319 = vmatprep.subr.mxu0 0.0
    %2320 = vmatpush1.msra.mxu0 0.0
    %2321 = vmatprep.subr.mxu0 0.0
    %2322 = vmatpush1.msra.mxu0 0.0
    %2323 = vmatprep.subr.mxu0 0.0
    %2324 = vmatpush1.msra.mxu0 0.0
    %2325 = vmatprep.subr.mxu0 0.0
    %2326 = vmatpush1.msra.mxu0 0.0
    %2327 = vmatprep.subr.mxu0 0.0
    %2328 = vmatpush1.msra.mxu0 0.0
    %2329 = vmatprep.subr.mxu0 0.0
    %2330 = vmatpush1.msra.mxu0 0.0
    %2331 = vmatprep.subr.mxu0 0.0
    %2332 = vmatpush1.msra.mxu0 0.0
    %2333 = vmatprep.subr.mxu0 0.0
    %2334 = vmatpush1.msra.mxu0 0.0
    %2335 = vmatprep.subr.mxu0 0.0
    %2336 = vmatpush1.msra.mxu0 0.0
    %2337 = vmatprep.subr.mxu0 0.0
    %2338 = vmatpush1.msra.mxu0 0.0
    %2339 = vmatprep.subr.mxu0 0.0
    %2340 = vmatpush1.msra.mxu0 0.0
    %2341 = vmatprep.subr.mxu0 0.0
    %2342 = vmatpush1.msra.mxu0 0.0
    %2343 = vmatprep.subr.mxu0 0.0
    %2344 = vmatpush1.msra.mxu0 0.0
    %2345 = vmatprep.subr.mxu0 0.0
    %2346 = vmatpush1.msra.mxu0 0.0
    %2347 = vmatprep.subr.mxu0 0.0
    %2348 = vmatpush1.msra.mxu0 0.0
    %2349 = vmatprep.subr.mxu0 0.0
    %2350 = vmatpush1.msra.mxu0 0.0
    %2351 = vmatprep.subr.mxu0 0.0
    %2352 = vmatpush1.msra.mxu0 0.0
    %2353 = vmatprep.subr.mxu0 0.0
    %2354 = vmatpush1.msra.mxu0 0.0
    %2355 = vmatprep.mubr.f32.mxu0 0.0
    %2356 = vmatmul.mubr.f32.gmra.mrb[0].mxu0 %v2289
    %v2357 = vpop.f32.mrb[0].mxu0
    %v2358 = vadd.f32 0.0, %v2357
    %v2359 = vpop.f32.mrb[0].mxu0
    %2360 = vdwg.mxu0
    %v2362 = vrot.slane %v2358, 4
    %v2364 = vadd.f32 %v2076, %v2362
    %v2365 = vxor.u32 %v2364, 2147483648
    %v2366 = vmul.f32 %v2365, 1.442695
    %v2367 = vpow.pop %v2366
    %v2368 = vadd.f32 %v2367, 1.0
    %v2369 = vrcp.pop %v2368
    %v2370 = vmul.f32 1.0, %v2369
    %v2371 = vtanh.pop %v2364
    %v2373 = vrot.slane %v2278, 6
    %v2375 = vmul.f32 %v2370, %v2373
    %2377 = vrot.lane.b32.xlu0 %v2371, 64
    %v2378 = vpop.permute.xlu0 %2377
    %v2380 = vmul.f32 %v2370, %v2378
    %2382 = vrot.lane.b32.xlu0 %v2380, 32
    %v2383 = vpop.permute.xlu0 %2382
    %v2385 = vadd.f32 %v2375, %v2383
    %v2386 = vtanh.pop %v2385
    %2388 = vrot.lane.b32.xlu0 %v2386, 64
    %v2389 = vpop.permute.xlu0 %2388
    %v2391 = vmul.f32 %v2370, %v2389
    %v2393 = vrot.slane %v2391, 4
    %2394 = vrot.lane.b32.xlu0 %v2393, 32
    %v2395 = vpop.permute.xlu0 %2394
    %v2396 = vsel %vm185, %v2395, 0
    %2398 = vmatprep.subr.mxu0 0.0
    %2399 = vmatpush1.msra.mxu0 %v1987
    %2400 = vmatprep.subr.mxu0 0.0
    %2401 = vmatpush1.msra.mxu0 %v1988
    %2402 = vmatprep.subr.mxu0 0.0
    %2403 = vmatpush1.msra.mxu0 %v1989
    %2404 = vmatprep.subr.mxu0 0.0
    %2405 = vmatpush1.msra.mxu0 %v1990
    %2406 = vmatprep.subr.mxu0 0.0
    %2407 = vmatpush1.msra.mxu0 0.0
    %2408 = vmatprep.subr.mxu0 0.0
    %2409 = vmatpush1.msra.mxu0 0.0
    %2410 = vmatprep.subr.mxu0 0.0
    %2411 = vmatpush1.msra.mxu0 0.0
    %2412 = vmatprep.subr.mxu0 0.0
    %2413 = vmatpush1.msra.mxu0 0.0
    %2414 = vmatprep.subr.mxu0 0.0
    %2415 = vmatpush1.msra.mxu0 0.0
    %2416 = vmatprep.subr.mxu0 0.0
    %2417 = vmatpush1.msra.mxu0 0.0
    %2418 = vmatprep.subr.mxu0 0.0
    %2419 = vmatpush1.msra.mxu0 0.0
    %2420 = vmatprep.subr.mxu0 0.0
    %2421 = vmatpush1.msra.mxu0 0.0
    %2422 = vmatprep.subr.mxu0 0.0
    %2423 = vmatpush1.msra.mxu0 0.0
    %2424 = vmatprep.subr.mxu0 0.0
    %2425 = vmatpush1.msra.mxu0 0.0
    %2426 = vmatprep.subr.mxu0 0.0
    %2427 = vmatpush1.msra.mxu0 0.0
    %2428 = vmatprep.subr.mxu0 0.0
    %2429 = vmatpush1.msra.mxu0 0.0
    %2430 = vmatprep.subr.mxu0 0.0
    %2431 = vmatpush1.msra.mxu0 0.0
    %2432 = vmatprep.subr.mxu0 0.0
    %2433 = vmatpush1.msra.mxu0 0.0
    %2434 = vmatprep.subr.mxu0 0.0
    %2435 = vmatpush1.msra.mxu0 0.0
    %2436 = vmatprep.subr.mxu0 0.0
    %2437 = vmatpush1.msra.mxu0 0.0
    %2438 = vmatprep.subr.mxu0 0.0
    %2439 = vmatpush1.msra.mxu0 0.0
    %2440 = vmatprep.subr.mxu0 0.0
    %2441 = vmatpush1.msra.mxu0 0.0
    %2442 = vmatprep.subr.mxu0 0.0
    %2443 = vmatpush1.msra.mxu0 0.0
    %2444 = vmatprep.subr.mxu0 0.0
    %2445 = vmatpush1.msra.mxu0 0.0
    %2446 = vmatprep.subr.mxu0 0.0
    %2447 = vmatpush1.msra.mxu0 0.0
    %2448 = vmatprep.subr.mxu0 0.0
    %2449 = vmatpush1.msra.mxu0 0.0
    %2450 = vmatprep.subr.mxu0 0.0
    %2451 = vmatpush1.msra.mxu0 0.0
    %2452 = vmatprep.subr.mxu0 0.0
    %2453 = vmatpush1.msra.mxu0 0.0
    %2454 = vmatprep.subr.mxu0 0.0
    %2455 = vmatpush1.msra.mxu0 0.0
    %2456 = vmatprep.subr.mxu0 0.0
    %2457 = vmatpush1.msra.mxu0 0.0
    %2458 = vmatprep.subr.mxu0 0.0
    %2459 = vmatpush1.msra.mxu0 0.0
    %2460 = vmatprep.subr.mxu0 0.0
    %2461 = vmatpush1.msra.mxu0 0.0
    %2462 = vmatprep.mubr.f32.mxu0 0.0
    %2463 = vmatmul.mubr.f32.gmra.mrb[0].mxu0 %v2396
    %v2464 = vpop.f32.mrb[0].mxu0
    %v2465 = vadd.f32 0.0, %v2464
    %v2466 = vpop.f32.mrb[0].mxu0
    %2467 = vdwg.mxu0
    %v2469 = vrot.slane %v2465, 2
    %v2471 = vadd.f32 %v2076, %v2469
    %v2472 = vxor.u32 %v2471, 2147483648
    %v2473 = vmul.f32 %v2472, 1.442695
    %v2474 = vpow.pop %v2473
    %v2475 = vadd.f32 %v2474, 1.0
    %v2476 = vrcp.pop %v2475
    %v2477 = vmul.f32 1.0, %v2476
    %v2478 = vtanh.pop %v2471
    %v2480 = vrot.slane %v2385, 6
    %v2482 = vmul.f32 %v2477, %v2480
    %2484 = vrot.lane.b32.xlu0 %v2478, 64
    %v2485 = vpop.permute.xlu0 %2484
    %v2487 = vmul.f32 %v2477, %v2485
    %2489 = vrot.lane.b32.xlu0 %v2487, 32
    %v2490 = vpop.permute.xlu0 %2489
    %v2492 = vadd.f32 %v2482, %v2490
    %v2493 = vtanh.pop %v2492
    %2495 = vrot.lane.b32.xlu0 %v2493, 64
    %v2496 = vpop.permute.xlu0 %2495
    %v2498 = vmul.f32 %v2477, %v2496
    %v2500 = vrot.slane %v2498, 6
    %2501 = vrot.lane.b32.xlu0 %v2500, 32
    %v2502 = vpop.permute.xlu0 %2501
    %v2503 = vsel %vm185, %v2502, 0
    %2505 = vmatprep.subr.mxu0 0.0
    %2506 = vmatpush1.msra.mxu0 %v1987
    %2507 = vmatprep.subr.mxu0 0.0
    %2508 = vmatpush1.msra.mxu0 %v1988
    %2509 = vmatprep.subr.mxu0 0.0
    %2510 = vmatpush1.msra.mxu0 %v1989
    %2511 = vmatprep.subr.mxu0 0.0
    %2512 = vmatpush1.msra.mxu0 %v1990
    %2513 = vmatprep.subr.mxu0 0.0
    %2514 = vmatpush1.msra.mxu0 0.0
    %2515 = vmatprep.subr.mxu0 0.0
    %2516 = vmatpush1.msra.mxu0 0.0
    %2517 = vmatprep.subr.mxu0 0.0
    %2518 = vmatpush1.msra.mxu0 0.0
    %2519 = vmatprep.subr.mxu0 0.0
    %2520 = vmatpush1.msra.mxu0 0.0
    %2521 = vmatprep.subr.mxu0 0.0
    %2522 = vmatpush1.msra.mxu0 0.0
    %2523 = vmatprep.subr.mxu0 0.0
    %2524 = vmatpush1.msra.mxu0 0.0
    %2525 = vmatprep.subr.mxu0 0.0
    %2526 = vmatpush1.msra.mxu0 0.0
    %2527 = vmatprep.subr.mxu0 0.0
    %2528 = vmatpush1.msra.mxu0 0.0
    %2529 = vmatprep.subr.mxu0 0.0
    %2530 = vmatpush1.msra.mxu0 0.0
    %2531 = vmatprep.subr.mxu0 0.0
    %2532 = vmatpush1.msra.mxu0 0.0
    %2533 = vmatprep.subr.mxu0 0.0
    %2534 = vmatpush1.msra.mxu0 0.0
    %2535 = vmatprep.subr.mxu0 0.0
    %2536 = vmatpush1.msra.mxu0 0.0
    %2537 = vmatprep.subr.mxu0 0.0
    %2538 = vmatpush1.msra.mxu0 0.0
    %2539 = vmatprep.subr.mxu0 0.0
    %2540 = vmatpush1.msra.mxu0 0.0
    %2541 = vmatprep.subr.mxu0 0.0
    %2542 = vmatpush1.msra.mxu0 0.0
    %2543 = vmatprep.subr.mxu0 0.0
    %2544 = vmatpush1.msra.mxu0 0.0
    %2545 = vmatprep.subr.mxu0 0.0
    %2546 = vmatpush1.msra.mxu0 0.0
    %2547 = vmatprep.subr.mxu0 0.0
    %2548 = vmatpush1.msra.mxu0 0.0
    %2549 = vmatprep.subr.mxu0 0.0
    %2550 = vmatpush1.msra.mxu0 0.0
    %2551 = vmatprep.subr.mxu0 0.0
    %2552 = vmatpush1.msra.mxu0 0.0
    %2553 = vmatprep.subr.mxu0 0.0
    %2554 = vmatpush1.msra.mxu0 0.0
    %2555 = vmatprep.subr.mxu0 0.0
    %2556 = vmatpush1.msra.mxu0 0.0
    %2557 = vmatprep.subr.mxu0 0.0
    %2558 = vmatpush1.msra.mxu0 0.0
    %2559 = vmatprep.subr.mxu0 0.0
    %2560 = vmatpush1.msra.mxu0 0.0
    %2561 = vmatprep.subr.mxu0 0.0
    %2562 = vmatpush1.msra.mxu0 0.0
    %2563 = vmatprep.subr.mxu0 0.0
    %2564 = vmatpush1.msra.mxu0 0.0
    %2565 = vmatprep.subr.mxu0 0.0
    %2566 = vmatpush1.msra.mxu0 0.0
    %2567 = vmatprep.subr.mxu0 0.0
    %2568 = vmatpush1.msra.mxu0 0.0
    %2569 = vmatprep.mubr.f32.mxu0 0.0
    %2570 = vmatmul.mubr.f32.gmra.mrb[0].mxu0 %v2503
    %v2571 = vpop.f32.mrb[0].mxu0
    %v2572 = vadd.f32 0.0, %v2571
    %v2573 = vpop.f32.mrb[0].mxu0
    %2574 = vdwg.mxu0
    %v2575 = vadd.f32 %v2081, %v2572
    %v2576 = vxor.u32 %v2575, 2147483648
    %v2577 = vmul.f32 %v2576, 1.442695
    %v2578 = vpow.pop %v2577
    %v2579 = vadd.f32 %v2578, 1.0
    %v2580 = vrcp.pop %v2579
    %v2581 = vmul.f32 1.0, %v2580
    %v2582 = vtanh.pop %v2575
    %v2584 = vrot.slane %v2492, 6
    %v2586 = vmul.f32 %v2581, %v2584
    %2588 = vrot.lane.b32.xlu0 %v2582, 64
    %v2589 = vpop.permute.xlu0 %2588
    %v2591 = vmul.f32 %v2581, %v2589
    %2593 = vrot.lane.b32.xlu0 %v2591, 32
    %v2594 = vpop.permute.xlu0 %2593
    %v2596 = vadd.f32 %v2586, %v2594
    %v2597 = vtanh.pop %v2596
    %2599 = vrot.lane.b32.xlu0 %v2597, 64
    %v2600 = vpop.permute.xlu0 %2599
    %v2602 = vmul.f32 %v2581, %v2600
    %2604 = vrot.lane.b32.xlu0 %v2602, 32
    %v2605 = vpop.permute.xlu0 %2604
    %v2606 = vsel %vm185, %v2605, 0
    %2608 = vmatprep.subr.mxu0 0.0
    %2609 = vmatpush1.msra.mxu0 %v1987
    %2610 = vmatprep.subr.mxu0 0.0
    %2611 = vmatpush1.msra.mxu0 %v1988
    %2612 = vmatprep.subr.mxu0 0.0
    %2613 = vmatpush1.msra.mxu0 %v1989
    %2614 = vmatprep.subr.mxu0 0.0
    %2615 = vmatpush1.msra.mxu0 %v1990
    %2616 = vmatprep.subr.mxu0 0.0
    %2617 = vmatpush1.msra.mxu0 0.0
    %2618 = vmatprep.subr.mxu0 0.0
    %2619 = vmatpush1.msra.mxu0 0.0
    %2620 = vmatprep.subr.mxu0 0.0
    %2621 = vmatpush1.msra.mxu0 0.0
    %2622 = vmatprep.subr.mxu0 0.0
    %2623 = vmatpush1.msra.mxu0 0.0
    %2624 = vmatprep.subr.mxu0 0.0
    %2625 = vmatpush1.msra.mxu0 0.0
    %2626 = vmatprep.subr.mxu0 0.0
    %2627 = vmatpush1.msra.mxu0 0.0
    %2628 = vmatprep.subr.mxu0 0.0
    %2629 = vmatpush1.msra.mxu0 0.0
    %2630 = vmatprep.subr.mxu0 0.0
    %2631 = vmatpush1.msra.mxu0 0.0
    %2632 = vmatprep.subr.mxu0 0.0
    %2633 = vmatpush1.msra.mxu0 0.0
    %2634 = vmatprep.subr.mxu0 0.0
    %2635 = vmatpush1.msra.mxu0 0.0
    %2636 = vmatprep.subr.mxu0 0.0
    %2637 = vmatpush1.msra.mxu0 0.0
    %2638 = vmatprep.subr.mxu0 0.0
    %2639 = vmatpush1.msra.mxu0 0.0
    %2640 = vmatprep.subr.mxu0 0.0
    %2641 = vmatpush1.msra.mxu0 0.0
    %2642 = vmatprep.subr.mxu0 0.0
    %2643 = vmatpush1.msra.mxu0 0.0
    %2644 = vmatprep.subr.mxu0 0.0
    %2645 = vmatpush1.msra.mxu0 0.0
    %2646 = vmatprep.subr.mxu0 0.0
    %2647 = vmatpush1.msra.mxu0 0.0
    %2648 = vmatprep.subr.mxu0 0.0
    %2649 = vmatpush1.msra.mxu0 0.0
    %2650 = vmatprep.subr.mxu0 0.0
    %2651 = vmatpush1.msra.mxu0 0.0
    %2652 = vmatprep.subr.mxu0 0.0
    %2653 = vmatpush1.msra.mxu0 0.0
    %2654 = vmatprep.subr.mxu0 0.0
    %2655 = vmatpush1.msra.mxu0 0.0
    %2656 = vmatprep.subr.mxu0 0.0
    %2657 = vmatpush1.msra.mxu0 0.0
    %2658 = vmatprep.subr.mxu0 0.0
    %2659 = vmatpush1.msra.mxu0 0.0
    %2660 = vmatprep.subr.mxu0 0.0
    %2661 = vmatpush1.msra.mxu0 0.0
    %2662 = vmatprep.subr.mxu0 0.0
    %2663 = vmatpush1.msra.mxu0 0.0
    %2664 = vmatprep.subr.mxu0 0.0
    %2665 = vmatpush1.msra.mxu0 0.0
    %2666 = vmatprep.subr.mxu0 0.0
    %2667 = vmatpush1.msra.mxu0 0.0
    %2668 = vmatprep.subr.mxu0 0.0
    %2669 = vmatpush1.msra.mxu0 0.0
    %2670 = vmatprep.subr.mxu0 0.0
    %2671 = vmatpush1.msra.mxu0 0.0
    %2672 = vmatprep.mubr.f32.mxu0 0.0
    %2673 = vmatmul.mubr.f32.gmra.mrb[0].mxu0 %v2606
    %v2674 = vpop.f32.mrb[0].mxu0
    %v2675 = vadd.f32 0.0, %v2674
    %v2676 = vpop.f32.mrb[0].mxu0
    %2677 = vdwg.mxu0
    %v2679 = vrot.slane %v2675, 6
    %v2681 = vadd.f32 %v2081, %v2679
    %v2682 = vxor.u32 %v2681, 2147483648
    %v2683 = vmul.f32 %v2682, 1.442695
    %v2684 = vpow.pop %v2683
    %v2685 = vadd.f32 %v2684, 1.0
    %v2686 = vrcp.pop %v2685
    %v2687 = vmul.f32 1.0, %v2686
    %v2688 = vtanh.pop %v2681
    %v2690 = vrot.slane %v2596, 6
    %v2692 = vmul.f32 %v2687, %v2690
    %2694 = vrot.lane.b32.xlu0 %v2688, 64
    %v2695 = vpop.permute.xlu0 %2694
    %v2697 = vmul.f32 %v2687, %v2695
    %2699 = vrot.lane.b32.xlu0 %v2697, 32
    %v2700 = vpop.permute.xlu0 %2699
    %v2702 = vadd.f32 %v2692, %v2700
    %v2703 = vtanh.pop %v2702
    %2705 = vrot.lane.b32.xlu0 %v2703, 64
    %v2706 = vpop.permute.xlu0 %2705
    %v2708 = vmul.f32 %v2687, %v2706
    %v2710 = vrot.slane %v2708, 2
    %2711 = vrot.lane.b32.xlu0 %v2710, 32
    %v2712 = vpop.permute.xlu0 %2711
    %v2713 = vsel %vm185, %v2712, 0
    %2715 = vmatprep.subr.mxu0 0.0
    %2716 = vmatpush1.msra.mxu0 %v1987
    %2717 = vmatprep.subr.mxu0 0.0
    %2718 = vmatpush1.msra.mxu0 %v1988
    %2719 = vmatprep.subr.mxu0 0.0
    %2720 = vmatpush1.msra.mxu0 %v1989
    %2721 = vmatprep.subr.mxu0 0.0
    %2722 = vmatpush1.msra.mxu0 %v1990
    %2723 = vmatprep.subr.mxu0 0.0
    %2724 = vmatpush1.msra.mxu0 0.0
    %2725 = vmatprep.subr.mxu0 0.0
    %2726 = vmatpush1.msra.mxu0 0.0
    %2727 = vmatprep.subr.mxu0 0.0
    %2728 = vmatpush1.msra.mxu0 0.0
    %2729 = vmatprep.subr.mxu0 0.0
    %2730 = vmatpush1.msra.mxu0 0.0
    %2731 = vmatprep.subr.mxu0 0.0
    %2732 = vmatpush1.msra.mxu0 0.0
    %2733 = vmatprep.subr.mxu0 0.0
    %2734 = vmatpush1.msra.mxu0 0.0
    %2735 = vmatprep.subr.mxu0 0.0
    %2736 = vmatpush1.msra.mxu0 0.0
    %2737 = vmatprep.subr.mxu0 0.0
    %2738 = vmatpush1.msra.mxu0 0.0
    %2739 = vmatprep.subr.mxu0 0.0
    %2740 = vmatpush1.msra.mxu0 0.0
    %2741 = vmatprep.subr.mxu0 0.0
    %2742 = vmatpush1.msra.mxu0 0.0
    %2743 = vmatprep.subr.mxu0 0.0
    %2744 = vmatpush1.msra.mxu0 0.0
    %2745 = vmatprep.subr.mxu0 0.0
    %2746 = vmatpush1.msra.mxu0 0.0
    %2747 = vmatprep.subr.mxu0 0.0
    %2748 = vmatpush1.msra.mxu0 0.0
    %2749 = vmatprep.subr.mxu0 0.0
    %2750 = vmatpush1.msra.mxu0 0.0
    %2751 = vmatprep.subr.mxu0 0.0
    %2752 = vmatpush1.msra.mxu0 0.0
    %2753 = vmatprep.subr.mxu0 0.0
    %2754 = vmatpush1.msra.mxu0 0.0
    %2755 = vmatprep.subr.mxu0 0.0
    %2756 = vmatpush1.msra.mxu0 0.0
    %2757 = vmatprep.subr.mxu0 0.0
    %2758 = vmatpush1.msra.mxu0 0.0
    %2759 = vmatprep.subr.mxu0 0.0
    %2760 = vmatpush1.msra.mxu0 0.0
    %2761 = vmatprep.subr.mxu0 0.0
    %2762 = vmatpush1.msra.mxu0 0.0
    %2763 = vmatprep.subr.mxu0 0.0
    %2764 = vmatpush1.msra.mxu0 0.0
    %2765 = vmatprep.subr.mxu0 0.0
    %2766 = vmatpush1.msra.mxu0 0.0
    %2767 = vmatprep.subr.mxu0 0.0
    %2768 = vmatpush1.msra.mxu0 0.0
    %2769 = vmatprep.subr.mxu0 0.0
    %2770 = vmatpush1.msra.mxu0 0.0
    %2771 = vmatprep.subr.mxu0 0.0
    %2772 = vmatpush1.msra.mxu0 0.0
    %2773 = vmatprep.subr.mxu0 0.0
    %2774 = vmatpush1.msra.mxu0 0.0
    %2775 = vmatprep.subr.mxu0 0.0
    %2776 = vmatpush1.msra.mxu0 0.0
    %2777 = vmatprep.subr.mxu0 0.0
    %2778 = vmatpush1.msra.mxu0 0.0
    %2779 = vmatprep.mubr.f32.mxu0 0.0
    %2780 = vmatmul.mubr.f32.gmra.mrb[0].mxu0 %v2713
    %v2781 = vpop.f32.mrb[0].mxu0
    %v2782 = vadd.f32 0.0, %v2781
    %v2783 = vpop.f32.mrb[0].mxu0
    %2784 = vdwg.mxu0
    %v2786 = vrot.slane %v2782, 4
    %v2788 = vadd.f32 %v2081, %v2786
    %v2789 = vxor.u32 %v2788, 2147483648
    %v2790 = vmul.f32 %v2789, 1.442695
    %v2791 = vpow.pop %v2790
    %v2792 = vadd.f32 %v2791, 1.0
    %v2793 = vrcp.pop %v2792
    %v2794 = vmul.f32 1.0, %v2793
    %v2795 = vtanh.pop %v2788
    %v2797 = vrot.slane %v2702, 6
    %v2799 = vmul.f32 %v2794, %v2797
    %2801 = vrot.lane.b32.xlu0 %v2795, 64
    %v2802 = vpop.permute.xlu0 %2801
    %v2804 = vmul.f32 %v2794, %v2802
    %2806 = vrot.lane.b32.xlu0 %v2804, 32
    %v2807 = vpop.permute.xlu0 %2806
    %v2809 = vadd.f32 %v2799, %v2807
    %v2810 = vtanh.pop %v2809
    %2812 = vrot.lane.b32.xlu0 %v2810, 64
    %v2813 = vpop.permute.xlu0 %2812
    %v2815 = vmul.f32 %v2794, %v2813
    %v2817 = vrot.slane %v2815, 4
    %2818 = vrot.lane.b32.xlu0 %v2817, 32
    %v2819 = vpop.permute.xlu0 %2818
    %v2820 = vsel %vm185, %v2819, 0
    %2822 = vmatprep.subr.mxu0 0.0
    %2823 = vmatpush1.msra.mxu0 %v1987
    %2824 = vmatprep.subr.mxu0 0.0
    %2825 = vmatpush1.msra.mxu0 %v1988
    %2826 = vmatprep.subr.mxu0 0.0
    %2827 = vmatpush1.msra.mxu0 %v1989
    %2828 = vmatprep.subr.mxu0 0.0
    %2829 = vmatpush1.msra.mxu0 %v1990
    %2830 = vmatprep.subr.mxu0 0.0
    %2831 = vmatpush1.msra.mxu0 0.0
    %2832 = vmatprep.subr.mxu0 0.0
    %2833 = vmatpush1.msra.mxu0 0.0
    %2834 = vmatprep.subr.mxu0 0.0
    %2835 = vmatpush1.msra.mxu0 0.0
    %2836 = vmatprep.subr.mxu0 0.0
    %2837 = vmatpush1.msra.mxu0 0.0
    %2838 = vmatprep.subr.mxu0 0.0
    %2839 = vmatpush1.msra.mxu0 0.0
    %2840 = vmatprep.subr.mxu0 0.0
    %2841 = vmatpush1.msra.mxu0 0.0
    %2842 = vmatprep.subr.mxu0 0.0
    %2843 = vmatpush1.msra.mxu0 0.0
    %2844 = vmatprep.subr.mxu0 0.0
    %2845 = vmatpush1.msra.mxu0 0.0
    %2846 = vmatprep.subr.mxu0 0.0
    %2847 = vmatpush1.msra.mxu0 0.0
    %2848 = vmatprep.subr.mxu0 0.0
    %2849 = vmatpush1.msra.mxu0 0.0
    %2850 = vmatprep.subr.mxu0 0.0
    %2851 = vmatpush1.msra.mxu0 0.0
    %2852 = vmatprep.subr.mxu0 0.0
    %2853 = vmatpush1.msra.mxu0 0.0
    %2854 = vmatprep.subr.mxu0 0.0
    %2855 = vmatpush1.msra.mxu0 0.0
    %2856 = vmatprep.subr.mxu0 0.0
    %2857 = vmatpush1.msra.mxu0 0.0
    %2858 = vmatprep.subr.mxu0 0.0
    %2859 = vmatpush1.msra.mxu0 0.0
    %2860 = vmatprep.subr.mxu0 0.0
    %2861 = vmatpush1.msra.mxu0 0.0
    %2862 = vmatprep.subr.mxu0 0.0
    %2863 = vmatpush1.msra.mxu0 0.0
    %2864 = vmatprep.subr.mxu0 0.0
    %2865 = vmatpush1.msra.mxu0 0.0
    %2866 = vmatprep.subr.mxu0 0.0
    %2867 = vmatpush1.msra.mxu0 0.0
    %2868 = vmatprep.subr.mxu0 0.0
    %2869 = vmatpush1.msra.mxu0 0.0
    %2870 = vmatprep.subr.mxu0 0.0
    %2871 = vmatpush1.msra.mxu0 0.0
    %2872 = vmatprep.subr.mxu0 0.0
    %2873 = vmatpush1.msra.mxu0 0.0
    %2874 = vmatprep.subr.mxu0 0.0
    %2875 = vmatpush1.msra.mxu0 0.0
    %2876 = vmatprep.subr.mxu0 0.0
    %2877 = vmatpush1.msra.mxu0 0.0
    %2878 = vmatprep.subr.mxu0 0.0
    %2879 = vmatpush1.msra.mxu0 0.0
    %2880 = vmatprep.subr.mxu0 0.0
    %2881 = vmatpush1.msra.mxu0 0.0
    %2882 = vmatprep.subr.mxu0 0.0
    %2883 = vmatpush1.msra.mxu0 0.0
    %2884 = vmatprep.subr.mxu0 0.0
    %2885 = vmatpush1.msra.mxu0 0.0
    %2886 = vmatprep.mubr.f32.mxu0 0.0
    %2887 = vmatmul.mubr.f32.gmra.mrb[0].mxu0 %v2820
    %v2888 = vpop.f32.mrb[0].mxu0
    %v2889 = vadd.f32 0.0, %v2888
    %v2890 = vpop.f32.mrb[0].mxu0
    %2891 = vdwg.mxu0
    %v2893 = vrot.slane %v2889, 2
    %v2895 = vadd.f32 %v2081, %v2893
    %v2896 = vxor.u32 %v2895, 2147483648
    %v2897 = vmul.f32 %v2896, 1.442695
    %v2898 = vpow.pop %v2897
    %v2899 = vadd.f32 %v2898, 1.0
    %v2900 = vrcp.pop %v2899
    %v2901 = vmul.f32 1.0, %v2900
    %v2902 = vtanh.pop %v2895
    %v2904 = vrot.slane %v2809, 6
    %v2906 = vmul.f32 %v2901, %v2904
    %2908 = vrot.lane.b32.xlu0 %v2902, 64
    %v2909 = vpop.permute.xlu0 %2908
    %v2911 = vmul.f32 %v2901, %v2909
    %2913 = vrot.lane.b32.xlu0 %v2911, 32
    %v2914 = vpop.permute.xlu0 %2913
    %v2916 = vadd.f32 %v2906, %v2914
    %v2917 = vtanh.pop %v2916
    %2919 = vrot.lane.b32.xlu0 %v2917, 64
    %v2920 = vpop.permute.xlu0 %2919
    %v2922 = vmul.f32 %v2901, %v2920
    %v2923 = vsel %vm106, %v2178, %v2284
    %v2924 = vsel %vm1029, %v2923, %v2391
    %v2925 = vsel %vm1031, %v2924, %v2498
    %v2926 = vsel %vm106, %v2602, %v2708
    %v2927 = vsel %vm1029, %v2926, %v2815
    %v2928 = vsel %vm1031, %v2927, %v2922
    %s2929 = scalar_lea.vmem [#allocation5], 64
    %v2930 = vld [vmem:[%s2929] sm:$0xff]
    %v2931 = vld [vmem:[%s2929 + $0x8] sm:$0xff]
    %v2932 = vld [vmem:[%s2929 + $0x10] sm:$0xff]
    %v2933 = vld [vmem:[%s2929 + $0x18] sm:$0xff]
    %s2934 = scalar_lea.vmem [#allocation7], 64
    %v2935 = vld [vmem:[%s2934] sm:$0xff]
    %v2936 = vld [vmem:[%s2934 + $0x8] sm:$0xff]
    %v2937 = vld [vmem:[%s2934 + $0x10] sm:$0xff]
    %v2938 = vld [vmem:[%s2934 + $0x18] sm:$0xff]
    %s2939 = scalar_lea.vmem %s7, 2
    %v2940 = vld [vmem:[%s2939] sm:$0x1]
    %v2942 = vlaneseq
    %v2943 = vshrl.u32 %v2942, 7
    %v2944 = vsub.s32 0, %v2943
    %v2945 = vrot.slane %v2940, %v2944
    %2949 = vrot.lane.b32.xlu0 %v2925, 32
    %v2950 = vpop.permute.xlu0 %2949
    %2951 = vrot.lane.b32.xlu0 %v2928, 32
    %v2952 = vpop.permute.xlu0 %2951
    %v2953 = vsel %vm185, %v2950, 0
    %v2955 = vsel %vm185, %v2952, 0
    %2957 = vmatprep.subr.mxu0 0.0
    %2958 = vmatpush1.msra.mxu0 %v2930
    %2959 = vmatprep.subr.mxu0 0.0
    %2960 = vmatpush1.msra.mxu0 %v2931
    %2961 = vmatprep.subr.mxu0 0.0
    %2962 = vmatpush1.msra.mxu0 %v2932
    %2963 = vmatprep.subr.mxu0 0.0
    %2964 = vmatpush1.msra.mxu0 %v2933
    %2965 = vmatprep.subr.mxu0 0.0
    %2966 = vmatpush1.msra.mxu0 0.0
    %2967 = vmatprep.subr.mxu0 0.0
    %2968 = vmatpush1.msra.mxu0 0.0
    %2969 = vmatprep.subr.mxu0 0.0
    %2970 = vmatpush1.msra.mxu0 0.0
    %2971 = vmatprep.subr.mxu0 0.0
    %2972 = vmatpush1.msra.mxu0 0.0
    %2973 = vmatprep.subr.mxu0 0.0
    %2974 = vmatpush1.msra.mxu0 0.0
    %2975 = vmatprep.subr.mxu0 0.0
    %2976 = vmatpush1.msra.mxu0 0.0
    %2977 = vmatprep.subr.mxu0 0.0
    %2978 = vmatpush1.msra.mxu0 0.0
    %2979 = vmatprep.subr.mxu0 0.0
    %2980 = vmatpush1.msra.mxu0 0.0
    %2981 = vmatprep.subr.mxu0 0.0
    %2982 = vmatpush1.msra.mxu0 0.0
    %2983 = vmatprep.subr.mxu0 0.0
    %2984 = vmatpush1.msra.mxu0 0.0
    %2985 = vmatprep.subr.mxu0 0.0
    %2986 = vmatpush1.msra.mxu0 0.0
    %2987 = vmatprep.subr.mxu0 0.0
    %2988 = vmatpush1.msra.mxu0 0.0
    %2989 = vmatprep.subr.mxu0 0.0
    %2990 = vmatpush1.msra.mxu0 0.0
    %2991 = vmatprep.subr.mxu0 0.0
    %2992 = vmatpush1.msra.mxu0 0.0
    %2993 = vmatprep.subr.mxu0 0.0
    %2994 = vmatpush1.msra.mxu0 0.0
    %2995 = vmatprep.subr.mxu0 0.0
    %2996 = vmatpush1.msra.mxu0 0.0
    %2997 = vmatprep.subr.mxu0 0.0
    %2998 = vmatpush1.msra.mxu0 0.0
    %2999 = vmatprep.subr.mxu0 0.0
    %3000 = vmatpush1.msra.mxu0 0.0
    %3001 = vmatprep.subr.mxu0 0.0
    %3002 = vmatpush1.msra.mxu0 0.0
    %3003 = vmatprep.subr.mxu0 0.0
    %3004 = vmatpush1.msra.mxu0 0.0
    %3005 = vmatprep.subr.mxu0 0.0
    %3006 = vmatpush1.msra.mxu0 0.0
    %3007 = vmatprep.subr.mxu0 0.0
    %3008 = vmatpush1.msra.mxu0 0.0
    %3009 = vmatprep.subr.mxu0 0.0
    %3010 = vmatpush1.msra.mxu0 0.0
    %3011 = vmatprep.subr.mxu0 0.0
    %3012 = vmatpush1.msra.mxu0 0.0
    %3013 = vmatprep.subr.mxu0 0.0
    %3014 = vmatpush1.msra.mxu0 0.0
    %3015 = vmatprep.subr.mxu0 0.0
    %3016 = vmatpush1.msra.mxu0 0.0
    %3017 = vmatprep.subr.mxu0 0.0
    %3018 = vmatpush1.msra.mxu0 0.0
    %3019 = vmatprep.subr.mxu0 0.0
    %3020 = vmatpush1.msra.mxu0 0.0
    %3021 = vmatprep.mubr.f32.mxu0 0.0
    %3022 = vmatmul.mubr.f32.gmra.mrb[0].mxu0 %v2953
    %v3023 = vpop.f32.mrb[0].mxu0
    %v3024 = vadd.f32 %v2945, %v3023
    %v3025 = vpop.f32.mrb[0].mxu0
    %3026 = vmatprep.mubr.f32.mxu0 0.0
    %3027 = vmatmul.mubr.f32.gmra.mrb[0].mxu0 %v2955
    %v3028 = vpop.f32.mrb[0].mxu0
    %v3029 = vadd.f32 %v2945, %v3028
    %v3030 = vpop.f32.mrb[0].mxu0
    %3031 = vdwg.mxu0
    %3032 = vmatprep.subr.mxu0 0.0
    %3033 = vmatpush1.msra.mxu0 %v2935
    %3034 = vmatprep.subr.mxu0 0.0
    %3035 = vmatpush1.msra.mxu0 %v2936
    %3036 = vmatprep.subr.mxu0 0.0
    %3037 = vmatpush1.msra.mxu0 %v2937
    %3038 = vmatprep.subr.mxu0 0.0
    %3039 = vmatpush1.msra.mxu0 %v2938
    %3040 = vmatprep.subr.mxu0 0.0
    %3041 = vmatpush1.msra.mxu0 0.0
    %3042 = vmatprep.subr.mxu0 0.0
    %3043 = vmatpush1.msra.mxu0 0.0
    %3044 = vmatprep.subr.mxu0 0.0
    %3045 = vmatpush1.msra.mxu0 0.0
    %3046 = vmatprep.subr.mxu0 0.0
    %3047 = vmatpush1.msra.mxu0 0.0
    %3048 = vmatprep.subr.mxu0 0.0
    %3049 = vmatpush1.msra.mxu0 0.0
    %3050 = vmatprep.subr.mxu0 0.0
    %3051 = vmatpush1.msra.mxu0 0.0
    %3052 = vmatprep.subr.mxu0 0.0
    %3053 = vmatpush1.msra.mxu0 0.0
    %3054 = vmatprep.subr.mxu0 0.0
    %3055 = vmatpush1.msra.mxu0 0.0
    %3056 = vmatprep.subr.mxu0 0.0
    %3057 = vmatpush1.msra.mxu0 0.0
    %3058 = vmatprep.subr.mxu0 0.0
    %3059 = vmatpush1.msra.mxu0 0.0
    %3060 = vmatprep.subr.mxu0 0.0
    %3061 = vmatpush1.msra.mxu0 0.0
    %3062 = vmatprep.subr.mxu0 0.0
    %3063 = vmatpush1.msra.mxu0 0.0
    %3064 = vmatprep.subr.mxu0 0.0
    %3065 = vmatpush1.msra.mxu0 0.0
    %3066 = vmatprep.subr.mxu0 0.0
    %3067 = vmatpush1.msra.mxu0 0.0
    %3068 = vmatprep.subr.mxu0 0.0
    %3069 = vmatpush1.msra.mxu0 0.0
    %3070 = vmatprep.subr.mxu0 0.0
    %3071 = vmatpush1.msra.mxu0 0.0
    %3072 = vmatprep.subr.mxu0 0.0
    %3073 = vmatpush1.msra.mxu0 0.0
    %3074 = vmatprep.subr.mxu0 0.0
    %3075 = vmatpush1.msra.mxu0 0.0
    %3076 = vmatprep.subr.mxu0 0.0
    %3077 = vmatpush1.msra.mxu0 0.0
    %3078 = vmatprep.subr.mxu0 0.0
    %3079 = vmatpush1.msra.mxu0 0.0
    %3080 = vmatprep.subr.mxu0 0.0
    %3081 = vmatpush1.msra.mxu0 0.0
    %3082 = vmatprep.subr.mxu0 0.0
    %3083 = vmatpush1.msra.mxu0 0.0
    %3084 = vmatprep.subr.mxu0 0.0
    %3085 = vmatpush1.msra.mxu0 0.0
    %3086 = vmatprep.subr.mxu0 0.0
    %3087 = vmatpush1.msra.mxu0 0.0
    %3088 = vmatprep.subr.mxu0 0.0
    %3089 = vmatpush1.msra.mxu0 0.0
    %3090 = vmatprep.subr.mxu0 0.0
    %3091 = vmatpush1.msra.mxu0 0.0
    %3092 = vmatprep.subr.mxu0 0.0
    %3093 = vmatpush1.msra.mxu0 0.0
    %3094 = vmatprep.subr.mxu0 0.0
    %3095 = vmatpush1.msra.mxu0 0.0
    %3096 = vmatprep.mubr.f32.mxu0 0.0
    %3097 = vmatmul.mubr.f32.gmra.mrb[0].mxu0 %v187
    %v3098 = vpop.f32.mrb[0].mxu0
    %v3099 = vadd.f32 0.0, %v3098
    %v3100 = vpop.f32.mrb[0].mxu0
    %3101 = vdwg.mxu0
    %v3102 = vadd.f32 %v3024, %v3099
    %v3103 = vxor.u32 %v3102, 2147483648
    %v3104 = vmul.f32 %v3103, 1.442695
    %v3105 = vpow.pop %v3104
    %v3106 = vadd.f32 %v3105, 1.0
    %v3107 = vrcp.pop %v3106
    %v3108 = vmul.f32 1.0, %v3107
    %v3109 = vtanh.pop %v3102
    %v3110 = vmul.f32 %v3108, 0.0
    %3112 = vrot.lane.b32.xlu0 %v3109, 64
    %v3113 = vpop.permute.xlu0 %3112
    %v3115 = vmul.f32 %v3108, %v3113
    %3117 = vrot.lane.b32.xlu0 %v3115, 32
    %v3118 = vpop.permute.xlu0 %3117
    %v3120 = vadd.f32 %v3110, %v3118
    %v3121 = vtanh.pop %v3120
    %3123 = vrot.lane.b32.xlu0 %v3121, 64
    %v3124 = vpop.permute.xlu0 %3123
    %v3126 = vmul.f32 %v3108, %v3124
    %vm3127 = vcmp.eq.s32.totalorder %v78, 0
    %v3128 = vsel %vm3127, 1, 0
    %3129 = vset.pattern.permute.xlu0 0
    %3130 = vperm.xlu0 %3129, %v3128
    %v3131 = vpop.permute.xlu0 %3130
    %vm3132 = vcmp.eq.s32.totalorder %v3131, 1
    %v3133 = vsel %vm3132, %v3126, 0.0
    %3135 = vrot.lane.b32.xlu0 %v3126, 32
    %v3136 = vpop.permute.xlu0 %3135
    %v3137 = vsel %vm185, %v3136, 0
    %3139 = vmatprep.subr.mxu0 0.0
    %3140 = vmatpush1.msra.mxu0 %v2935
    %3141 = vmatprep.subr.mxu0 0.0
    %3142 = vmatpush1.msra.mxu0 %v2936
    %3143 = vmatprep.subr.mxu0 0.0
    %3144 = vmatpush1.msra.mxu0 %v2937
    %3145 = vmatprep.subr.mxu0 0.0
    %3146 = vmatpush1.msra.mxu0 %v2938
    %3147 = vmatprep.subr.mxu0 0.0
    %3148 = vmatpush1.msra.mxu0 0.0
    %3149 = vmatprep.subr.mxu0 0.0
    %3150 = vmatpush1.msra.mxu0 0.0
    %3151 = vmatprep.subr.mxu0 0.0
    %3152 = vmatpush1.msra.mxu0 0.0
    %3153 = vmatprep.subr.mxu0 0.0
    %3154 = vmatpush1.msra.mxu0 0.0
    %3155 = vmatprep.subr.mxu0 0.0
    %3156 = vmatpush1.msra.mxu0 0.0
    %3157 = vmatprep.subr.mxu0 0.0
    %3158 = vmatpush1.msra.mxu0 0.0
    %3159 = vmatprep.subr.mxu0 0.0
    %3160 = vmatpush1.msra.mxu0 0.0
    %3161 = vmatprep.subr.mxu0 0.0
    %3162 = vmatpush1.msra.mxu0 0.0
    %3163 = vmatprep.subr.mxu0 0.0
    %3164 = vmatpush1.msra.mxu0 0.0
    %3165 = vmatprep.subr.mxu0 0.0
    %3166 = vmatpush1.msra.mxu0 0.0
    %3167 = vmatprep.subr.mxu0 0.0
    %3168 = vmatpush1.msra.mxu0 0.0
    %3169 = vmatprep.subr.mxu0 0.0
    %3170 = vmatpush1.msra.mxu0 0.0
    %3171 = vmatprep.subr.mxu0 0.0
    %3172 = vmatpush1.msra.mxu0 0.0
    %3173 = vmatprep.subr.mxu0 0.0
    %3174 = vmatpush1.msra.mxu0 0.0
    %3175 = vmatprep.subr.mxu0 0.0
    %3176 = vmatpush1.msra.mxu0 0.0
    %3177 = vmatprep.subr.mxu0 0.0
    %3178 = vmatpush1.msra.mxu0 0.0
    %3179 = vmatprep.subr.mxu0 0.0
    %3180 = vmatpush1.msra.mxu0 0.0
    %3181 = vmatprep.subr.mxu0 0.0
    %3182 = vmatpush1.msra.mxu0 0.0
    %3183 = vmatprep.subr.mxu0 0.0
    %3184 = vmatpush1.msra.mxu0 0.0
    %3185 = vmatprep.subr.mxu0 0.0
    %3186 = vmatpush1.msra.mxu0 0.0
    %3187 = vmatprep.subr.mxu0 0.0
    %3188 = vmatpush1.msra.mxu0 0.0
    %3189 = vmatprep.subr.mxu0 0.0
    %3190 = vmatpush1.msra.mxu0 0.0
    %3191 = vmatprep.subr.mxu0 0.0
    %3192 = vmatpush1.msra.mxu0 0.0
    %3193 = vmatprep.subr.mxu0 0.0
    %3194 = vmatpush1.msra.mxu0 0.0
    %3195 = vmatprep.subr.mxu0 0.0
    %3196 = vmatpush1.msra.mxu0 0.0
    %3197 = vmatprep.subr.mxu0 0.0
    %3198 = vmatpush1.msra.mxu0 0.0
    %3199 = vmatprep.subr.mxu0 0.0
    %3200 = vmatpush1.msra.mxu0 0.0
    %3201 = vmatprep.subr.mxu0 0.0
    %3202 = vmatpush1.msra.mxu0 0.0
    %3203 = vmatprep.mubr.f32.mxu0 0.0
    %3204 = vmatmul.mubr.f32.gmra.mrb[0].mxu0 %v3137
    %v3205 = vpop.f32.mrb[0].mxu0
    %v3206 = vadd.f32 0.0, %v3205
    %v3207 = vpop.f32.mrb[0].mxu0
    %3208 = vdwg.mxu0
    %v3210 = vrot.slane %v3206, 6
    %v3212 = vadd.f32 %v3024, %v3210
    %v3213 = vxor.u32 %v3212, 2147483648
    %v3214 = vmul.f32 %v3213, 1.442695
    %v3215 = vpow.pop %v3214
    %v3216 = vadd.f32 %v3215, 1.0
    %v3217 = vrcp.pop %v3216
    %v3218 = vmul.f32 1.0, %v3217
    %v3219 = vtanh.pop %v3212
    %v3221 = vrot.slane %v3120, 6
    %v3223 = vmul.f32 %v3218, %v3221
    %3225 = vrot.lane.b32.xlu0 %v3219, 64
    %v3226 = vpop.permute.xlu0 %3225
    %v3228 = vmul.f32 %v3218, %v3226
    %3230 = vrot.lane.b32.xlu0 %v3228, 32
    %v3231 = vpop.permute.xlu0 %3230
    %v3233 = vadd.f32 %v3223, %v3231
    %v3234 = vtanh.pop %v3233
    %3236 = vrot.lane.b32.xlu0 %v3234, 64
    %v3237 = vpop.permute.xlu0 %3236
    %v3239 = vmul.f32 %v3218, %v3237
    %vm3240 = vcmp.eq.s32.totalorder %v78, 1
    %v3241 = vsel %vm3240, 1, 0
    %3242 = vset.pattern.permute.xlu0 0
    %3243 = vperm.xlu0 %3242, %v3241
    %v3244 = vpop.permute.xlu0 %3243
    %vm3245 = vcmp.eq.s32.totalorder %v3244, 1
    %v3247 = vrot.slane %v3239, 2
    %3248 = vrot.lane.b32.xlu0 %v3247, 32
    %v3249 = vpop.permute.xlu0 %3248
    %3252 = vrot.lane.b32.xlu0 %v3133, 32
    %v3253 = vpop.permute.xlu0 %3252
    %v3255 = vsel %vm3245, %v3249, %v3253
    %v3256 = vsel %vm185, %v3249, 0
    %3258 = vmatprep.subr.mxu0 0.0
    %3259 = vmatpush1.msra.mxu0 %v2935
    %3260 = vmatprep.subr.mxu0 0.0
    %3261 = vmatpush1.msra.mxu0 %v2936
    %3262 = vmatprep.subr.mxu0 0.0
    %3263 = vmatpush1.msra.mxu0 %v2937
    %3264 = vmatprep.subr.mxu0 0.0
    %3265 = vmatpush1.msra.mxu0 %v2938
    %3266 = vmatprep.subr.mxu0 0.0
    %3267 = vmatpush1.msra.mxu0 0.0
    %3268 = vmatprep.subr.mxu0 0.0
    %3269 = vmatpush1.msra.mxu0 0.0
    %3270 = vmatprep.subr.mxu0 0.0
    %3271 = vmatpush1.msra.mxu0 0.0
    %3272 = vmatprep.subr.mxu0 0.0
    %3273 = vmatpush1.msra.mxu0 0.0
    %3274 = vmatprep.subr.mxu0 0.0
    %3275 = vmatpush1.msra.mxu0 0.0
    %3276 = vmatprep.subr.mxu0 0.0
    %3277 = vmatpush1.msra.mxu0 0.0
    %3278 = vmatprep.subr.mxu0 0.0
    %3279 = vmatpush1.msra.mxu0 0.0
    %3280 = vmatprep.subr.mxu0 0.0
    %3281 = vmatpush1.msra.mxu0 0.0
    %3282 = vmatprep.subr.mxu0 0.0
    %3283 = vmatpush1.msra.mxu0 0.0
    %3284 = vmatprep.subr.mxu0 0.0
    %3285 = vmatpush1.msra.mxu0 0.0
    %3286 = vmatprep.subr.mxu0 0.0
    %3287 = vmatpush1.msra.mxu0 0.0
    %3288 = vmatprep.subr.mxu0 0.0
    %3289 = vmatpush1.msra.mxu0 0.0
    %3290 = vmatprep.subr.mxu0 0.0
    %3291 = vmatpush1.msra.mxu0 0.0
    %3292 = vmatprep.subr.mxu0 0.0
    %3293 = vmatpush1.msra.mxu0 0.0
    %3294 = vmatprep.subr.mxu0 0.0
    %3295 = vmatpush1.msra.mxu0 0.0
    %3296 = vmatprep.subr.mxu0 0.0
    %3297 = vmatpush1.msra.mxu0 0.0
    %3298 = vmatprep.subr.mxu0 0.0
    %3299 = vmatpush1.msra.mxu0 0.0
    %3300 = vmatprep.subr.mxu0 0.0
    %3301 = vmatpush1.msra.mxu0 0.0
    %3302 = vmatprep.subr.mxu0 0.0
    %3303 = vmatpush1.msra.mxu0 0.0
    %3304 = vmatprep.subr.mxu0 0.0
    %3305 = vmatpush1.msra.mxu0 0.0
    %3306 = vmatprep.subr.mxu0 0.0
    %3307 = vmatpush1.msra.mxu0 0.0
    %3308 = vmatprep.subr.mxu0 0.0
    %3309 = vmatpush1.msra.mxu0 0.0
    %3310 = vmatprep.subr.mxu0 0.0
    %3311 = vmatpush1.msra.mxu0 0.0
    %3312 = vmatprep.subr.mxu0 0.0
    %3313 = vmatpush1.msra.mxu0 0.0
    %3314 = vmatprep.subr.mxu0 0.0
    %3315 = vmatpush1.msra.mxu0 0.0
    %3316 = vmatprep.subr.mxu0 0.0
    %3317 = vmatpush1.msra.mxu0 0.0
    %3318 = vmatprep.subr.mxu0 0.0
    %3319 = vmatpush1.msra.mxu0 0.0
    %3320 = vmatprep.subr.mxu0 0.0
    %3321 = vmatpush1.msra.mxu0 0.0
    %3322 = vmatprep.mubr.f32.mxu0 0.0
    %3323 = vmatmul.mubr.f32.gmra.mrb[0].mxu0 %v3256
    %v3324 = vpop.f32.mrb[0].mxu0
    %v3325 = vadd.f32 0.0, %v3324
    %v3326 = vpop.f32.mrb[0].mxu0
    %3327 = vdwg.mxu0
    %v3329 = vrot.slane %v3325, 4
    %v3331 = vadd.f32 %v3024, %v3329
    %v3332 = vxor.u32 %v3331, 2147483648
    %v3333 = vmul.f32 %v3332, 1.442695
    %v3334 = vpow.pop %v3333
    %v3335 = vadd.f32 %v3334, 1.0
    %v3336 = vrcp.pop %v3335
    %v3337 = vmul.f32 1.0, %v3336
    %v3338 = vtanh.pop %v3331
    %v3340 = vrot.slane %v3233, 6
    %v3342 = vmul.f32 %v3337, %v3340
    %3344 = vrot.lane.b32.xlu0 %v3338, 64
    %v3345 = vpop.permute.xlu0 %3344
    %v3347 = vmul.f32 %v3337, %v3345
    %3349 = vrot.lane.b32.xlu0 %v3347, 32
    %v3350 = vpop.permute.xlu0 %3349
    %v3352 = vadd.f32 %v3342, %v3350
    %v3353 = vtanh.pop %v3352
    %3355 = vrot.lane.b32.xlu0 %v3353, 64
    %v3356 = vpop.permute.xlu0 %3355
    %v3358 = vmul.f32 %v3337, %v3356
    %vm3359 = vcmp.eq.s32.totalorder %v78, 2
    %v3360 = vsel %vm3359, 1, 0
    %3361 = vset.pattern.permute.xlu0 0
    %3362 = vperm.xlu0 %3361, %v3360
    %v3363 = vpop.permute.xlu0 %3362
    %vm3364 = vcmp.eq.s32.totalorder %v3363, 1
    %v3366 = vrot.slane %v3358, 4
    %3367 = vrot.lane.b32.xlu0 %v3366, 32
    %v3368 = vpop.permute.xlu0 %3367
    %v3370 = vsel %vm3364, %v3368, %v3255
    %v3371 = vsel %vm185, %v3368, 0
    %3373 = vmatprep.subr.mxu0 0.0
    %3374 = vmatpush1.msra.mxu0 %v2935
    %3375 = vmatprep.subr.mxu0 0.0
    %3376 = vmatpush1.msra.mxu0 %v2936
    %3377 = vmatprep.subr.mxu0 0.0
    %3378 = vmatpush1.msra.mxu0 %v2937
    %3379 = vmatprep.subr.mxu0 0.0
    %3380 = vmatpush1.msra.mxu0 %v2938
    %3381 = vmatprep.subr.mxu0 0.0
    %3382 = vmatpush1.msra.mxu0 0.0
    %3383 = vmatprep.subr.mxu0 0.0
    %3384 = vmatpush1.msra.mxu0 0.0
    %3385 = vmatprep.subr.mxu0 0.0
    %3386 = vmatpush1.msra.mxu0 0.0
    %3387 = vmatprep.subr.mxu0 0.0
    %3388 = vmatpush1.msra.mxu0 0.0
    %3389 = vmatprep.subr.mxu0 0.0
    %3390 = vmatpush1.msra.mxu0 0.0
    %3391 = vmatprep.subr.mxu0 0.0
    %3392 = vmatpush1.msra.mxu0 0.0
    %3393 = vmatprep.subr.mxu0 0.0
    %3394 = vmatpush1.msra.mxu0 0.0
    %3395 = vmatprep.subr.mxu0 0.0
    %3396 = vmatpush1.msra.mxu0 0.0
    %3397 = vmatprep.subr.mxu0 0.0
    %3398 = vmatpush1.msra.mxu0 0.0
    %3399 = vmatprep.subr.mxu0 0.0
    %3400 = vmatpush1.msra.mxu0 0.0
    %3401 = vmatprep.subr.mxu0 0.0
    %3402 = vmatpush1.msra.mxu0 0.0
    %3403 = vmatprep.subr.mxu0 0.0
    %3404 = vmatpush1.msra.mxu0 0.0
    %3405 = vmatprep.subr.mxu0 0.0
    %3406 = vmatpush1.msra.mxu0 0.0
    %3407 = vmatprep.subr.mxu0 0.0
    %3408 = vmatpush1.msra.mxu0 0.0
    %3409 = vmatprep.subr.mxu0 0.0
    %3410 = vmatpush1.msra.mxu0 0.0
    %3411 = vmatprep.subr.mxu0 0.0
    %3412 = vmatpush1.msra.mxu0 0.0
    %3413 = vmatprep.subr.mxu0 0.0
    %3414 = vmatpush1.msra.mxu0 0.0
    %3415 = vmatprep.subr.mxu0 0.0
    %3416 = vmatpush1.msra.mxu0 0.0
    %3417 = vmatprep.subr.mxu0 0.0
    %3418 = vmatpush1.msra.mxu0 0.0
    %3419 = vmatprep.subr.mxu0 0.0
    %3420 = vmatpush1.msra.mxu0 0.0
    %3421 = vmatprep.subr.mxu0 0.0
    %3422 = vmatpush1.msra.mxu0 0.0
    %3423 = vmatprep.subr.mxu0 0.0
    %3424 = vmatpush1.msra.mxu0 0.0
    %3425 = vmatprep.subr.mxu0 0.0
    %3426 = vmatpush1.msra.mxu0 0.0
    %3427 = vmatprep.subr.mxu0 0.0
    %3428 = vmatpush1.msra.mxu0 0.0
    %3429 = vmatprep.subr.mxu0 0.0
    %3430 = vmatpush1.msra.mxu0 0.0
    %3431 = vmatprep.subr.mxu0 0.0
    %3432 = vmatpush1.msra.mxu0 0.0
    %3433 = vmatprep.subr.mxu0 0.0
    %3434 = vmatpush1.msra.mxu0 0.0
    %3435 = vmatprep.subr.mxu0 0.0
    %3436 = vmatpush1.msra.mxu0 0.0
    %3437 = vmatprep.mubr.f32.mxu0 0.0
    %3438 = vmatmul.mubr.f32.gmra.mrb[0].mxu0 %v3371
    %v3439 = vpop.f32.mrb[0].mxu0
    %v3440 = vadd.f32 0.0, %v3439
    %v3441 = vpop.f32.mrb[0].mxu0
    %3442 = vdwg.mxu0
    %v3444 = vrot.slane %v3440, 2
    %v3446 = vadd.f32 %v3024, %v3444
    %v3447 = vxor.u32 %v3446, 2147483648
    %v3448 = vmul.f32 %v3447, 1.442695
    %v3449 = vpow.pop %v3448
    %v3450 = vadd.f32 %v3449, 1.0
    %v3451 = vrcp.pop %v3450
    %v3452 = vmul.f32 1.0, %v3451
    %v3453 = vtanh.pop %v3446
    %v3455 = vrot.slane %v3352, 6
    %v3457 = vmul.f32 %v3452, %v3455
    %3459 = vrot.lane.b32.xlu0 %v3453, 64
    %v3460 = vpop.permute.xlu0 %3459
    %v3462 = vmul.f32 %v3452, %v3460
    %3464 = vrot.lane.b32.xlu0 %v3462, 32
    %v3465 = vpop.permute.xlu0 %3464
    %v3467 = vadd.f32 %v3457, %v3465
    %v3468 = vtanh.pop %v3467
    %3470 = vrot.lane.b32.xlu0 %v3468, 64
    %v3471 = vpop.permute.xlu0 %3470
    %v3473 = vmul.f32 %v3452, %v3471
    %vm3474 = vcmp.eq.s32.totalorder %v78, 3
    %v3475 = vsel %vm3474, 1, 0
    %3476 = vset.pattern.permute.xlu0 0
    %3477 = vperm.xlu0 %3476, %v3475
    %v3478 = vpop.permute.xlu0 %3477
    %vm3479 = vcmp.eq.s32.totalorder %v3478, 1
    %v3481 = vrot.slane %v3473, 6
    %3482 = vrot.lane.b32.xlu0 %v3481, 32
    %v3483 = vpop.permute.xlu0 %3482
    %v3485 = vsel %vm3479, %v3483, %v3370
    %v3486 = vsel %vm185, %v3483, 0
    %3488 = vmatprep.subr.mxu0 0.0
    %3489 = vmatpush1.msra.mxu0 %v2935
    %3490 = vmatprep.subr.mxu0 0.0
    %3491 = vmatpush1.msra.mxu0 %v2936
    %3492 = vmatprep.subr.mxu0 0.0
    %3493 = vmatpush1.msra.mxu0 %v2937
    %3494 = vmatprep.subr.mxu0 0.0
    %3495 = vmatpush1.msra.mxu0 %v2938
    %3496 = vmatprep.subr.mxu0 0.0
    %3497 = vmatpush1.msra.mxu0 0.0
    %3498 = vmatprep.subr.mxu0 0.0
    %3499 = vmatpush1.msra.mxu0 0.0
    %3500 = vmatprep.subr.mxu0 0.0
    %3501 = vmatpush1.msra.mxu0 0.0
    %3502 = vmatprep.subr.mxu0 0.0
    %3503 = vmatpush1.msra.mxu0 0.0
    %3504 = vmatprep.subr.mxu0 0.0
    %3505 = vmatpush1.msra.mxu0 0.0
    %3506 = vmatprep.subr.mxu0 0.0
    %3507 = vmatpush1.msra.mxu0 0.0
    %3508 = vmatprep.subr.mxu0 0.0
    %3509 = vmatpush1.msra.mxu0 0.0
    %3510 = vmatprep.subr.mxu0 0.0
    %3511 = vmatpush1.msra.mxu0 0.0
    %3512 = vmatprep.subr.mxu0 0.0
    %3513 = vmatpush1.msra.mxu0 0.0
    %3514 = vmatprep.subr.mxu0 0.0
    %3515 = vmatpush1.msra.mxu0 0.0
    %3516 = vmatprep.subr.mxu0 0.0
    %3517 = vmatpush1.msra.mxu0 0.0
    %3518 = vmatprep.subr.mxu0 0.0
    %3519 = vmatpush1.msra.mxu0 0.0
    %3520 = vmatprep.subr.mxu0 0.0
    %3521 = vmatpush1.msra.mxu0 0.0
    %3522 = vmatprep.subr.mxu0 0.0
    %3523 = vmatpush1.msra.mxu0 0.0
    %3524 = vmatprep.subr.mxu0 0.0
    %3525 = vmatpush1.msra.mxu0 0.0
    %3526 = vmatprep.subr.mxu0 0.0
    %3527 = vmatpush1.msra.mxu0 0.0
    %3528 = vmatprep.subr.mxu0 0.0
    %3529 = vmatpush1.msra.mxu0 0.0
    %3530 = vmatprep.subr.mxu0 0.0
    %3531 = vmatpush1.msra.mxu0 0.0
    %3532 = vmatprep.subr.mxu0 0.0
    %3533 = vmatpush1.msra.mxu0 0.0
    %3534 = vmatprep.subr.mxu0 0.0
    %3535 = vmatpush1.msra.mxu0 0.0
    %3536 = vmatprep.subr.mxu0 0.0
    %3537 = vmatpush1.msra.mxu0 0.0
    %3538 = vmatprep.subr.mxu0 0.0
    %3539 = vmatpush1.msra.mxu0 0.0
    %3540 = vmatprep.subr.mxu0 0.0
    %3541 = vmatpush1.msra.mxu0 0.0
    %3542 = vmatprep.subr.mxu0 0.0
    %3543 = vmatpush1.msra.mxu0 0.0
    %3544 = vmatprep.subr.mxu0 0.0
    %3545 = vmatpush1.msra.mxu0 0.0
    %3546 = vmatprep.subr.mxu0 0.0
    %3547 = vmatpush1.msra.mxu0 0.0
    %3548 = vmatprep.subr.mxu0 0.0
    %3549 = vmatpush1.msra.mxu0 0.0
    %3550 = vmatprep.subr.mxu0 0.0
    %3551 = vmatpush1.msra.mxu0 0.0
    %3552 = vmatprep.mubr.f32.mxu0 0.0
    %3553 = vmatmul.mubr.f32.gmra.mrb[0].mxu0 %v3486
    %v3554 = vpop.f32.mrb[0].mxu0
    %v3555 = vadd.f32 0.0, %v3554
    %v3556 = vpop.f32.mrb[0].mxu0
    %3557 = vdwg.mxu0
    %v3558 = vadd.f32 %v3029, %v3555
    %v3559 = vxor.u32 %v3558, 2147483648
    %v3560 = vmul.f32 %v3559, 1.442695
    %v3561 = vpow.pop %v3560
    %v3562 = vadd.f32 %v3561, 1.0
    %v3563 = vrcp.pop %v3562
    %v3564 = vmul.f32 1.0, %v3563
    %v3565 = vtanh.pop %v3558
    %v3567 = vrot.slane %v3467, 6
    %v3569 = vmul.f32 %v3564, %v3567
    %3571 = vrot.lane.b32.xlu0 %v3565, 64
    %v3572 = vpop.permute.xlu0 %3571
    %v3574 = vmul.f32 %v3564, %v3572
    %3576 = vrot.lane.b32.xlu0 %v3574, 32
    %v3577 = vpop.permute.xlu0 %3576
    %v3579 = vadd.f32 %v3569, %v3577
    %v3580 = vtanh.pop %v3579
    %3582 = vrot.lane.b32.xlu0 %v3580, 64
    %v3583 = vpop.permute.xlu0 %3582
    %v3585 = vmul.f32 %v3564, %v3583
    %vm3586 = vcmp.eq.s32.totalorder %v78, 4
    %v3587 = vsel %vm3586, 1, 0
    %3588 = vset.pattern.permute.xlu0 0
    %3589 = vperm.xlu0 %3588, %v3587
    %v3590 = vpop.permute.xlu0 %3589
    %vm3591 = vcmp.eq.s32.totalorder %v3590, 1
    %3593 = vrot.lane.b32.xlu0 %v3485, 96
    %v3594 = vpop.permute.xlu0 %3593
    %v3596 = vsel %vm3591, %v3585, %v3594
    %3598 = vrot.lane.b32.xlu0 %v3585, 32
    %v3599 = vpop.permute.xlu0 %3598
    %v3600 = vsel %vm185, %v3599, 0
    %3602 = vmatprep.subr.mxu0 0.0
    %3603 = vmatpush1.msra.mxu0 %v2935
    %3604 = vmatprep.subr.mxu0 0.0
    %3605 = vmatpush1.msra.mxu0 %v2936
    %3606 = vmatprep.subr.mxu0 0.0
    %3607 = vmatpush1.msra.mxu0 %v2937
    %3608 = vmatprep.subr.mxu0 0.0
    %3609 = vmatpush1.msra.mxu0 %v2938
    %3610 = vmatprep.subr.mxu0 0.0
    %3611 = vmatpush1.msra.mxu0 0.0
    %3612 = vmatprep.subr.mxu0 0.0
    %3613 = vmatpush1.msra.mxu0 0.0
    %3614 = vmatprep.subr.mxu0 0.0
    %3615 = vmatpush1.msra.mxu0 0.0
    %3616 = vmatprep.subr.mxu0 0.0
    %3617 = vmatpush1.msra.mxu0 0.0
    %3618 = vmatprep.subr.mxu0 0.0
    %3619 = vmatpush1.msra.mxu0 0.0
    %3620 = vmatprep.subr.mxu0 0.0
    %3621 = vmatpush1.msra.mxu0 0.0
    %3622 = vmatprep.subr.mxu0 0.0
    %3623 = vmatpush1.msra.mxu0 0.0
    %3624 = vmatprep.subr.mxu0 0.0
    %3625 = vmatpush1.msra.mxu0 0.0
    %3626 = vmatprep.subr.mxu0 0.0
    %3627 = vmatpush1.msra.mxu0 0.0
    %3628 = vmatprep.subr.mxu0 0.0
    %3629 = vmatpush1.msra.mxu0 0.0
    %3630 = vmatprep.subr.mxu0 0.0
    %3631 = vmatpush1.msra.mxu0 0.0
    %3632 = vmatprep.subr.mxu0 0.0
    %3633 = vmatpush1.msra.mxu0 0.0
    %3634 = vmatprep.subr.mxu0 0.0
    %3635 = vmatpush1.msra.mxu0 0.0
    %3636 = vmatprep.subr.mxu0 0.0
    %3637 = vmatpush1.msra.mxu0 0.0
    %3638 = vmatprep.subr.mxu0 0.0
    %3639 = vmatpush1.msra.mxu0 0.0
    %3640 = vmatprep.subr.mxu0 0.0
    %3641 = vmatpush1.msra.mxu0 0.0
    %3642 = vmatprep.subr.mxu0 0.0
    %3643 = vmatpush1.msra.mxu0 0.0
    %3644 = vmatprep.subr.mxu0 0.0
    %3645 = vmatpush1.msra.mxu0 0.0
    %3646 = vmatprep.subr.mxu0 0.0
    %3647 = vmatpush1.msra.mxu0 0.0
    %3648 = vmatprep.subr.mxu0 0.0
    %3649 = vmatpush1.msra.mxu0 0.0
    %3650 = vmatprep.subr.mxu0 0.0
    %3651 = vmatpush1.msra.mxu0 0.0
    %3652 = vmatprep.subr.mxu0 0.0
    %3653 = vmatpush1.msra.mxu0 0.0
    %3654 = vmatprep.subr.mxu0 0.0
    %3655 = vmatpush1.msra.mxu0 0.0
    %3656 = vmatprep.subr.mxu0 0.0
    %3657 = vmatpush1.msra.mxu0 0.0
    %3658 = vmatprep.subr.mxu0 0.0
    %3659 = vmatpush1.msra.mxu0 0.0
    %3660 = vmatprep.subr.mxu0 0.0
    %3661 = vmatpush1.msra.mxu0 0.0
    %3662 = vmatprep.subr.mxu0 0.0
    %3663 = vmatpush1.msra.mxu0 0.0
    %3664 = vmatprep.subr.mxu0 0.0
    %3665 = vmatpush1.msra.mxu0 0.0
    %3666 = vmatprep.mubr.f32.mxu0 0.0
    %3667 = vmatmul.mubr.f32.gmra.mrb[0].mxu0 %v3600
    %v3668 = vpop.f32.mrb[0].mxu0
    %v3669 = vadd.f32 0.0, %v3668
    %v3670 = vpop.f32.mrb[0].mxu0
    %3671 = vdwg.mxu0
    %v3673 = vrot.slane %v3669, 6
    %v3675 = vadd.f32 %v3029, %v3673
    %v3676 = vxor.u32 %v3675, 2147483648
    %v3677 = vmul.f32 %v3676, 1.442695
    %v3678 = vpow.pop %v3677
    %v3679 = vadd.f32 %v3678, 1.0
    %v3680 = vrcp.pop %v3679
    %v3681 = vmul.f32 1.0, %v3680
    %v3682 = vtanh.pop %v3675
    %v3684 = vrot.slane %v3579, 6
    %v3686 = vmul.f32 %v3681, %v3684
    %3688 = vrot.lane.b32.xlu0 %v3682, 64
    %v3689 = vpop.permute.xlu0 %3688
    %v3691 = vmul.f32 %v3681, %v3689
    %3693 = vrot.lane.b32.xlu0 %v3691, 32
    %v3694 = vpop.permute.xlu0 %3693
    %v3696 = vadd.f32 %v3686, %v3694
    %v3697 = vtanh.pop %v3696
    %3699 = vrot.lane.b32.xlu0 %v3697, 64
    %v3700 = vpop.permute.xlu0 %3699
    %v3702 = vmul.f32 %v3681, %v3700
    %vm3703 = vcmp.eq.s32.totalorder %v78, 5
    %v3704 = vsel %vm3703, 1, 0
    %3705 = vset.pattern.permute.xlu0 0
    %3706 = vperm.xlu0 %3705, %v3704
    %v3707 = vpop.permute.xlu0 %3706
    %vm3708 = vcmp.eq.s32.totalorder %v3707, 1
    %v3710 = vrot.slane %v3702, 2
    %3711 = vrot.lane.b32.xlu0 %v3710, 32
    %v3712 = vpop.permute.xlu0 %3711
    %3715 = vrot.lane.b32.xlu0 %v3596, 32
    %v3716 = vpop.permute.xlu0 %3715
    %v3718 = vsel %vm3708, %v3712, %v3716
    %v3719 = vsel %vm185, %v3712, 0
    %3721 = vmatprep.subr.mxu0 0.0
    %3722 = vmatpush1.msra.mxu0 %v2935
    %3723 = vmatprep.subr.mxu0 0.0
    %3724 = vmatpush1.msra.mxu0 %v2936
    %3725 = vmatprep.subr.mxu0 0.0
    %3726 = vmatpush1.msra.mxu0 %v2937
    %3727 = vmatprep.subr.mxu0 0.0
    %3728 = vmatpush1.msra.mxu0 %v2938
    %3729 = vmatprep.subr.mxu0 0.0
    %3730 = vmatpush1.msra.mxu0 0.0
    %3731 = vmatprep.subr.mxu0 0.0
    %3732 = vmatpush1.msra.mxu0 0.0
    %3733 = vmatprep.subr.mxu0 0.0
    %3734 = vmatpush1.msra.mxu0 0.0
    %3735 = vmatprep.subr.mxu0 0.0
    %3736 = vmatpush1.msra.mxu0 0.0
    %3737 = vmatprep.subr.mxu0 0.0
    %3738 = vmatpush1.msra.mxu0 0.0
    %3739 = vmatprep.subr.mxu0 0.0
    %3740 = vmatpush1.msra.mxu0 0.0
    %3741 = vmatprep.subr.mxu0 0.0
    %3742 = vmatpush1.msra.mxu0 0.0
    %3743 = vmatprep.subr.mxu0 0.0
    %3744 = vmatpush1.msra.mxu0 0.0
    %3745 = vmatprep.subr.mxu0 0.0
    %3746 = vmatpush1.msra.mxu0 0.0
    %3747 = vmatprep.subr.mxu0 0.0
    %3748 = vmatpush1.msra.mxu0 0.0
    %3749 = vmatprep.subr.mxu0 0.0
    %3750 = vmatpush1.msra.mxu0 0.0
    %3751 = vmatprep.subr.mxu0 0.0
    %3752 = vmatpush1.msra.mxu0 0.0
    %3753 = vmatprep.subr.mxu0 0.0
    %3754 = vmatpush1.msra.mxu0 0.0
    %3755 = vmatprep.subr.mxu0 0.0
    %3756 = vmatpush1.msra.mxu0 0.0
    %3757 = vmatprep.subr.mxu0 0.0
    %3758 = vmatpush1.msra.mxu0 0.0
    %3759 = vmatprep.subr.mxu0 0.0
    %3760 = vmatpush1.msra.mxu0 0.0
    %3761 = vmatprep.subr.mxu0 0.0
    %3762 = vmatpush1.msra.mxu0 0.0
    %3763 = vmatprep.subr.mxu0 0.0
    %3764 = vmatpush1.msra.mxu0 0.0
    %3765 = vmatprep.subr.mxu0 0.0
    %3766 = vmatpush1.msra.mxu0 0.0
    %3767 = vmatprep.subr.mxu0 0.0
    %3768 = vmatpush1.msra.mxu0 0.0
    %3769 = vmatprep.subr.mxu0 0.0
    %3770 = vmatpush1.msra.mxu0 0.0
    %3771 = vmatprep.subr.mxu0 0.0
    %3772 = vmatpush1.msra.mxu0 0.0
    %3773 = vmatprep.subr.mxu0 0.0
    %3774 = vmatpush1.msra.mxu0 0.0
    %3775 = vmatprep.subr.mxu0 0.0
    %3776 = vmatpush1.msra.mxu0 0.0
    %3777 = vmatprep.subr.mxu0 0.0
    %3778 = vmatpush1.msra.mxu0 0.0
    %3779 = vmatprep.subr.mxu0 0.0
    %3780 = vmatpush1.msra.mxu0 0.0
    %3781 = vmatprep.subr.mxu0 0.0
    %3782 = vmatpush1.msra.mxu0 0.0
    %3783 = vmatprep.subr.mxu0 0.0
    %3784 = vmatpush1.msra.mxu0 0.0
    %3785 = vmatprep.mubr.f32.mxu0 0.0
    %3786 = vmatmul.mubr.f32.gmra.mrb[0].mxu0 %v3719
    %v3787 = vpop.f32.mrb[0].mxu0
    %v3788 = vadd.f32 0.0, %v3787
    %v3789 = vpop.f32.mrb[0].mxu0
    %3790 = vdwg.mxu0
    %v3792 = vrot.slane %v3788, 4
    %v3794 = vadd.f32 %v3029, %v3792
    %v3795 = vxor.u32 %v3794, 2147483648
    %v3796 = vmul.f32 %v3795, 1.442695
    %v3797 = vpow.pop %v3796
    %v3798 = vadd.f32 %v3797, 1.0
    %v3799 = vrcp.pop %v3798
    %v3800 = vmul.f32 1.0, %v3799
    %v3801 = vtanh.pop %v3794
    %v3803 = vrot.slane %v3696, 6
    %v3805 = vmul.f32 %v3800, %v3803
    %3807 = vrot.lane.b32.xlu0 %v3801, 64
    %v3808 = vpop.permute.xlu0 %3807
    %v3810 = vmul.f32 %v3800, %v3808
    %3812 = vrot.lane.b32.xlu0 %v3810, 32
    %v3813 = vpop.permute.xlu0 %3812
    %v3815 = vadd.f32 %v3805, %v3813
    %v3816 = vtanh.pop %v3815
    %3818 = vrot.lane.b32.xlu0 %v3816, 64
    %v3819 = vpop.permute.xlu0 %3818
    %v3821 = vmul.f32 %v3800, %v3819
    %vm3822 = vcmp.eq.s32.totalorder %v78, 6
    %v3823 = vsel %vm3822, 1, 0
    %3824 = vset.pattern.permute.xlu0 0
    %3825 = vperm.xlu0 %3824, %v3823
    %v3826 = vpop.permute.xlu0 %3825
    %vm3827 = vcmp.eq.s32.totalorder %v3826, 1
    %v3829 = vrot.slane %v3821, 4
    %3830 = vrot.lane.b32.xlu0 %v3829, 32
    %v3831 = vpop.permute.xlu0 %3830
    %v3833 = vsel %vm3827, %v3831, %v3718
    %v3834 = vsel %vm185, %v3831, 0
    %3836 = vmatprep.subr.mxu0 0.0
    %3837 = vmatpush1.msra.mxu0 %v2935
    %3838 = vmatprep.subr.mxu0 0.0
    %3839 = vmatpush1.msra.mxu0 %v2936
    %3840 = vmatprep.subr.mxu0 0.0
    %3841 = vmatpush1.msra.mxu0 %v2937
    %3842 = vmatprep.subr.mxu0 0.0
    %3843 = vmatpush1.msra.mxu0 %v2938
    %3844 = vmatprep.subr.mxu0 0.0
    %3845 = vmatpush1.msra.mxu0 0.0
    %3846 = vmatprep.subr.mxu0 0.0
    %3847 = vmatpush1.msra.mxu0 0.0
    %3848 = vmatprep.subr.mxu0 0.0
    %3849 = vmatpush1.msra.mxu0 0.0
    %3850 = vmatprep.subr.mxu0 0.0
    %3851 = vmatpush1.msra.mxu0 0.0
    %3852 = vmatprep.subr.mxu0 0.0
    %3853 = vmatpush1.msra.mxu0 0.0
    %3854 = vmatprep.subr.mxu0 0.0
    %3855 = vmatpush1.msra.mxu0 0.0
    %3856 = vmatprep.subr.mxu0 0.0
    %3857 = vmatpush1.msra.mxu0 0.0
    %3858 = vmatprep.subr.mxu0 0.0
    %3859 = vmatpush1.msra.mxu0 0.0
    %3860 = vmatprep.subr.mxu0 0.0
    %3861 = vmatpush1.msra.mxu0 0.0
    %3862 = vmatprep.subr.mxu0 0.0
    %3863 = vmatpush1.msra.mxu0 0.0
    %3864 = vmatprep.subr.mxu0 0.0
    %3865 = vmatpush1.msra.mxu0 0.0
    %3866 = vmatprep.subr.mxu0 0.0
    %3867 = vmatpush1.msra.mxu0 0.0
    %3868 = vmatprep.subr.mxu0 0.0
    %3869 = vmatpush1.msra.mxu0 0.0
    %3870 = vmatprep.subr.mxu0 0.0
    %3871 = vmatpush1.msra.mxu0 0.0
    %3872 = vmatprep.subr.mxu0 0.0
    %3873 = vmatpush1.msra.mxu0 0.0
    %3874 = vmatprep.subr.mxu0 0.0
    %3875 = vmatpush1.msra.mxu0 0.0
    %3876 = vmatprep.subr.mxu0 0.0
    %3877 = vmatpush1.msra.mxu0 0.0
    %3878 = vmatprep.subr.mxu0 0.0
    %3879 = vmatpush1.msra.mxu0 0.0
    %3880 = vmatprep.subr.mxu0 0.0
    %3881 = vmatpush1.msra.mxu0 0.0
    %3882 = vmatprep.subr.mxu0 0.0
    %3883 = vmatpush1.msra.mxu0 0.0
    %3884 = vmatprep.subr.mxu0 0.0
    %3885 = vmatpush1.msra.mxu0 0.0
    %3886 = vmatprep.subr.mxu0 0.0
    %3887 = vmatpush1.msra.mxu0 0.0
    %3888 = vmatprep.subr.mxu0 0.0
    %3889 = vmatpush1.msra.mxu0 0.0
    %3890 = vmatprep.subr.mxu0 0.0
    %3891 = vmatpush1.msra.mxu0 0.0
    %3892 = vmatprep.subr.mxu0 0.0
    %3893 = vmatpush1.msra.mxu0 0.0
    %3894 = vmatprep.subr.mxu0 0.0
    %3895 = vmatpush1.msra.mxu0 0.0
    %3896 = vmatprep.subr.mxu0 0.0
    %3897 = vmatpush1.msra.mxu0 0.0
    %3898 = vmatprep.subr.mxu0 0.0
    %3899 = vmatpush1.msra.mxu0 0.0
    %3900 = vmatprep.mubr.f32.mxu0 0.0
    %3901 = vmatmul.mubr.f32.gmra.mrb[0].mxu0 %v3834
    %v3902 = vpop.f32.mrb[0].mxu0
    %v3903 = vadd.f32 0.0, %v3902
    %v3904 = vpop.f32.mrb[0].mxu0
    %3905 = vdwg.mxu0
    %v3907 = vrot.slane %v3903, 2
    %v3909 = vadd.f32 %v3029, %v3907
    %v3910 = vxor.u32 %v3909, 2147483648
    %v3911 = vmul.f32 %v3910, 1.442695
    %v3912 = vpow.pop %v3911
    %v3913 = vadd.f32 %v3912, 1.0
    %v3914 = vrcp.pop %v3913
    %v3915 = vmul.f32 1.0, %v3914
    %v3916 = vtanh.pop %v3909
    %v3918 = vrot.slane %v3815, 6
    %v3920 = vmul.f32 %v3915, %v3918
    %3922 = vrot.lane.b32.xlu0 %v3916, 64
    %v3923 = vpop.permute.xlu0 %3922
    %v3925 = vmul.f32 %v3915, %v3923
    %3927 = vrot.lane.b32.xlu0 %v3925, 32
    %v3928 = vpop.permute.xlu0 %3927
    %v3930 = vadd.f32 %v3920, %v3928
    %v3931 = vtanh.pop %v3930
    %3933 = vrot.lane.b32.xlu0 %v3931, 64
    %v3934 = vpop.permute.xlu0 %3933
    %v3936 = vmul.f32 %v3915, %v3934
    %vm3937 = vcmp.eq.s32.totalorder %v78, 7
    %v3938 = vsel %vm3937, 1, 0
    %3939 = vset.pattern.permute.xlu0 0
    %3940 = vperm.xlu0 %3939, %v3938
    %v3941 = vpop.permute.xlu0 %3940
    %vm3942 = vcmp.eq.s32.totalorder %v3941, 1
    %v3944 = vrot.slane %v3936, 6
    %3945 = vrot.lane.b32.xlu0 %v3944, 32
    %v3946 = vpop.permute.xlu0 %3945
    %v3948 = vsel %vm3942, %v3946, %v3833
    %v3949 = vsel %vm106, %v3126, %v3239
    %v3950 = vsel %vm1029, %v3949, %v3358
    %v3951 = vsel %vm1031, %v3950, %v3473
    %v3952 = vsel %vm106, %v3585, %v3702
    %v3953 = vsel %vm1029, %v3952, %v3821
    %v3954 = vsel %vm1031, %v3953, %v3936
    %s3955 = scalar_lea.vmem [#allocation5], 96
    %v3956 = vld [vmem:[%s3955] sm:$0xff]
    %v3957 = vld [vmem:[%s3955 + $0x8] sm:$0xff]
    %v3958 = vld [vmem:[%s3955 + $0x10] sm:$0xff]
    %v3959 = vld [vmem:[%s3955 + $0x18] sm:$0xff]
    %s3960 = scalar_lea.vmem [#allocation7], 96
    %v3961 = vld [vmem:[%s3960] sm:$0xff]
    %v3962 = vld [vmem:[%s3960 + $0x8] sm:$0xff]
    %v3963 = vld [vmem:[%s3960 + $0x10] sm:$0xff]
    %v3964 = vld [vmem:[%s3960 + $0x18] sm:$0xff]
    %s3965 = scalar_lea.vmem %s7, 3
    %v3966 = vld [vmem:[%s3965] sm:$0x1]
    %v3968 = vlaneseq
    %v3969 = vshrl.u32 %v3968, 7
    %v3970 = vsub.s32 0, %v3969
    %v3971 = vrot.slane %v3966, %v3970
    %3975 = vrot.lane.b32.xlu0 %v3951, 32
    %v3976 = vpop.permute.xlu0 %3975
    %3977 = vrot.lane.b32.xlu0 %v3954, 32
    %v3978 = vpop.permute.xlu0 %3977
    %v3979 = vsel %vm185, %v3976, 0
    %v3981 = vsel %vm185, %v3978, 0
    %3983 = vmatprep.subr.mxu0 0.0
    %3984 = vmatpush1.msra.mxu0 %v3956
    %3985 = vmatprep.subr.mxu0 0.0
    %3986 = vmatpush1.msra.mxu0 %v3957
    %3987 = vmatprep.subr.mxu0 0.0
    %3988 = vmatpush1.msra.mxu0 %v3958
    %3989 = vmatprep.subr.mxu0 0.0
    %3990 = vmatpush1.msra.mxu0 %v3959
    %3991 = vmatprep.subr.mxu0 0.0
    %3992 = vmatpush1.msra.mxu0 0.0
    %3993 = vmatprep.subr.mxu0 0.0
    %3994 = vmatpush1.msra.mxu0 0.0
    %3995 = vmatprep.subr.mxu0 0.0
    %3996 = vmatpush1.msra.mxu0 0.0
    %3997 = vmatprep.subr.mxu0 0.0
    %3998 = vmatpush1.msra.mxu0 0.0
    %3999 = vmatprep.subr.mxu0 0.0
    %4000 = vmatpush1.msra.mxu0 0.0
    %4001 = vmatprep.subr.mxu0 0.0
    %4002 = vmatpush1.msra.mxu0 0.0
    %4003 = vmatprep.subr.mxu0 0.0
    %4004 = vmatpush1.msra.mxu0 0.0
    %4005 = vmatprep.subr.mxu0 0.0
    %4006 = vmatpush1.msra.mxu0 0.0
    %4007 = vmatprep.subr.mxu0 0.0
    %4008 = vmatpush1.msra.mxu0 0.0
    %4009 = vmatprep.subr.mxu0 0.0
    %4010 = vmatpush1.msra.mxu0 0.0
    %4011 = vmatprep.subr.mxu0 0.0
    %4012 = vmatpush1.msra.mxu0 0.0
    %4013 = vmatprep.subr.mxu0 0.0
    %4014 = vmatpush1.msra.mxu0 0.0
    %4015 = vmatprep.subr.mxu0 0.0
    %4016 = vmatpush1.msra.mxu0 0.0
    %4017 = vmatprep.subr.mxu0 0.0
    %4018 = vmatpush1.msra.mxu0 0.0
    %4019 = vmatprep.subr.mxu0 0.0
    %4020 = vmatpush1.msra.mxu0 0.0
    %4021 = vmatprep.subr.mxu0 0.0
    %4022 = vmatpush1.msra.mxu0 0.0
    %4023 = vmatprep.subr.mxu0 0.0
    %4024 = vmatpush1.msra.mxu0 0.0
    %4025 = vmatprep.subr.mxu0 0.0
    %4026 = vmatpush1.msra.mxu0 0.0
    %4027 = vmatprep.subr.mxu0 0.0
    %4028 = vmatpush1.msra.mxu0 0.0
    %4029 = vmatprep.subr.mxu0 0.0
    %4030 = vmatpush1.msra.mxu0 0.0
    %4031 = vmatprep.subr.mxu0 0.0
    %4032 = vmatpush1.msra.mxu0 0.0
    %4033 = vmatprep.subr.mxu0 0.0
    %4034 = vmatpush1.msra.mxu0 0.0
    %4035 = vmatprep.subr.mxu0 0.0
    %4036 = vmatpush1.msra.mxu0 0.0
    %4037 = vmatprep.subr.mxu0 0.0
    %4038 = vmatpush1.msra.mxu0 0.0
    %4039 = vmatprep.subr.mxu0 0.0
    %4040 = vmatpush1.msra.mxu0 0.0
    %4041 = vmatprep.subr.mxu0 0.0
    %4042 = vmatpush1.msra.mxu0 0.0
    %4043 = vmatprep.subr.mxu0 0.0
    %4044 = vmatpush1.msra.mxu0 0.0
    %4045 = vmatprep.subr.mxu0 0.0
    %4046 = vmatpush1.msra.mxu0 0.0
    %4047 = vmatprep.mubr.f32.mxu0 0.0
    %4048 = vmatmul.mubr.f32.gmra.mrb[0].mxu0 %v3979
    %v4049 = vpop.f32.mrb[0].mxu0
    %v4050 = vadd.f32 %v3971, %v4049
    %v4051 = vpop.f32.mrb[0].mxu0
    %4052 = vmatprep.mubr.f32.mxu0 0.0
    %4053 = vmatmul.mubr.f32.gmra.mrb[0].mxu0 %v3981
    %v4054 = vpop.f32.mrb[0].mxu0
    %v4055 = vadd.f32 %v3971, %v4054
    %v4056 = vpop.f32.mrb[0].mxu0
    %4057 = vdwg.mxu0
    %4058 = vmatprep.subr.mxu0 0.0
    %4059 = vmatpush1.msra.mxu0 %v3961
    %4060 = vmatprep.subr.mxu0 0.0
    %4061 = vmatpush1.msra.mxu0 %v3962
    %4062 = vmatprep.subr.mxu0 0.0
    %4063 = vmatpush1.msra.mxu0 %v3963
    %4064 = vmatprep.subr.mxu0 0.0
    %4065 = vmatpush1.msra.mxu0 %v3964
    %4066 = vmatprep.subr.mxu0 0.0
    %4067 = vmatpush1.msra.mxu0 0.0
    %4068 = vmatprep.subr.mxu0 0.0
    %4069 = vmatpush1.msra.mxu0 0.0
    %4070 = vmatprep.subr.mxu0 0.0
    %4071 = vmatpush1.msra.mxu0 0.0
    %4072 = vmatprep.subr.mxu0 0.0
    %4073 = vmatpush1.msra.mxu0 0.0
    %4074 = vmatprep.subr.mxu0 0.0
    %4075 = vmatpush1.msra.mxu0 0.0
    %4076 = vmatprep.subr.mxu0 0.0
    %4077 = vmatpush1.msra.mxu0 0.0
    %4078 = vmatprep.subr.mxu0 0.0
    %4079 = vmatpush1.msra.mxu0 0.0
    %4080 = vmatprep.subr.mxu0 0.0
    %4081 = vmatpush1.msra.mxu0 0.0
    %4082 = vmatprep.subr.mxu0 0.0
    %4083 = vmatpush1.msra.mxu0 0.0
    %4084 = vmatprep.subr.mxu0 0.0
    %4085 = vmatpush1.msra.mxu0 0.0
    %4086 = vmatprep.subr.mxu0 0.0
    %4087 = vmatpush1.msra.mxu0 0.0
    %4088 = vmatprep.subr.mxu0 0.0
    %4089 = vmatpush1.msra.mxu0 0.0
    %4090 = vmatprep.subr.mxu0 0.0
    %4091 = vmatpush1.msra.mxu0 0.0
    %4092 = vmatprep.subr.mxu0 0.0
    %4093 = vmatpush1.msra.mxu0 0.0
    %4094 = vmatprep.subr.mxu0 0.0
    %4095 = vmatpush1.msra.mxu0 0.0
    %4096 = vmatprep.subr.mxu0 0.0
    %4097 = vmatpush1.msra.mxu0 0.0
    %4098 = vmatprep.subr.mxu0 0.0
    %4099 = vmatpush1.msra.mxu0 0.0
    %4100 = vmatprep.subr.mxu0 0.0
    %4101 = vmatpush1.msra.mxu0 0.0
    %4102 = vmatprep.subr.mxu0 0.0
    %4103 = vmatpush1.msra.mxu0 0.0
    %4104 = vmatprep.subr.mxu0 0.0
    %4105 = vmatpush1.msra.mxu0 0.0
    %4106 = vmatprep.subr.mxu0 0.0
    %4107 = vmatpush1.msra.mxu0 0.0
    %4108 = vmatprep.subr.mxu0 0.0
    %4109 = vmatpush1.msra.mxu0 0.0
    %4110 = vmatprep.subr.mxu0 0.0
    %4111 = vmatpush1.msra.mxu0 0.0
    %4112 = vmatprep.subr.mxu0 0.0
    %4113 = vmatpush1.msra.mxu0 0.0
    %4114 = vmatprep.subr.mxu0 0.0
    %4115 = vmatpush1.msra.mxu0 0.0
    %4116 = vmatprep.subr.mxu0 0.0
    %4117 = vmatpush1.msra.mxu0 0.0
    %4118 = vmatprep.subr.mxu0 0.0
    %4119 = vmatpush1.msra.mxu0 0.0
    %4120 = vmatprep.subr.mxu0 0.0
    %4121 = vmatpush1.msra.mxu0 0.0
    %4122 = vmatprep.mubr.f32.mxu0 0.0
    %4123 = vmatmul.mubr.f32.gmra.mrb[0].mxu0 %v187
    %v4124 = vpop.f32.mrb[0].mxu0
    %v4125 = vadd.f32 0.0, %v4124
    %v4126 = vpop.f32.mrb[0].mxu0
    %4127 = vdwg.mxu0
    %v4128 = vadd.f32 %v4050, %v4125
    %v4129 = vxor.u32 %v4128, 2147483648
    %v4130 = vmul.f32 %v4129, 1.442695
    %v4131 = vpow.pop %v4130
    %v4132 = vadd.f32 %v4131, 1.0
    %v4133 = vrcp.pop %v4132
    %v4134 = vmul.f32 1.0, %v4133
    %v4135 = vtanh.pop %v4128
    %v4136 = vmul.f32 %v4134, 0.0
    %4138 = vrot.lane.b32.xlu0 %v4135, 64
    %v4139 = vpop.permute.xlu0 %4138
    %v4141 = vmul.f32 %v4134, %v4139
    %4143 = vrot.lane.b32.xlu0 %v4141, 32
    %v4144 = vpop.permute.xlu0 %4143
    %v4146 = vadd.f32 %v4136, %v4144
    %v4147 = vtanh.pop %v4146
    %4149 = vrot.lane.b32.xlu0 %v4147, 64
    %v4150 = vpop.permute.xlu0 %4149
    %v4152 = vmul.f32 %v4134, %v4150
    %v4153 = vsel %vm3132, %v4152, 0.0
    %4155 = vrot.lane.b32.xlu0 %v4152, 32
    %v4156 = vpop.permute.xlu0 %4155
    %v4157 = vsel %vm185, %v4156, 0
    %4159 = vmatprep.subr.mxu0 0.0
    %4160 = vmatpush1.msra.mxu0 %v3961
    %4161 = vmatprep.subr.mxu0 0.0
    %4162 = vmatpush1.msra.mxu0 %v3962
    %4163 = vmatprep.subr.mxu0 0.0
    %4164 = vmatpush1.msra.mxu0 %v3963
    %4165 = vmatprep.subr.mxu0 0.0
    %4166 = vmatpush1.msra.mxu0 %v3964
    %4167 = vmatprep.subr.mxu0 0.0
    %4168 = vmatpush1.msra.mxu0 0.0
    %4169 = vmatprep.subr.mxu0 0.0
    %4170 = vmatpush1.msra.mxu0 0.0
    %4171 = vmatprep.subr.mxu0 0.0
    %4172 = vmatpush1.msra.mxu0 0.0
    %4173 = vmatprep.subr.mxu0 0.0
    %4174 = vmatpush1.msra.mxu0 0.0
    %4175 = vmatprep.subr.mxu0 0.0
    %4176 = vmatpush1.msra.mxu0 0.0
    %4177 = vmatprep.subr.mxu0 0.0
    %4178 = vmatpush1.msra.mxu0 0.0
    %4179 = vmatprep.subr.mxu0 0.0
    %4180 = vmatpush1.msra.mxu0 0.0
    %4181 = vmatprep.subr.mxu0 0.0
    %4182 = vmatpush1.msra.mxu0 0.0
    %4183 = vmatprep.subr.mxu0 0.0
    %4184 = vmatpush1.msra.mxu0 0.0
    %4185 = vmatprep.subr.mxu0 0.0
    %4186 = vmatpush1.msra.mxu0 0.0
    %4187 = vmatprep.subr.mxu0 0.0
    %4188 = vmatpush1.msra.mxu0 0.0
    %4189 = vmatprep.subr.mxu0 0.0
    %4190 = vmatpush1.msra.mxu0 0.0
    %4191 = vmatprep.subr.mxu0 0.0
    %4192 = vmatpush1.msra.mxu0 0.0
    %4193 = vmatprep.subr.mxu0 0.0
    %4194 = vmatpush1.msra.mxu0 0.0
    %4195 = vmatprep.subr.mxu0 0.0
    %4196 = vmatpush1.msra.mxu0 0.0
    %4197 = vmatprep.subr.mxu0 0.0
    %4198 = vmatpush1.msra.mxu0 0.0
    %4199 = vmatprep.subr.mxu0 0.0
    %4200 = vmatpush1.msra.mxu0 0.0
    %4201 = vmatprep.subr.mxu0 0.0
    %4202 = vmatpush1.msra.mxu0 0.0
    %4203 = vmatprep.subr.mxu0 0.0
    %4204 = vmatpush1.msra.mxu0 0.0
    %4205 = vmatprep.subr.mxu0 0.0
    %4206 = vmatpush1.msra.mxu0 0.0
    %4207 = vmatprep.subr.mxu0 0.0
    %4208 = vmatpush1.msra.mxu0 0.0
    %4209 = vmatprep.subr.mxu0 0.0
    %4210 = vmatpush1.msra.mxu0 0.0
    %4211 = vmatprep.subr.mxu0 0.0
    %4212 = vmatpush1.msra.mxu0 0.0
    %4213 = vmatprep.subr.mxu0 0.0
    %4214 = vmatpush1.msra.mxu0 0.0
    %4215 = vmatprep.subr.mxu0 0.0
    %4216 = vmatpush1.msra.mxu0 0.0
    %4217 = vmatprep.subr.mxu0 0.0
    %4218 = vmatpush1.msra.mxu0 0.0
    %4219 = vmatprep.subr.mxu0 0.0
    %4220 = vmatpush1.msra.mxu0 0.0
    %4221 = vmatprep.subr.mxu0 0.0
    %4222 = vmatpush1.msra.mxu0 0.0
    %4223 = vmatprep.mubr.f32.mxu0 0.0
    %4224 = vmatmul.mubr.f32.gmra.mrb[0].mxu0 %v4157
    %v4225 = vpop.f32.mrb[0].mxu0
    %v4226 = vadd.f32 0.0, %v4225
    %v4227 = vpop.f32.mrb[0].mxu0
    %4228 = vdwg.mxu0
    %v4230 = vrot.slane %v4226, 6
    %v4232 = vadd.f32 %v4050, %v4230
    %v4233 = vxor.u32 %v4232, 2147483648
    %v4234 = vmul.f32 %v4233, 1.442695
    %v4235 = vpow.pop %v4234
    %v4236 = vadd.f32 %v4235, 1.0
    %v4237 = vrcp.pop %v4236
    %v4238 = vmul.f32 1.0, %v4237
    %v4239 = vtanh.pop %v4232
    %v4241 = vrot.slane %v4146, 6
    %v4243 = vmul.f32 %v4238, %v4241
    %4245 = vrot.lane.b32.xlu0 %v4239, 64
    %v4246 = vpop.permute.xlu0 %4245
    %v4248 = vmul.f32 %v4238, %v4246
    %4250 = vrot.lane.b32.xlu0 %v4248, 32
    %v4251 = vpop.permute.xlu0 %4250
    %v4253 = vadd.f32 %v4243, %v4251
    %v4254 = vtanh.pop %v4253
    %4256 = vrot.lane.b32.xlu0 %v4254, 64
    %v4257 = vpop.permute.xlu0 %4256
    %v4259 = vmul.f32 %v4238, %v4257
    %v4261 = vrot.slane %v4259, 2
    %4262 = vrot.lane.b32.xlu0 %v4261, 32
    %v4263 = vpop.permute.xlu0 %4262
    %4266 = vrot.lane.b32.xlu0 %v4153, 32
    %v4267 = vpop.permute.xlu0 %4266
    %v4269 = vsel %vm3245, %v4263, %v4267
    %v4270 = vsel %vm185, %v4263, 0
    %4272 = vmatprep.subr.mxu0 0.0
    %4273 = vmatpush1.msra.mxu0 %v3961
    %4274 = vmatprep.subr.mxu0 0.0
    %4275 = vmatpush1.msra.mxu0 %v3962
    %4276 = vmatprep.subr.mxu0 0.0
    %4277 = vmatpush1.msra.mxu0 %v3963
    %4278 = vmatprep.subr.mxu0 0.0
    %4279 = vmatpush1.msra.mxu0 %v3964
    %4280 = vmatprep.subr.mxu0 0.0
    %4281 = vmatpush1.msra.mxu0 0.0
    %4282 = vmatprep.subr.mxu0 0.0
    %4283 = vmatpush1.msra.mxu0 0.0
    %4284 = vmatprep.subr.mxu0 0.0
    %4285 = vmatpush1.msra.mxu0 0.0
    %4286 = vmatprep.subr.mxu0 0.0
    %4287 = vmatpush1.msra.mxu0 0.0
    %4288 = vmatprep.subr.mxu0 0.0
    %4289 = vmatpush1.msra.mxu0 0.0
    %4290 = vmatprep.subr.mxu0 0.0
    %4291 = vmatpush1.msra.mxu0 0.0
    %4292 = vmatprep.subr.mxu0 0.0
    %4293 = vmatpush1.msra.mxu0 0.0
    %4294 = vmatprep.subr.mxu0 0.0
    %4295 = vmatpush1.msra.mxu0 0.0
    %4296 = vmatprep.subr.mxu0 0.0
    %4297 = vmatpush1.msra.mxu0 0.0
    %4298 = vmatprep.subr.mxu0 0.0
    %4299 = vmatpush1.msra.mxu0 0.0
    %4300 = vmatprep.subr.mxu0 0.0
    %4301 = vmatpush1.msra.mxu0 0.0
    %4302 = vmatprep.subr.mxu0 0.0
    %4303 = vmatpush1.msra.mxu0 0.0
    %4304 = vmatprep.subr.mxu0 0.0
    %4305 = vmatpush1.msra.mxu0 0.0
    %4306 = vmatprep.subr.mxu0 0.0
    %4307 = vmatpush1.msra.mxu0 0.0
    %4308 = vmatprep.subr.mxu0 0.0
    %4309 = vmatpush1.msra.mxu0 0.0
    %4310 = vmatprep.subr.mxu0 0.0
    %4311 = vmatpush1.msra.mxu0 0.0
    %4312 = vmatprep.subr.mxu0 0.0
    %4313 = vmatpush1.msra.mxu0 0.0
    %4314 = vmatprep.subr.mxu0 0.0
    %4315 = vmatpush1.msra.mxu0 0.0
    %4316 = vmatprep.subr.mxu0 0.0
    %4317 = vmatpush1.msra.mxu0 0.0
    %4318 = vmatprep.subr.mxu0 0.0
    %4319 = vmatpush1.msra.mxu0 0.0
    %4320 = vmatprep.subr.mxu0 0.0
    %4321 = vmatpush1.msra.mxu0 0.0
    %4322 = vmatprep.subr.mxu0 0.0
    %4323 = vmatpush1.msra.mxu0 0.0
    %4324 = vmatprep.subr.mxu0 0.0
    %4325 = vmatpush1.msra.mxu0 0.0
    %4326 = vmatprep.subr.mxu0 0.0
    %4327 = vmatpush1.msra.mxu0 0.0
    %4328 = vmatprep.subr.mxu0 0.0
    %4329 = vmatpush1.msra.mxu0 0.0
    %4330 = vmatprep.subr.mxu0 0.0
    %4331 = vmatpush1.msra.mxu0 0.0
    %4332 = vmatprep.subr.mxu0 0.0
    %4333 = vmatpush1.msra.mxu0 0.0
    %4334 = vmatprep.subr.mxu0 0.0
    %4335 = vmatpush1.msra.mxu0 0.0
    %4336 = vmatprep.mubr.f32.mxu0 0.0
    %4337 = vmatmul.mubr.f32.gmra.mrb[0].mxu0 %v4270
    %v4338 = vpop.f32.mrb[0].mxu0
    %v4339 = vadd.f32 0.0, %v4338
    %v4340 = vpop.f32.mrb[0].mxu0
    %4341 = vdwg.mxu0
    %v4343 = vrot.slane %v4339, 4
    %v4345 = vadd.f32 %v4050, %v4343
    %v4346 = vxor.u32 %v4345, 2147483648
    %v4347 = vmul.f32 %v4346, 1.442695
    %v4348 = vpow.pop %v4347
    %v4349 = vadd.f32 %v4348, 1.0
    %v4350 = vrcp.pop %v4349
    %v4351 = vmul.f32 1.0, %v4350
    %v4352 = vtanh.pop %v4345
    %v4354 = vrot.slane %v4253, 6
    %v4356 = vmul.f32 %v4351, %v4354
    %4358 = vrot.lane.b32.xlu0 %v4352, 64
    %v4359 = vpop.permute.xlu0 %4358
    %v4361 = vmul.f32 %v4351, %v4359
    %4363 = vrot.lane.b32.xlu0 %v4361, 32
    %v4364 = vpop.permute.xlu0 %4363
    %v4366 = vadd.f32 %v4356, %v4364
    %v4367 = vtanh.pop %v4366
    %4369 = vrot.lane.b32.xlu0 %v4367, 64
    %v4370 = vpop.permute.xlu0 %4369
    %v4372 = vmul.f32 %v4351, %v4370
    %v4374 = vrot.slane %v4372, 4
    %4375 = vrot.lane.b32.xlu0 %v4374, 32
    %v4376 = vpop.permute.xlu0 %4375
    %v4378 = vsel %vm3364, %v4376, %v4269
    %v4379 = vsel %vm185, %v4376, 0
    %4381 = vmatprep.subr.mxu0 0.0
    %4382 = vmatpush1.msra.mxu0 %v3961
    %4383 = vmatprep.subr.mxu0 0.0
    %4384 = vmatpush1.msra.mxu0 %v3962
    %4385 = vmatprep.subr.mxu0 0.0
    %4386 = vmatpush1.msra.mxu0 %v3963
    %4387 = vmatprep.subr.mxu0 0.0
    %4388 = vmatpush1.msra.mxu0 %v3964
    %4389 = vmatprep.subr.mxu0 0.0
    %4390 = vmatpush1.msra.mxu0 0.0
    %4391 = vmatprep.subr.mxu0 0.0
    %4392 = vmatpush1.msra.mxu0 0.0
    %4393 = vmatprep.subr.mxu0 0.0
    %4394 = vmatpush1.msra.mxu0 0.0
    %4395 = vmatprep.subr.mxu0 0.0
    %4396 = vmatpush1.msra.mxu0 0.0
    %4397 = vmatprep.subr.mxu0 0.0
    %4398 = vmatpush1.msra.mxu0 0.0
    %4399 = vmatprep.subr.mxu0 0.0
    %4400 = vmatpush1.msra.mxu0 0.0
    %4401 = vmatprep.subr.mxu0 0.0
    %4402 = vmatpush1.msra.mxu0 0.0
    %4403 = vmatprep.subr.mxu0 0.0
    %4404 = vmatpush1.msra.mxu0 0.0
    %4405 = vmatprep.subr.mxu0 0.0
    %4406 = vmatpush1.msra.mxu0 0.0
    %4407 = vmatprep.subr.mxu0 0.0
    %4408 = vmatpush1.msra.mxu0 0.0
    %4409 = vmatprep.subr.mxu0 0.0
    %4410 = vmatpush1.msra.mxu0 0.0
    %4411 = vmatprep.subr.mxu0 0.0
    %4412 = vmatpush1.msra.mxu0 0.0
    %4413 = vmatprep.subr.mxu0 0.0
    %4414 = vmatpush1.msra.mxu0 0.0
    %4415 = vmatprep.subr.mxu0 0.0
    %4416 = vmatpush1.msra.mxu0 0.0
    %4417 = vmatprep.subr.mxu0 0.0
    %4418 = vmatpush1.msra.mxu0 0.0
    %4419 = vmatprep.subr.mxu0 0.0
    %4420 = vmatpush1.msra.mxu0 0.0
    %4421 = vmatprep.subr.mxu0 0.0
    %4422 = vmatpush1.msra.mxu0 0.0
    %4423 = vmatprep.subr.mxu0 0.0
    %4424 = vmatpush1.msra.mxu0 0.0
    %4425 = vmatprep.subr.mxu0 0.0
    %4426 = vmatpush1.msra.mxu0 0.0
    %4427 = vmatprep.subr.mxu0 0.0
    %4428 = vmatpush1.msra.mxu0 0.0
    %4429 = vmatprep.subr.mxu0 0.0
    %4430 = vmatpush1.msra.mxu0 0.0
    %4431 = vmatprep.subr.mxu0 0.0
    %4432 = vmatpush1.msra.mxu0 0.0
    %4433 = vmatprep.subr.mxu0 0.0
    %4434 = vmatpush1.msra.mxu0 0.0
    %4435 = vmatprep.subr.mxu0 0.0
    %4436 = vmatpush1.msra.mxu0 0.0
    %4437 = vmatprep.subr.mxu0 0.0
    %4438 = vmatpush1.msra.mxu0 0.0
    %4439 = vmatprep.subr.mxu0 0.0
    %4440 = vmatpush1.msra.mxu0 0.0
    %4441 = vmatprep.subr.mxu0 0.0
    %4442 = vmatpush1.msra.mxu0 0.0
    %4443 = vmatprep.subr.mxu0 0.0
    %4444 = vmatpush1.msra.mxu0 0.0
    %4445 = vmatprep.mubr.f32.mxu0 0.0
    %4446 = vmatmul.mubr.f32.gmra.mrb[0].mxu0 %v4379
    %v4447 = vpop.f32.mrb[0].mxu0
    %v4448 = vadd.f32 0.0, %v4447
    %v4449 = vpop.f32.mrb[0].mxu0
    %4450 = vdwg.mxu0
    %v4452 = vrot.slane %v4448, 2
    %v4454 = vadd.f32 %v4050, %v4452
    %v4455 = vxor.u32 %v4454, 2147483648
    %v4456 = vmul.f32 %v4455, 1.442695
    %v4457 = vpow.pop %v4456
    %v4458 = vadd.f32 %v4457, 1.0
    %v4459 = vrcp.pop %v4458
    %v4460 = vmul.f32 1.0, %v4459
    %v4461 = vtanh.pop %v4454
    %v4463 = vrot.slane %v4366, 6
    %v4465 = vmul.f32 %v4460, %v4463
    %4467 = vrot.lane.b32.xlu0 %v4461, 64
    %v4468 = vpop.permute.xlu0 %4467
    %v4470 = vmul.f32 %v4460, %v4468
    %4472 = vrot.lane.b32.xlu0 %v4470, 32
    %v4473 = vpop.permute.xlu0 %4472
    %v4475 = vadd.f32 %v4465, %v4473
    %v4476 = vtanh.pop %v4475
    %4478 = vrot.lane.b32.xlu0 %v4476, 64
    %v4479 = vpop.permute.xlu0 %4478
    %v4481 = vmul.f32 %v4460, %v4479
    %v4483 = vrot.slane %v4481, 6
    %4484 = vrot.lane.b32.xlu0 %v4483, 32
    %v4485 = vpop.permute.xlu0 %4484
    %v4487 = vsel %vm3479, %v4485, %v4378
    %v4488 = vsel %vm185, %v4485, 0
    %4490 = vmatprep.subr.mxu0 0.0
    %4491 = vmatpush1.msra.mxu0 %v3961
    %4492 = vmatprep.subr.mxu0 0.0
    %4493 = vmatpush1.msra.mxu0 %v3962
    %4494 = vmatprep.subr.mxu0 0.0
    %4495 = vmatpush1.msra.mxu0 %v3963
    %4496 = vmatprep.subr.mxu0 0.0
    %4497 = vmatpush1.msra.mxu0 %v3964
    %4498 = vmatprep.subr.mxu0 0.0
    %4499 = vmatpush1.msra.mxu0 0.0
    %4500 = vmatprep.subr.mxu0 0.0
    %4501 = vmatpush1.msra.mxu0 0.0
    %4502 = vmatprep.subr.mxu0 0.0
    %4503 = vmatpush1.msra.mxu0 0.0
    %4504 = vmatprep.subr.mxu0 0.0
    %4505 = vmatpush1.msra.mxu0 0.0
    %4506 = vmatprep.subr.mxu0 0.0
    %4507 = vmatpush1.msra.mxu0 0.0
    %4508 = vmatprep.subr.mxu0 0.0
    %4509 = vmatpush1.msra.mxu0 0.0
    %4510 = vmatprep.subr.mxu0 0.0
    %4511 = vmatpush1.msra.mxu0 0.0
    %4512 = vmatprep.subr.mxu0 0.0
    %4513 = vmatpush1.msra.mxu0 0.0
    %4514 = vmatprep.subr.mxu0 0.0
    %4515 = vmatpush1.msra.mxu0 0.0
    %4516 = vmatprep.subr.mxu0 0.0
    %4517 = vmatpush1.msra.mxu0 0.0
    %4518 = vmatprep.subr.mxu0 0.0
    %4519 = vmatpush1.msra.mxu0 0.0
    %4520 = vmatprep.subr.mxu0 0.0
    %4521 = vmatpush1.msra.mxu0 0.0
    %4522 = vmatprep.subr.mxu0 0.0
    %4523 = vmatpush1.msra.mxu0 0.0
    %4524 = vmatprep.subr.mxu0 0.0
    %4525 = vmatpush1.msra.mxu0 0.0
    %4526 = vmatprep.subr.mxu0 0.0
    %4527 = vmatpush1.msra.mxu0 0.0
    %4528 = vmatprep.subr.mxu0 0.0
    %4529 = vmatpush1.msra.mxu0 0.0
    %4530 = vmatprep.subr.mxu0 0.0
    %4531 = vmatpush1.msra.mxu0 0.0
    %4532 = vmatprep.subr.mxu0 0.0
    %4533 = vmatpush1.msra.mxu0 0.0
    %4534 = vmatprep.subr.mxu0 0.0
    %4535 = vmatpush1.msra.mxu0 0.0
    %4536 = vmatprep.subr.mxu0 0.0
    %4537 = vmatpush1.msra.mxu0 0.0
    %4538 = vmatprep.subr.mxu0 0.0
    %4539 = vmatpush1.msra.mxu0 0.0
    %4540 = vmatprep.subr.mxu0 0.0
    %4541 = vmatpush1.msra.mxu0 0.0
    %4542 = vmatprep.subr.mxu0 0.0
    %4543 = vmatpush1.msra.mxu0 0.0
    %4544 = vmatprep.subr.mxu0 0.0
    %4545 = vmatpush1.msra.mxu0 0.0
    %4546 = vmatprep.subr.mxu0 0.0
    %4547 = vmatpush1.msra.mxu0 0.0
    %4548 = vmatprep.subr.mxu0 0.0
    %4549 = vmatpush1.msra.mxu0 0.0
    %4550 = vmatprep.subr.mxu0 0.0
    %4551 = vmatpush1.msra.mxu0 0.0
    %4552 = vmatprep.subr.mxu0 0.0
    %4553 = vmatpush1.msra.mxu0 0.0
    %4554 = vmatprep.mubr.f32.mxu0 0.0
    %4555 = vmatmul.mubr.f32.gmra.mrb[0].mxu0 %v4488
    %v4556 = vpop.f32.mrb[0].mxu0
    %v4557 = vadd.f32 0.0, %v4556
    %v4558 = vpop.f32.mrb[0].mxu0
    %4559 = vdwg.mxu0
    %v4560 = vadd.f32 %v4055, %v4557
    %v4561 = vxor.u32 %v4560, 2147483648
    %v4562 = vmul.f32 %v4561, 1.442695
    %v4563 = vpow.pop %v4562
    %v4564 = vadd.f32 %v4563, 1.0
    %v4565 = vrcp.pop %v4564
    %v4566 = vmul.f32 1.0, %v4565
    %v4567 = vtanh.pop %v4560
    %v4569 = vrot.slane %v4475, 6
    %v4571 = vmul.f32 %v4566, %v4569
    %4573 = vrot.lane.b32.xlu0 %v4567, 64
    %v4574 = vpop.permute.xlu0 %4573
    %v4576 = vmul.f32 %v4566, %v4574
    %4578 = vrot.lane.b32.xlu0 %v4576, 32
    %v4579 = vpop.permute.xlu0 %4578
    %v4581 = vadd.f32 %v4571, %v4579
    %v4582 = vtanh.pop %v4581
    %4584 = vrot.lane.b32.xlu0 %v4582, 64
    %v4585 = vpop.permute.xlu0 %4584
    %v4587 = vmul.f32 %v4566, %v4585
    %4589 = vrot.lane.b32.xlu0 %v4487, 96
    %v4590 = vpop.permute.xlu0 %4589
    %v4592 = vsel %vm3591, %v4587, %v4590
    %4594 = vrot.lane.b32.xlu0 %v4587, 32
    %v4595 = vpop.permute.xlu0 %4594
    %v4596 = vsel %vm185, %v4595, 0
    %4598 = vmatprep.subr.mxu0 0.0
    %4599 = vmatpush1.msra.mxu0 %v3961
    %4600 = vmatprep.subr.mxu0 0.0
    %4601 = vmatpush1.msra.mxu0 %v3962
    %4602 = vmatprep.subr.mxu0 0.0
    %4603 = vmatpush1.msra.mxu0 %v3963
    %4604 = vmatprep.subr.mxu0 0.0
    %4605 = vmatpush1.msra.mxu0 %v3964
    %4606 = vmatprep.subr.mxu0 0.0
    %4607 = vmatpush1.msra.mxu0 0.0
    %4608 = vmatprep.subr.mxu0 0.0
    %4609 = vmatpush1.msra.mxu0 0.0
    %4610 = vmatprep.subr.mxu0 0.0
    %4611 = vmatpush1.msra.mxu0 0.0
    %4612 = vmatprep.subr.mxu0 0.0
    %4613 = vmatpush1.msra.mxu0 0.0
    %4614 = vmatprep.subr.mxu0 0.0
    %4615 = vmatpush1.msra.mxu0 0.0
    %4616 = vmatprep.subr.mxu0 0.0
    %4617 = vmatpush1.msra.mxu0 0.0
    %4618 = vmatprep.subr.mxu0 0.0
    %4619 = vmatpush1.msra.mxu0 0.0
    %4620 = vmatprep.subr.mxu0 0.0
    %4621 = vmatpush1.msra.mxu0 0.0
    %4622 = vmatprep.subr.mxu0 0.0
    %4623 = vmatpush1.msra.mxu0 0.0
    %4624 = vmatprep.subr.mxu0 0.0
    %4625 = vmatpush1.msra.mxu0 0.0
    %4626 = vmatprep.subr.mxu0 0.0
    %4627 = vmatpush1.msra.mxu0 0.0
    %4628 = vmatprep.subr.mxu0 0.0
    %4629 = vmatpush1.msra.mxu0 0.0
    %4630 = vmatprep.subr.mxu0 0.0
    %4631 = vmatpush1.msra.mxu0 0.0
    %4632 = vmatprep.subr.mxu0 0.0
    %4633 = vmatpush1.msra.mxu0 0.0
    %4634 = vmatprep.subr.mxu0 0.0
    %4635 = vmatpush1.msra.mxu0 0.0
    %4636 = vmatprep.subr.mxu0 0.0
    %4637 = vmatpush1.msra.mxu0 0.0
    %4638 = vmatprep.subr.mxu0 0.0
    %4639 = vmatpush1.msra.mxu0 0.0
    %4640 = vmatprep.subr.mxu0 0.0
    %4641 = vmatpush1.msra.mxu0 0.0
    %4642 = vmatprep.subr.mxu0 0.0
    %4643 = vmatpush1.msra.mxu0 0.0
    %4644 = vmatprep.subr.mxu0 0.0
    %4645 = vmatpush1.msra.mxu0 0.0
    %4646 = vmatprep.subr.mxu0 0.0
    %4647 = vmatpush1.msra.mxu0 0.0
    %4648 = vmatprep.subr.mxu0 0.0
    %4649 = vmatpush1.msra.mxu0 0.0
    %4650 = vmatprep.subr.mxu0 0.0
    %4651 = vmatpush1.msra.mxu0 0.0
    %4652 = vmatprep.subr.mxu0 0.0
    %4653 = vmatpush1.msra.mxu0 0.0
    %4654 = vmatprep.subr.mxu0 0.0
    %4655 = vmatpush1.msra.mxu0 0.0
    %4656 = vmatprep.subr.mxu0 0.0
    %4657 = vmatpush1.msra.mxu0 0.0
    %4658 = vmatprep.subr.mxu0 0.0
    %4659 = vmatpush1.msra.mxu0 0.0
    %4660 = vmatprep.subr.mxu0 0.0
    %4661 = vmatpush1.msra.mxu0 0.0
    %4662 = vmatprep.mubr.f32.mxu0 0.0
    %4663 = vmatmul.mubr.f32.gmra.mrb[0].mxu0 %v4596
    %v4664 = vpop.f32.mrb[0].mxu0
    %v4665 = vadd.f32 0.0, %v4664
    %v4666 = vpop.f32.mrb[0].mxu0
    %4667 = vdwg.mxu0
    %v4669 = vrot.slane %v4665, 6
    %v4671 = vadd.f32 %v4055, %v4669
    %v4672 = vxor.u32 %v4671, 2147483648
    %v4673 = vmul.f32 %v4672, 1.442695
    %v4674 = vpow.pop %v4673
    %v4675 = vadd.f32 %v4674, 1.0
    %v4676 = vrcp.pop %v4675
    %v4677 = vmul.f32 1.0, %v4676
    %v4678 = vtanh.pop %v4671
    %v4680 = vrot.slane %v4581, 6
    %v4682 = vmul.f32 %v4677, %v4680
    %4684 = vrot.lane.b32.xlu0 %v4678, 64
    %v4685 = vpop.permute.xlu0 %4684
    %v4687 = vmul.f32 %v4677, %v4685
    %4689 = vrot.lane.b32.xlu0 %v4687, 32
    %v4690 = vpop.permute.xlu0 %4689
    %v4692 = vadd.f32 %v4682, %v4690
    %v4693 = vtanh.pop %v4692
    %4695 = vrot.lane.b32.xlu0 %v4693, 64
    %v4696 = vpop.permute.xlu0 %4695
    %v4698 = vmul.f32 %v4677, %v4696
    %v4700 = vrot.slane %v4698, 2
    %4701 = vrot.lane.b32.xlu0 %v4700, 32
    %v4702 = vpop.permute.xlu0 %4701
    %4705 = vrot.lane.b32.xlu0 %v4592, 32
    %v4706 = vpop.permute.xlu0 %4705
    %v4708 = vsel %vm3708, %v4702, %v4706
    %v4709 = vsel %vm185, %v4702, 0
    %4711 = vmatprep.subr.mxu0 0.0
    %4712 = vmatpush1.msra.mxu0 %v3961
    %4713 = vmatprep.subr.mxu0 0.0
    %4714 = vmatpush1.msra.mxu0 %v3962
    %4715 = vmatprep.subr.mxu0 0.0
    %4716 = vmatpush1.msra.mxu0 %v3963
    %4717 = vmatprep.subr.mxu0 0.0
    %4718 = vmatpush1.msra.mxu0 %v3964
    %4719 = vmatprep.subr.mxu0 0.0
    %4720 = vmatpush1.msra.mxu0 0.0
    %4721 = vmatprep.subr.mxu0 0.0
    %4722 = vmatpush1.msra.mxu0 0.0
    %4723 = vmatprep.subr.mxu0 0.0
    %4724 = vmatpush1.msra.mxu0 0.0
    %4725 = vmatprep.subr.mxu0 0.0
    %4726 = vmatpush1.msra.mxu0 0.0
    %4727 = vmatprep.subr.mxu0 0.0
    %4728 = vmatpush1.msra.mxu0 0.0
    %4729 = vmatprep.subr.mxu0 0.0
    %4730 = vmatpush1.msra.mxu0 0.0
    %4731 = vmatprep.subr.mxu0 0.0
    %4732 = vmatpush1.msra.mxu0 0.0
    %4733 = vmatprep.subr.mxu0 0.0
    %4734 = vmatpush1.msra.mxu0 0.0
    %4735 = vmatprep.subr.mxu0 0.0
    %4736 = vmatpush1.msra.mxu0 0.0
    %4737 = vmatprep.subr.mxu0 0.0
    %4738 = vmatpush1.msra.mxu0 0.0
    %4739 = vmatprep.subr.mxu0 0.0
    %4740 = vmatpush1.msra.mxu0 0.0
    %4741 = vmatprep.subr.mxu0 0.0
    %4742 = vmatpush1.msra.mxu0 0.0
    %4743 = vmatprep.subr.mxu0 0.0
    %4744 = vmatpush1.msra.mxu0 0.0
    %4745 = vmatprep.subr.mxu0 0.0
    %4746 = vmatpush1.msra.mxu0 0.0
    %4747 = vmatprep.subr.mxu0 0.0
    %4748 = vmatpush1.msra.mxu0 0.0
    %4749 = vmatprep.subr.mxu0 0.0
    %4750 = vmatpush1.msra.mxu0 0.0
    %4751 = vmatprep.subr.mxu0 0.0
    %4752 = vmatpush1.msra.mxu0 0.0
    %4753 = vmatprep.subr.mxu0 0.0
    %4754 = vmatpush1.msra.mxu0 0.0
    %4755 = vmatprep.subr.mxu0 0.0
    %4756 = vmatpush1.msra.mxu0 0.0
    %4757 = vmatprep.subr.mxu0 0.0
    %4758 = vmatpush1.msra.mxu0 0.0
    %4759 = vmatprep.subr.mxu0 0.0
    %4760 = vmatpush1.msra.mxu0 0.0
    %4761 = vmatprep.subr.mxu0 0.0
    %4762 = vmatpush1.msra.mxu0 0.0
    %4763 = vmatprep.subr.mxu0 0.0
    %4764 = vmatpush1.msra.mxu0 0.0
    %4765 = vmatprep.subr.mxu0 0.0
    %4766 = vmatpush1.msra.mxu0 0.0
    %4767 = vmatprep.subr.mxu0 0.0
    %4768 = vmatpush1.msra.mxu0 0.0
    %4769 = vmatprep.subr.mxu0 0.0
    %4770 = vmatpush1.msra.mxu0 0.0
    %4771 = vmatprep.subr.mxu0 0.0
    %4772 = vmatpush1.msra.mxu0 0.0
    %4773 = vmatprep.subr.mxu0 0.0
    %4774 = vmatpush1.msra.mxu0 0.0
    %4775 = vmatprep.mubr.f32.mxu0 0.0
    %4776 = vmatmul.mubr.f32.gmra.mrb[0].mxu0 %v4709
    %v4777 = vpop.f32.mrb[0].mxu0
    %v4778 = vadd.f32 0.0, %v4777
    %v4779 = vpop.f32.mrb[0].mxu0
    %4780 = vdwg.mxu0
    %v4782 = vrot.slane %v4778, 4
    %v4784 = vadd.f32 %v4055, %v4782
    %v4785 = vxor.u32 %v4784, 2147483648
    %v4786 = vmul.f32 %v4785, 1.442695
    %v4787 = vpow.pop %v4786
    %v4788 = vadd.f32 %v4787, 1.0
    %v4789 = vrcp.pop %v4788
    %v4790 = vmul.f32 1.0, %v4789
    %v4791 = vtanh.pop %v4784
    %v4793 = vrot.slane %v4692, 6
    %v4795 = vmul.f32 %v4790, %v4793
    %4797 = vrot.lane.b32.xlu0 %v4791, 64
    %v4798 = vpop.permute.xlu0 %4797
    %v4800 = vmul.f32 %v4790, %v4798
    %4802 = vrot.lane.b32.xlu0 %v4800, 32
    %v4803 = vpop.permute.xlu0 %4802
    %v4805 = vadd.f32 %v4795, %v4803
    %v4806 = vtanh.pop %v4805
    %4808 = vrot.lane.b32.xlu0 %v4806, 64
    %v4809 = vpop.permute.xlu0 %4808
    %v4811 = vmul.f32 %v4790, %v4809
    %v4813 = vrot.slane %v4811, 4
    %4814 = vrot.lane.b32.xlu0 %v4813, 32
    %v4815 = vpop.permute.xlu0 %4814
    %v4817 = vsel %vm3827, %v4815, %v4708
    %v4818 = vsel %vm185, %v4815, 0
    %4820 = vmatprep.subr.mxu0 0.0
    %4821 = vmatpush1.msra.mxu0 %v3961
    %4822 = vmatprep.subr.mxu0 0.0
    %4823 = vmatpush1.msra.mxu0 %v3962
    %4824 = vmatprep.subr.mxu0 0.0
    %4825 = vmatpush1.msra.mxu0 %v3963
    %4826 = vmatprep.subr.mxu0 0.0
    %4827 = vmatpush1.msra.mxu0 %v3964
    %4828 = vmatprep.subr.mxu0 0.0
    %4829 = vmatpush1.msra.mxu0 0.0
    %4830 = vmatprep.subr.mxu0 0.0
    %4831 = vmatpush1.msra.mxu0 0.0
    %4832 = vmatprep.subr.mxu0 0.0
    %4833 = vmatpush1.msra.mxu0 0.0
    %4834 = vmatprep.subr.mxu0 0.0
    %4835 = vmatpush1.msra.mxu0 0.0
    %4836 = vmatprep.subr.mxu0 0.0
    %4837 = vmatpush1.msra.mxu0 0.0
    %4838 = vmatprep.subr.mxu0 0.0
    %4839 = vmatpush1.msra.mxu0 0.0
    %4840 = vmatprep.subr.mxu0 0.0
    %4841 = vmatpush1.msra.mxu0 0.0
    %4842 = vmatprep.subr.mxu0 0.0
    %4843 = vmatpush1.msra.mxu0 0.0
    %4844 = vmatprep.subr.mxu0 0.0
    %4845 = vmatpush1.msra.mxu0 0.0
    %4846 = vmatprep.subr.mxu0 0.0
    %4847 = vmatpush1.msra.mxu0 0.0
    %4848 = vmatprep.subr.mxu0 0.0
    %4849 = vmatpush1.msra.mxu0 0.0
    %4850 = vmatprep.subr.mxu0 0.0
    %4851 = vmatpush1.msra.mxu0 0.0
    %4852 = vmatprep.subr.mxu0 0.0
    %4853 = vmatpush1.msra.mxu0 0.0
    %4854 = vmatprep.subr.mxu0 0.0
    %4855 = vmatpush1.msra.mxu0 0.0
    %4856 = vmatprep.subr.mxu0 0.0
    %4857 = vmatpush1.msra.mxu0 0.0
    %4858 = vmatprep.subr.mxu0 0.0
    %4859 = vmatpush1.msra.mxu0 0.0
    %4860 = vmatprep.subr.mxu0 0.0
    %4861 = vmatpush1.msra.mxu0 0.0
    %4862 = vmatprep.subr.mxu0 0.0
    %4863 = vmatpush1.msra.mxu0 0.0
    %4864 = vmatprep.subr.mxu0 0.0
    %4865 = vmatpush1.msra.mxu0 0.0
    %4866 = vmatprep.subr.mxu0 0.0
    %4867 = vmatpush1.msra.mxu0 0.0
    %4868 = vmatprep.subr.mxu0 0.0
    %4869 = vmatpush1.msra.mxu0 0.0
    %4870 = vmatprep.subr.mxu0 0.0
    %4871 = vmatpush1.msra.mxu0 0.0
    %4872 = vmatprep.subr.mxu0 0.0
    %4873 = vmatpush1.msra.mxu0 0.0
    %4874 = vmatprep.subr.mxu0 0.0
    %4875 = vmatpush1.msra.mxu0 0.0
    %4876 = vmatprep.subr.mxu0 0.0
    %4877 = vmatpush1.msra.mxu0 0.0
    %4878 = vmatprep.subr.mxu0 0.0
    %4879 = vmatpush1.msra.mxu0 0.0
    %4880 = vmatprep.subr.mxu0 0.0
    %4881 = vmatpush1.msra.mxu0 0.0
    %4882 = vmatprep.subr.mxu0 0.0
    %4883 = vmatpush1.msra.mxu0 0.0
    %4884 = vmatprep.mubr.f32.mxu0 0.0
    %4885 = vmatmul.mubr.f32.gmra.mrb[0].mxu0 %v4818
    %v4886 = vpop.f32.mrb[0].mxu0
    %v4887 = vadd.f32 0.0, %v4886
    %v4888 = vpop.f32.mrb[0].mxu0
    %4889 = vdwg.mxu0
    %v4891 = vrot.slane %v4887, 2
    %v4893 = vadd.f32 %v4055, %v4891
    %v4894 = vxor.u32 %v4893, 2147483648
    %v4895 = vmul.f32 %v4894, 1.442695
    %v4896 = vpow.pop %v4895
    %v4897 = vadd.f32 %v4896, 1.0
    %v4898 = vrcp.pop %v4897
    %v4899 = vmul.f32 1.0, %v4898
    %v4900 = vtanh.pop %v4893
    %v4902 = vrot.slane %v4805, 6
    %v4904 = vmul.f32 %v4899, %v4902
    %4906 = vrot.lane.b32.xlu0 %v4900, 64
    %v4907 = vpop.permute.xlu0 %4906
    %v4909 = vmul.f32 %v4899, %v4907
    %4911 = vrot.lane.b32.xlu0 %v4909, 32
    %v4912 = vpop.permute.xlu0 %4911
    %v4914 = vadd.f32 %v4904, %v4912
    %v4915 = vtanh.pop %v4914
    %4917 = vrot.lane.b32.xlu0 %v4915, 64
    %v4918 = vpop.permute.xlu0 %4917
    %v4920 = vmul.f32 %v4899, %v4918
    %v4922 = vrot.slane %v4920, 6
    %4923 = vrot.lane.b32.xlu0 %v4922, 32
    %v4924 = vpop.permute.xlu0 %4923
    %v4926 = vsel %vm3942, %v4924, %v4817
    %v4927 = vld [vmem:[%s8] sm:$0xff]
    %v4928 = vld [vmem:[%s8 + $0x8] sm:$0xff]
    %v4929 = vld [vmem:[%s8 + $0x10] sm:$0xff]
    %v4930 = vld [vmem:[%s8 + $0x18] sm:$0xff]
    %v4931 = vld [vmem:[%s8 + $0x20] sm:$0xff]
    %v4932 = vld [vmem:[%s8 + $0x28] sm:$0xff]
    %v4933 = vld [vmem:[%s8 + $0x30] sm:$0xff]
    %v4934 = vld [vmem:[%s8 + $0x38] sm:$0xff]
    %v4936 = vsel %vm185, %v4926, 0
    %4938 = vmatprep.subr.mxu0 0.0
    %4939 = vmatpush1.msra.mxu0 %v4931
    %4940 = vmatprep.subr.mxu0 0.0
    %4941 = vmatpush1.msra.mxu0 %v4932
    %4942 = vmatprep.subr.mxu0 0.0
    %4943 = vmatpush1.msra.mxu0 %v4933
    %4944 = vmatprep.subr.mxu0 0.0
    %4945 = vmatpush1.msra.mxu0 %v4934
    %4946 = vmatprep.subr.mxu0 0.0
    %4947 = vmatpush1.msra.mxu0 0.0
    %4948 = vmatprep.subr.mxu0 0.0
    %4949 = vmatpush1.msra.mxu0 0.0
    %4950 = vmatprep.subr.mxu0 0.0
    %4951 = vmatpush1.msra.mxu0 0.0
    %4952 = vmatprep.subr.mxu0 0.0
    %4953 = vmatpush1.msra.mxu0 0.0
    %4954 = vmatprep.subr.mxu0 0.0
    %4955 = vmatpush1.msra.mxu0 0.0
    %4956 = vmatprep.subr.mxu0 0.0
    %4957 = vmatpush1.msra.mxu0 0.0
    %4958 = vmatprep.subr.mxu0 0.0
    %4959 = vmatpush1.msra.mxu0 0.0
    %4960 = vmatprep.subr.mxu0 0.0
    %4961 = vmatpush1.msra.mxu0 0.0
    %4962 = vmatprep.subr.mxu0 0.0
    %4963 = vmatpush1.msra.mxu0 0.0
    %4964 = vmatprep.subr.mxu0 0.0
    %4965 = vmatpush1.msra.mxu0 0.0
    %4966 = vmatprep.subr.mxu0 0.0
    %4967 = vmatpush1.msra.mxu0 0.0
    %4968 = vmatprep.subr.mxu0 0.0
    %4969 = vmatpush1.msra.mxu0 0.0
    %4970 = vmatprep.subr.mxu0 0.0
    %4971 = vmatpush1.msra.mxu0 0.0
    %4972 = vmatprep.subr.mxu0 0.0
    %4973 = vmatpush1.msra.mxu0 0.0
    %4974 = vmatprep.subr.mxu0 0.0
    %4975 = vmatpush1.msra.mxu0 0.0
    %4976 = vmatprep.subr.mxu0 0.0
    %4977 = vmatpush1.msra.mxu0 0.0
    %4978 = vmatprep.subr.mxu0 0.0
    %4979 = vmatpush1.msra.mxu0 0.0
    %4980 = vmatprep.subr.mxu0 0.0
    %4981 = vmatpush1.msra.mxu0 0.0
    %4982 = vmatprep.subr.mxu0 0.0
    %4983 = vmatpush1.msra.mxu0 0.0
    %4984 = vmatprep.subr.mxu0 0.0
    %4985 = vmatpush1.msra.mxu0 0.0
    %4986 = vmatprep.subr.mxu0 0.0
    %4987 = vmatpush1.msra.mxu0 0.0
    %4988 = vmatprep.subr.mxu0 0.0
    %4989 = vmatpush1.msra.mxu0 0.0
    %4990 = vmatprep.subr.mxu0 0.0
    %4991 = vmatpush1.msra.mxu0 0.0
    %4992 = vmatprep.subr.mxu0 0.0
    %4993 = vmatpush1.msra.mxu0 0.0
    %4994 = vmatprep.subr.mxu0 0.0
    %4995 = vmatpush1.msra.mxu0 0.0
    %4996 = vmatprep.subr.mxu0 0.0
    %4997 = vmatpush1.msra.mxu0 0.0
    %4998 = vmatprep.subr.mxu0 0.0
    %4999 = vmatpush1.msra.mxu0 0.0
    %5000 = vmatprep.subr.mxu0 0.0
    %5001 = vmatpush1.msra.mxu0 0.0
    %5002 = vmatprep.mubr.f32.mxu0 0.0
    %5003 = vmatmul.mubr.f32.gmra.mrb[0].mxu0 %v4936
    %v5004 = vpop.f32.mrb[0].mxu0
    %v5005 = vadd.f32 0.0, %v5004
    %v5006 = vpop.f32.mrb[0].mxu0
    %5007 = vdwg.mxu0
    %v5009 = vsel %vm185, %v3948, 0
    %5011 = vmatprep.subr.mxu0 0.0
    %5012 = vmatpush1.msra.mxu0 %v4927
    %5013 = vmatprep.subr.mxu0 0.0
    %5014 = vmatpush1.msra.mxu0 %v4928
    %5015 = vmatprep.subr.mxu0 0.0
    %5016 = vmatpush1.msra.mxu0 %v4929
    %5017 = vmatprep.subr.mxu0 0.0
    %5018 = vmatpush1.msra.mxu0 %v4930
    %5019 = vmatprep.subr.mxu0 0.0
    %5020 = vmatpush1.msra.mxu0 0.0
    %5021 = vmatprep.subr.mxu0 0.0
    %5022 = vmatpush1.msra.mxu0 0.0
    %5023 = vmatprep.subr.mxu0 0.0
    %5024 = vmatpush1.msra.mxu0 0.0
    %5025 = vmatprep.subr.mxu0 0.0
    %5026 = vmatpush1.msra.mxu0 0.0
    %5027 = vmatprep.subr.mxu0 0.0
    %5028 = vmatpush1.msra.mxu0 0.0
    %5029 = vmatprep.subr.mxu0 0.0
    %5030 = vmatpush1.msra.mxu0 0.0
    %5031 = vmatprep.subr.mxu0 0.0
    %5032 = vmatpush1.msra.mxu0 0.0
    %5033 = vmatprep.subr.mxu0 0.0
    %5034 = vmatpush1.msra.mxu0 0.0
    %5035 = vmatprep.subr.mxu0 0.0
    %5036 = vmatpush1.msra.mxu0 0.0
    %5037 = vmatprep.subr.mxu0 0.0
    %5038 = vmatpush1.msra.mxu0 0.0
    %5039 = vmatprep.subr.mxu0 0.0
    %5040 = vmatpush1.msra.mxu0 0.0
    %5041 = vmatprep.subr.mxu0 0.0
    %5042 = vmatpush1.msra.mxu0 0.0
    %5043 = vmatprep.subr.mxu0 0.0
    %5044 = vmatpush1.msra.mxu0 0.0
    %5045 = vmatprep.subr.mxu0 0.0
    %5046 = vmatpush1.msra.mxu0 0.0
    %5047 = vmatprep.subr.mxu0 0.0
    %5048 = vmatpush1.msra.mxu0 0.0
    %5049 = vmatprep.subr.mxu0 0.0
    %5050 = vmatpush1.msra.mxu0 0.0
    %5051 = vmatprep.subr.mxu0 0.0
    %5052 = vmatpush1.msra.mxu0 0.0
    %5053 = vmatprep.subr.mxu0 0.0
    %5054 = vmatpush1.msra.mxu0 0.0
    %5055 = vmatprep.subr.mxu0 0.0
    %5056 = vmatpush1.msra.mxu0 0.0
    %5057 = vmatprep.subr.mxu0 0.0
    %5058 = vmatpush1.msra.mxu0 0.0
    %5059 = vmatprep.subr.mxu0 0.0
    %5060 = vmatpush1.msra.mxu0 0.0
    %5061 = vmatprep.subr.mxu0 0.0
    %5062 = vmatpush1.msra.mxu0 0.0
    %5063 = vmatprep.subr.mxu0 0.0
    %5064 = vmatpush1.msra.mxu0 0.0
    %5065 = vmatprep.subr.mxu0 0.0
    %5066 = vmatpush1.msra.mxu0 0.0
    %5067 = vmatprep.subr.mxu0 0.0
    %5068 = vmatpush1.msra.mxu0 0.0
    %5069 = vmatprep.subr.mxu0 0.0
    %5070 = vmatpush1.msra.mxu0 0.0
    %5071 = vmatprep.subr.mxu0 0.0
    %5072 = vmatpush1.msra.mxu0 0.0
    %5073 = vmatprep.subr.mxu0 0.0
    %5074 = vmatpush1.msra.mxu0 0.0
    %5075 = vmatprep.mubr.f32.mxu0 0.0
    %5076 = vmatmul.mubr.f32.gmra.mrb[0].mxu0 %v5009
    %v5077 = vpop.f32.mrb[0].mxu0
    %v5078 = vadd.f32 %v5005, %v5077
    %v5079 = vpop.f32.mrb[0].mxu0
    %5080 = vdwg.mxu0
    %v5081 = vld [vmem:[%s9] sm:$0x1]
    %v5083 = vlaneseq
    %v5084 = vshrl.u32 %v5083, 7
    %v5085 = vsub.s32 0, %v5084
    %v5086 = vrot.slane %v5081, %v5085
    %v5088 = vadd.f32 %v5078, %v5086
    %vm5089 = vcmask 9216
    %5090 = vst.msk [vmem:[#allocation8] sm:$0x3] %vm5089, %v5088
    // Predicated region
    $region54: #{tpu_custom_call.1} parent=1 // pred_check
      _
    $region55: #{tpu_custom_call.1} parent=1 // pred_check_branch
      %5092 = sbr.rel (0) target = $region57
    $region56: #{tpu_custom_call.1} parent=1 // pred_region
      %s5094 = ssub.s32 32, 32
      %5095 = vsyncadd [#allocation4], %s5094
      %s5097 = sshll.u32 [#allocation8], 4
      %s5098 = int_to_ptr.vmem [resolvable:$true] %s5097
      %5100 = dma.vmem_to_hbm [thread:$0]  %s5098, 32, %s10, [#allocation4]
    $region57: #{tpu_custom_call.1} parent=1 // pred_fallthru
      _
    // Predicated region
    $region58: #{tpu_custom_call.1} parent=1 // pred_check
      _
    $region59: #{tpu_custom_call.1} parent=1 // pred_check_branch
      %5102 = sbr.rel (0) target = $region61
    $region60: #{tpu_custom_call.1} parent=1 // pred_region
      %5103 = dma.done [#allocation4], 32
    $region61: #{tpu_custom_call.1} parent=1 // pred_fallthru
      _
    %5104 = vsyncpa [#allocation3], 1
    %5105 = vsyncpa [#allocation6], 1
    %5106 = vsyncpa [#allocation4], 1

</llo_original>
